<compile_context>
chip_gen: v5e
topology: v5e:2x2
jax: 0.10.0
libtpu: 0.0.40
codegen_flags: <defaults>
</compile_context>

<pallas_src>
import jax
import jax.numpy as jnp
from jax.experimental import pallas as pl
from jax.experimental.pallas import tpu as pltpu

HIDDEN = 512
PAD_N = 128          # lane-dense padded classifier width (true N=10 sliced in wrapper)


# ----------------------------------------------------------------------------
# Fused kernel: layer-1 K-accumulation over the grid, then (on the last k)
# the remaining 3 hidden layers + classifier entirely in VMEM.
# ----------------------------------------------------------------------------
def _mlp_fused_kernel(x_ref, w1_ref, w2_ref, w3_ref, w4_ref, wc_ref,
                      shifts_ref, shiftc_ref, o_ref, h_acc):
    k = pl.program_id(0)

    @pl.when(k == 0)
    def _():
        h_acc[...] = jnp.zeros_like(h_acc)

    # Layer 1: K tiled over the grid, bf16 operands, f32 accumulation.
    h_acc[...] += jnp.dot(x_ref[...], w1_ref[...],
                          preferred_element_type=jnp.float32)

    @pl.when(k == pl.num_programs(0) - 1)
    def _():
        # Layer 1 epilogue: folded-BN shift + ReLU.
        h = jnp.maximum(h_acc[...] + shifts_ref[0:1, :], 0.0)
        # Hidden layers 2..4 (weights fully VMEM-resident, activation never
        # leaves VMEM).
        for i, w_ref in enumerate((w2_ref, w3_ref, w4_ref)):
            acc = jnp.dot(h.astype(jnp.bfloat16), w_ref[...],
                          preferred_element_type=jnp.float32)
            h = jnp.maximum(acc + shifts_ref[i + 1:i + 2, :], 0.0)
        # Classifier: bias via shift, no ReLU, padded to 128 lanes.
        out = jnp.dot(h.astype(jnp.bfloat16), wc_ref[...],
                      preferred_element_type=jnp.float32) + shiftc_ref[...]
        o_ref[...] = out.astype(o_ref.dtype)


def mlp_forward_pallas(x_nchw, params, *, tk=1024):
    B = x_nchw.shape[0]
    x = x_nchw.reshape(B, -1).astype(jnp.bfloat16)   # == view(B, -1, 1, 1), channels-last
    K = x.shape[1]
    tk = min(tk, K)
    assert K % tk == 0
    w1, w2, w3, w4 = params["w"]
    num_classes = params["num_classes"]

    out_padded = pl.pallas_call(
        _mlp_fused_kernel,
        out_shape=jax.ShapeDtypeStruct((B, PAD_N), jnp.float32),
        grid_spec=pltpu.PrefetchScalarGridSpec(
            num_scalar_prefetch=0,
            grid=(K // tk,),
            in_specs=[
                pl.BlockSpec((B, tk), lambda k: (0, k)),           # x (K-tiled)
                pl.BlockSpec((tk, HIDDEN), lambda k: (k, 0)),      # w1 (K-tiled)
                pl.BlockSpec((HIDDEN, HIDDEN), lambda k: (0, 0)),  # w2 (resident)
                pl.BlockSpec((HIDDEN, HIDDEN), lambda k: (0, 0)),  # w3 (resident)
                pl.BlockSpec((HIDDEN, HIDDEN), lambda k: (0, 0)),  # w4 (resident)
                pl.BlockSpec((HIDDEN, PAD_N), lambda k: (0, 0)),   # wc (padded)
                pl.BlockSpec((4, HIDDEN), lambda k: (0, 0)),       # per-layer shifts
                pl.BlockSpec((1, PAD_N), lambda k: (0, 0)),        # classifier shift
            ],
            out_specs=pl.BlockSpec((B, PAD_N), lambda k: (0, 0)),
            scratch_shapes=[pltpu.VMEM((B, HIDDEN), jnp.float32)],
        ),
        compiler_params=pltpu.CompilerParams(
            dimension_semantics=("arbitrary",)),
    )(x, w1, w2, w3, w4, params["wc"], params["shifts"], params["shift_c"])
    return out_padded[:, :num_classes]


# ----------------------------------------------------------------------------
# Parameter construction (deterministic, synthetic).  Eval BatchNorm is folded:
#   scale = gamma / sqrt(var + eps) is folded into the conv weight columns,
#   shift = beta - mean * scale stays as the per-channel epilogue add.
# ----------------------------------------------------------------------------
def make_params(key, in_dim=32 * 32 * 3, hidden=HIDDEN, num_classes=10,
                eps=1e-5):
    dims = [in_dim, hidden, hidden, hidden, hidden]
    ws, shifts = [], []
    for i in range(4):
        key, kw, kg, kb = jax.random.split(key, 4)
        cin, cout = dims[i], dims[i + 1]
        # conv1x1 weight (Cout, Cin, 1, 1) stored transposed as (Cin, Cout)
        w = jax.random.normal(kw, (cin, cout), jnp.float32) * 0.02
        gamma = 1.0 + 0.1 * jax.random.normal(kg, (cout,), jnp.float32)
        beta = 0.1 * jax.random.normal(kb, (cout,), jnp.float32)
        run_mean = jnp.zeros((cout,), jnp.float32)
        run_var = jnp.ones((cout,), jnp.float32)
        scale = gamma / jnp.sqrt(run_var + eps)
        shift = beta - run_mean * scale
        ws.append((w * scale[None, :]).astype(jnp.bfloat16))   # fold BN scale
        shifts.append(shift)
    key, kw, kb = jax.random.split(key, 3)
    wc = jax.random.normal(kw, (hidden, num_classes), jnp.float32) * 0.02
    bc = 0.01 * jax.random.normal(kb, (num_classes,), jnp.float32)
    wc_pad = jnp.zeros((hidden, PAD_N), jnp.float32).at[:, :num_classes].set(wc)
    bc_pad = jnp.zeros((1, PAD_N), jnp.float32).at[0, :num_classes].set(bc)
    return dict(
        w=ws,                                   # 4 x bf16 (Cin, Cout), BN-scale folded
        shifts=jnp.stack(shifts, axis=0),       # (4, hidden) f32
        wc=wc_pad.astype(jnp.bfloat16),         # (hidden, 128) bf16, zero-padded
        shift_c=bc_pad,                         # (1, 128) f32 (bias), zero-padded
        num_classes=num_classes,
    )


# ----------------------------------------------------------------------------
# Pure-JAX reference using the same (bf16-quantized, BN-folded) parameters.
# ----------------------------------------------------------------------------
def mlp_forward_ref(x_nchw, params):
    B = x_nchw.shape[0]
    h = x_nchw.reshape(B, -1).astype(jnp.bfloat16)
    for i, w in enumerate(params["w"]):
        acc = jnp.dot(h, w, preferred_element_type=jnp.float32)
        h = jnp.maximum(acc + params["shifts"][i][None, :], 0.0)
        h = h.astype(jnp.bfloat16)
    out = (jnp.dot(h, params["wc"], preferred_element_type=jnp.float32)
           + params["shift_c"])
    return out[:, :params["num_classes"]]


if __name__ == "__main__":
    key = jax.random.PRNGKey(0)
    kx, kp = jax.random.split(key)

    B, C, H, W = 8, 3, 32, 32            # CIFAR-shaped input, NCHW
    x = jax.random.normal(kx, (B, C, H, W), jnp.float32)
    params = make_params(kp, in_dim=C * H * W, hidden=HIDDEN, num_classes=10)

    out = mlp_forward_pallas(x, params)
    out = jax.block_until_ready(out)

    ref = mlp_forward_ref(x, params)
    assert out.shape == (B, 10), out.shape
    max_err = float(jnp.max(jnp.abs(out - ref)))
    assert jnp.allclose(out, ref, atol=5e-3, rtol=5e-3), max_err

    print("KERNEL_OK")
</pallas_src>

<mosaic_0001>
module attributes {stable_mosaic.version = 11 : i64} {
  func.func @_mlp_fused_kernel(%arg0: i32, %arg1: memref<8x1024xbf16, #tpu.memory_space<vmem>>, %arg2: memref<1024x512xbf16, #tpu.memory_space<vmem>>, %arg3: memref<512x512xbf16, #tpu.memory_space<vmem>>, %arg4: memref<512x512xbf16, #tpu.memory_space<vmem>>, %arg5: memref<512x512xbf16, #tpu.memory_space<vmem>>, %arg6: memref<512x128xbf16, #tpu.memory_space<vmem>>, %arg7: memref<4x512xf32, #tpu.memory_space<vmem>>, %arg8: memref<1x128xf32, #tpu.memory_space<vmem>>, %arg9: memref<8x128xf32, #tpu.memory_space<vmem>>, %arg10: memref<8x512xf32, #tpu.memory_space<vmem>>) attributes {dimension_semantics = [#tpu.dimension_semantics<arbitrary>], iteration_bounds = array<i64: 3>, scalar_prefetch = 0 : i64, scratch_operands = 1 : i64, tpu.core_type = #tpu.core_type<tc>, window_params = [{transform_indices = @transform_0, window_bounds = array<i64: 8, 1024>}, {transform_indices = @transform_1, window_bounds = array<i64: 1024, 512>}, {pipeline_mode = #tpu.pipeline_mode<synchronous>, transform_indices = @transform_2, window_bounds = array<i64: 512, 512>}, {pipeline_mode = #tpu.pipeline_mode<synchronous>, transform_indices = @transform_3, window_bounds = array<i64: 512, 512>}, {pipeline_mode = #tpu.pipeline_mode<synchronous>, transform_indices = @transform_4, window_bounds = array<i64: 512, 512>}, {pipeline_mode = #tpu.pipeline_mode<synchronous>, transform_indices = @transform_5, window_bounds = array<i64: 512, 128>}, {pipeline_mode = #tpu.pipeline_mode<synchronous>, transform_indices = @transform_6, window_bounds = array<i64: 4, 512>}, {pipeline_mode = #tpu.pipeline_mode<synchronous>, transform_indices = @transform_7, window_bounds = array<i64: 1, 128>}, {pipeline_mode = #tpu.pipeline_mode<synchronous>, transform_indices = @transform_8, window_bounds = array<i64: 8, 128>}]} {
    %c0_i32 = arith.constant 0 : i32
    %0 = arith.cmpi eq, %arg0, %c0_i32 : i32
    %1 = arith.extui %0 : i1 to i32
    %c0_i32_0 = arith.constant 0 : i32
    %2 = arith.cmpi ne, %1, %c0_i32_0 : i32
    scf.if %2 {
      %cst_9 = arith.constant 0.000000e+00 : f32
      %12 = vector.broadcast %cst_9 : f32 to vector<8x512xf32>
      %c0_10 = arith.constant 0 : index
      %c0_11 = arith.constant 0 : index
      %13 = vector.load %arg10[%c0_10, %c0_11] : memref<8x512xf32, #tpu.memory_space<vmem>>, vector<8x512xf32>
      tpu.vector_store %arg10[%c0_10, %c0_11], %12 {strides = array<i32>} : memref<8x512xf32, #tpu.memory_space<vmem>>, vector<8x512xf32>,
    } else {
    }
    %c0 = arith.constant 0 : index
    %c0_1 = arith.constant 0 : index
    %3 = vector.load %arg10[%c0, %c0_1] : memref<8x512xf32, #tpu.memory_space<vmem>>, vector<8x512xf32>
    %c0_2 = arith.constant 0 : index
    %c0_3 = arith.constant 0 : index
    %4 = vector.load %arg1[%c0_2, %c0_3] : memref<8x1024xbf16, #tpu.memory_space<vmem>>, vector<8x1024xbf16>
    %c0_4 = arith.constant 0 : index
    %c0_5 = arith.constant 0 : index
    %5 = vector.load %arg2[%c0_4, %c0_5] : memref<1024x512xbf16, #tpu.memory_space<vmem>>, vector<1024x512xbf16>
    %cst = arith.constant dense<0.000000e+00> : vector<8x512xf32>
    %6 = tpu.matmul %4, %5, %cst {dimension_numbers = #tpu.dot_dimension_numbers<[1], [0], [0], [1], [0, 0, 1, 1], [], []>} : vector<8x1024xbf16>, vector<1024x512xbf16>, vector<8x512xf32> -> vector<8x512xf32>
    %7 = arith.addf %3, %6 : vector<8x512xf32>
    %c0_6 = arith.constant 0 : index
    %c0_7 = arith.constant 0 : index
    %8 = vector.load %arg10[%c0_6, %c0_7] : memref<8x512xf32, #tpu.memory_space<vmem>>, vector<8x512xf32>
    tpu.vector_store %arg10[%c0_6, %c0_7], %7 {strides = array<i32>} : memref<8x512xf32, #tpu.memory_space<vmem>>, vector<8x512xf32>,
    %c2_i32 = arith.constant 2 : i32
    %9 = arith.cmpi eq, %arg0, %c2_i32 : i32
    %10 = arith.extui %9 : i1 to i32
    %c0_i32_8 = arith.constant 0 : i32
    %11 = arith.cmpi ne, %10, %c0_i32_8 : i32
    scf.if %11 {
      %c0_9 = arith.constant 0 : index
      %c0_10 = arith.constant 0 : index
      %12 = vector.load %arg10[%c0_9, %c0_10] : memref<8x512xf32, #tpu.memory_space<vmem>>, vector<8x512xf32>
      %c0_11 = arith.constant 0 : index
      %c0_12 = arith.constant 0 : index
      %13 = vector.load %arg7[%c0_11, %c0_12] : memref<4x512xf32, #tpu.memory_space<vmem>>, vector<1x512xf32>
      %14 = vector.broadcast %13 : vector<1x512xf32> to vector<8x512xf32>
      %15 = arith.addf %12, %14 : vector<8x512xf32>
      %cst_13 = arith.constant 0.000000e+00 : f32
      %16 = vector.broadcast %cst_13 : f32 to vector<8x512xf32>
      %17 = arith.maximumf %15, %16 : vector<8x512xf32>
      %18 = arith.truncf %17 : vector<8x512xf32> to vector<8x512xbf16>
      %c0_14 = arith.constant 0 : index
      %c0_15 = arith.constant 0 : index
      %19 = vector.load %arg3[%c0_14, %c0_15] : memref<512x512xbf16, #tpu.memory_space<vmem>>, vector<512x512xbf16>
      %cst_16 = arith.constant dense<0.000000e+00> : vector<8x512xf32>
      %20 = tpu.matmul %18, %19, %cst_16 {dimension_numbers = #tpu.dot_dimension_numbers<[1], [0], [0], [1], [0, 0, 1, 1], [], []>} : vector<8x512xbf16>, vector<512x512xbf16>, vector<8x512xf32> -> vector<8x512xf32>
      %c1 = arith.constant 1 : index
      %c0_17 = arith.constant 0 : index
      %21 = vector.load %arg7[%c1, %c0_17] : memref<4x512xf32, #tpu.memory_space<vmem>>, vector<1x512xf32>
      %22 = vector.broadcast %21 : vector<1x512xf32> to vector<8x512xf32>
      %23 = arith.addf %20, %22 : vector<8x512xf32>
      %cst_18 = arith.constant 0.000000e+00 : f32
      %24 = vector.broadcast %cst_18 : f32 to vector<8x512xf32>
      %25 = arith.maximumf %23, %24 : vector<8x512xf32>
      %26 = arith.truncf %25 : vector<8x512xf32> to vector<8x512xbf16>
      %c0_19 = arith.constant 0 : index
      %c0_20 = arith.constant 0 : index
      %27 = vector.load %arg4[%c0_19, %c0_20] : memref<512x512xbf16, #tpu.memory_space<vmem>>, vector<512x512xbf16>
      %cst_21 = arith.constant dense<0.000000e+00> : vector<8x512xf32>
      %28 = tpu.matmul %26, %27, %cst_21 {dimension_numbers = #tpu.dot_dimension_numbers<[1], [0], [0], [1], [0, 0, 1, 1], [], []>} : vector<8x512xbf16>, vector<512x512xbf16>, vector<8x512xf32> -> vector<8x512xf32>
      %c2 = arith.constant 2 : index
      %c0_22 = arith.constant 0 : index
      %29 = vector.load %arg7[%c2, %c0_22] : memref<4x512xf32, #tpu.memory_space<vmem>>, vector<1x512xf32>
      %30 = vector.broadcast %29 : vector<1x512xf32> to vector<8x512xf32>
      %31 = arith.addf %28, %30 : vector<8x512xf32>
      %cst_23 = arith.constant 0.000000e+00 : f32
      %32 = vector.broadcast %cst_23 : f32 to vector<8x512xf32>
      %33 = arith.maximumf %31, %32 : vector<8x512xf32>
      %34 = arith.truncf %33 : vector<8x512xf32> to vector<8x512xbf16>
      %c0_24 = arith.constant 0 : index
      %c0_25 = arith.constant 0 : index
      %35 = vector.load %arg5[%c0_24, %c0_25] : memref<512x512xbf16, #tpu.memory_space<vmem>>, vector<512x512xbf16>
      %cst_26 = arith.constant dense<0.000000e+00> : vector<8x512xf32>
      %36 = tpu.matmul %34, %35, %cst_26 {dimension_numbers = #tpu.dot_dimension_numbers<[1], [0], [0], [1], [0, 0, 1, 1], [], []>} : vector<8x512xbf16>, vector<512x512xbf16>, vector<8x512xf32> -> vector<8x512xf32>
      %c3 = arith.constant 3 : index
      %c0_27 = arith.constant 0 : index
      %37 = vector.load %arg7[%c3, %c0_27] : memref<4x512xf32, #tpu.memory_space<vmem>>, vector<1x512xf32>
      %38 = vector.broadcast %37 : vector<1x512xf32> to vector<8x512xf32>
      %39 = arith.addf %36, %38 : vector<8x512xf32>
      %cst_28 = arith.constant 0.000000e+00 : f32
      %40 = vector.broadcast %cst_28 : f32 to vector<8x512xf32>
      %41 = arith.maximumf %39, %40 : vector<8x512xf32>
      %42 = arith.truncf %41 : vector<8x512xf32> to vector<8x512xbf16>
      %c0_29 = arith.constant 0 : index
      %c0_30 = arith.constant 0 : index
      %43 = vector.load %arg6[%c0_29, %c0_30] : memref<512x128xbf16, #tpu.memory_space<vmem>>, vector<512x128xbf16>
      %cst_31 = arith.constant dense<0.000000e+00> : vector<8x128xf32>
      %44 = tpu.matmul %42, %43, %cst_31 {dimension_numbers = #tpu.dot_dimension_numbers<[1], [0], [0], [1], [0, 0, 1, 1], [], []>} : vector<8x512xbf16>, vector<512x128xbf16>, vector<8x128xf32> -> vector<8x128xf32>
      %c0_32 = arith.constant 0 : index
      %c0_33 = arith.constant 0 : index
      %45 = vector.load %arg8[%c0_32, %c0_33] : memref<1x128xf32, #tpu.memory_space<vmem>>, vector<1x128xf32>
      %46 = vector.broadcast %45 : vector<1x128xf32> to vector<8x128xf32>
      %47 = arith.addf %44, %46 : vector<8x128xf32>
      %c0_34 = arith.constant 0 : index
      %c0_35 = arith.constant 0 : index
      %48 = vector.load %arg9[%c0_34, %c0_35] : memref<8x128xf32, #tpu.memory_space<vmem>>, vector<8x128xf32>
      tpu.vector_store %arg9[%c0_34, %c0_35], %47 {strides = array<i32>} : memref<8x128xf32, #tpu.memory_space<vmem>>, vector<8x128xf32>,
    } else {
    }
    return
  }
  func.func @transform_0(%arg0: i32) -> (i32, i32) {
    %c0_i32 = arith.constant 0 : i32
    %c0_i32_0 = arith.constant 0 : i32
    return %c0_i32, %arg0 : i32, i32
  }
  func.func @transform_1(%arg0: i32) -> (i32, i32) {
    %c0_i32 = arith.constant 0 : i32
    %c0_i32_0 = arith.constant 0 : i32
    return %arg0, %c0_i32 : i32, i32
  }
  func.func @transform_2(%arg0: i32) -> (i32, i32) {
    %c0_i32 = arith.constant 0 : i32
    %c0_i32_0 = arith.constant 0 : i32
    %c0_i32_1 = arith.constant 0 : i32
    return %c0_i32, %c0_i32_0 : i32, i32
  }
  func.func @transform_3(%arg0: i32) -> (i32, i32) {
    %c0_i32 = arith.constant 0 : i32
    %c0_i32_0 = arith.constant 0 : i32
    %c0_i32_1 = arith.constant 0 : i32
    return %c0_i32, %c0_i32_0 : i32, i32
  }
  func.func @transform_4(%arg0: i32) -> (i32, i32) {
    %c0_i32 = arith.constant 0 : i32
    %c0_i32_0 = arith.constant 0 : i32
    %c0_i32_1 = arith.constant 0 : i32
    return %c0_i32, %c0_i32_0 : i32, i32
  }
  func.func @transform_5(%arg0: i32) -> (i32, i32) {
    %c0_i32 = arith.constant 0 : i32
    %c0_i32_0 = arith.constant 0 : i32
    %c0_i32_1 = arith.constant 0 : i32
    return %c0_i32, %c0_i32_0 : i32, i32
  }
  func.func @transform_6(%arg0: i32) -> (i32, i32) {
    %c0_i32 = arith.constant 0 : i32
    %c0_i32_0 = arith.constant 0 : i32
    %c0_i32_1 = arith.constant 0 : i32
    return %c0_i32, %c0_i32_0 : i32, i32
  }
  func.func @transform_7(%arg0: i32) -> (i32, i32) {
    %c0_i32 = arith.constant 0 : i32
    %c0_i32_0 = arith.constant 0 : i32
    %c0_i32_1 = arith.constant 0 : i32
    return %c0_i32, %c0_i32_0 : i32, i32
  }
  func.func @transform_8(%arg0: i32) -> (i32, i32) {
    %c0_i32 = arith.constant 0 : i32
    %c0_i32_0 = arith.constant 0 : i32
    %c0_i32_1 = arith.constant 0 : i32
    return %c0_i32, %c0_i32_0 : i32, i32
  }
}

</mosaic_0001>

<llo_original>
// kernel: tpu_custom_call.1
$region0: #{tpu_custom_call.1}
  #allocation0 [shape = 'u32[]', space=smem, size = 0x4, offset = 0x4, fixed_abs, tag = 'smem constant byte address 0x4 - core index']
  #allocation1 [shape = 'u32[72,128]{1,0:T(1,128)}', space=vmem, size = 0x9000, scoped, tag = 'internal scratch']
  #allocation2 [shape = 'f32[8,512]{1,0:T(8,128)}', space=vmem, size = 0x4000, scoped, tag = 'scratch operand']
  %s0 = inlined_call_operand.hbm [shape: bf16[8,3072], index: 0, kind: input, shape index: {}]
  %s1 = inlined_call_operand.hbm [shape: bf16[3072,512], index: 1, kind: input, shape index: {}]
  %s2 = inlined_call_operand.hbm [shape: bf16[512,512], index: 2, kind: input, shape index: {}]
  %s3 = inlined_call_operand.hbm [shape: bf16[512,512], index: 3, kind: input, shape index: {}]
  %s4 = inlined_call_operand.hbm [shape: bf16[512,512], index: 4, kind: input, shape index: {}]
  %s5 = inlined_call_operand.hbm [shape: bf16[512,128], index: 5, kind: input, shape index: {}]
  %s6 = inlined_call_operand.hbm [shape: f32[4,512], index: 6, kind: input, shape index: {}]
  %s7 = inlined_call_operand.hbm [shape: f32[1,128], index: 7, kind: input, shape index: {}]
  %s8 = inlined_call_operand.hbm [shape: f32[8,128], index: 8, kind: output, shape index: {}]
  %s9 = sld [smem:[#allocation0]]
  $region105: #{tpu_custom_call.1} parent=0
    _
  %s11 = ssub.s32 1, %s9
  %s12 = scalar_select 0, %s11, %s9
  $region1: #{tpu_custom_call.1} parent=0
    #allocation3 [shape = 'u8[32768]{0}', space=vmem, size = 0x8000, scoped, tag = 'input window, operand 0']
    #allocation4 [shape = 's32[2]{0}', space=sflag, size = 0x8, scoped, tag = 'scoped memory for tpu_custom_call.1']
    #allocation5 [shape = 's32[2]{0}', space=sflag, size = 0x8, scoped, tag = 'scoped memory for tpu_custom_call.1']
    #allocation6 [shape = 'u8[2097152]{0}', space=vmem, size = 0x200000, scoped, tag = 'input window, operand 1']
    #allocation7 [shape = 's32[2]{0}', space=sflag, size = 0x8, scoped, tag = 'scoped memory for tpu_custom_call.1']
    #allocation8 [shape = 'u8[524288]{0}', space=vmem, size = 0x80000, scoped, tag = 'input window, operand 2, single buffered']
    #allocation9 [shape = 'u8[524288]{0}', space=vmem, size = 0x80000, scoped, tag = 'input window, operand 3, single buffered']
    #allocation10 [shape = 's32[1]{0}', space=sflag, size = 0x4, scoped, tag = 'scoped memory for tpu_custom_call.1']
    #allocation11 [shape = 'u8[524288]{0}', space=vmem, size = 0x80000, scoped, tag = 'input window, operand 4, single buffered']
    #allocation12 [shape = 'u8[131072]{0}', space=vmem, size = 0x20000, scoped, tag = 'input window, operand 5, single buffered']
    #allocation13 [shape = 's32[1]{0}', space=sflag, size = 0x4, scoped, tag = 'scoped memory for tpu_custom_call.1']
    #allocation14 [shape = 'u8[8192]{0}', space=vmem, size = 0x2000, scoped, tag = 'input window, operand 6, single buffered']
    #allocation15 [shape = 'u8[512]{0}', space=vmem, size = 0x400, scoped, tag = 'input window, operand 7, single buffered']
    #allocation16 [shape = 's32[1]{0}', space=sflag, size = 0x4, scoped, tag = 'scoped memory for tpu_custom_call.1']
    #allocation17 [shape = 'u8[4096]{0}', space=vmem, size = 0x1000, scoped, tag = 'output window, operand 0, single buffered']
    %13 = vsyncpa [#allocation4], 0
    %s14 = scalar_lea.sflag [#allocation4], 1
    %15 = vsyncpa %s14, 0
    %16 = vsyncpa [#allocation7], 0
    %s17 = scalar_lea.sflag [#allocation7], 1
    %18 = vsyncpa %s17, 0
    %19 = vsyncpa [#allocation10], 0
    %20 = vsyncpa [#allocation13], 0
    %21 = vsyncpa [#allocation16], 0
    %22 = vsyncpa [#allocation5], 0
    loop: start=0, step=1, limit=5
    $region2: #{tpu_custom_call.1} parent=1 // loop_pre_header
      _
    $region3: #{tpu_custom_call.1} parent=1 // loop_header
      %s24 = sphi 0, %s28
      %p25 = scmp.ge.s32.totalorder %s24, 5
      %s34 = sphi 0, %s36
      %s37 = sphi 0, %s34
      %s38 = sphi 0, %s37
      %s54 = sphi 0, %s38
      %s60 = sphi 0, %s62
      %s63 = sphi 0, %s60
      %s64 = sphi 0, %s63
      %s80 = sphi 0, %s64
      %s84 = sphi 0, %s84
      %s86 = sphi 0, %s84
      %s87 = sphi 0, %s86
      %s101 = sphi 0, %s87
      %s105 = sphi 0, %s105
      %s107 = sphi 0, %s105
      %s108 = sphi 0, %s107
      %s122 = sphi 0, %s108
      %s126 = sphi 0, %s126
      %s128 = sphi 0, %s126
      %s129 = sphi 0, %s128
      %s143 = sphi 0, %s129
      %s147 = sphi 0, %s147
      %s149 = sphi 0, %s147
      %s150 = sphi 0, %s149
      %s164 = sphi 0, %s150
      %s168 = sphi 0, %s168
      %s170 = sphi 0, %s168
      %s171 = sphi 0, %s170
      %s185 = sphi 0, %s171
      %s189 = sphi 0, %s189
      %s191 = sphi 0, %s189
      %s192 = sphi 0, %s191
      %s206 = sphi 0, %s192
      %s210 = sphi 0, %s210
      %s212 = sphi 0, %s210
      %s213 = sphi 0, %s212
      %s227 = sphi 0, %s213
    $region4: #{tpu_custom_call.1} parent=1 // loop_header_branch
      %27 = sbr.rel (%p25) target = $region8
    $region5: #{tpu_custom_call.1} parent=1 // loop_body
      %s29 = ssub.s32 %s24, 1
      %s30 = ssub.s32 %s24, 2
      %s31 = sadd.s32 %s24, 1
      %s32 = ssub.s32 %s24, %s31
      %p33 = scmp.eq.s32.totalorder %s32, 0
      %s35 = sadd.s32 %s34, 1
      %s36 = scalar_select %p33, %s34, %s35
      %p39 = pneg %p33
      %p40 = scmp.eq.s32.totalorder %s24, 2
      %p41 = por %p39, %p40
      %p42 = scmp.ne.s32.totalorder %s34, %s37
      %p43 = scmp.eq.s32.totalorder %s24, 0
      %p44 = por %p42, %p43
      %p45 = scmp.ne.s32.totalorder %s34, %s37
      %p46 = scmp.eq.s32.totalorder %s29, 2
      %p47 = por %p45, %p46
      %p48 = scmp.ne.s32.totalorder %s37, %s38
      %p49 = scmp.eq.s32.totalorder %s29, 0
      %p50 = por %p48, %p49
      %p51 = scmp.ne.s32.totalorder %s37, %s38
      %p52 = scmp.eq.s32.totalorder %s30, 2
      %p53 = por %p51, %p52
      %p55 = scmp.ne.s32.totalorder %s38, %s54
      %p56 = scmp.eq.s32.totalorder %s30, 0
      %p57 = por %p55, %p56
      %s58 = ssub.s32 %s24, %s31
      %p59 = scmp.eq.s32.totalorder %s58, 0
      %s61 = sadd.s32 %s60, 1
      %s62 = scalar_select %p59, %s60, %s61
      %p65 = pneg %p59
      %p66 = scmp.eq.s32.totalorder %s24, 2
      %p67 = por %p65, %p66
      %p68 = scmp.ne.s32.totalorder %s60, %s63
      %p69 = scmp.eq.s32.totalorder %s24, 0
      %p70 = por %p68, %p69
      %p71 = scmp.ne.s32.totalorder %s60, %s63
      %p72 = scmp.eq.s32.totalorder %s29, 2
      %p73 = por %p71, %p72
      %p74 = scmp.ne.s32.totalorder %s63, %s64
      %p75 = scmp.eq.s32.totalorder %s29, 0
      %p76 = por %p74, %p75
      %p77 = scmp.ne.s32.totalorder %s63, %s64
      %p78 = scmp.eq.s32.totalorder %s30, 2
      %p79 = por %p77, %p78
      %p81 = scmp.ne.s32.totalorder %s64, %s80
      %p82 = scmp.eq.s32.totalorder %s30, 0
      %p83 = por %p81, %p82
      %s85 = sadd.s32 %s84, 1
      %p88 = scmp.eq.s32.totalorder %s24, 2
      %p89 = scmp.ne.s32.totalorder %s84, %s86
      %p90 = scmp.eq.s32.totalorder %s24, 0
      %p91 = por %p89, %p90
      %p92 = scmp.ne.s32.totalorder %s84, %s86
      %p93 = scmp.eq.s32.totalorder %s29, 2
      %p94 = por %p92, %p93
      %p95 = scmp.ne.s32.totalorder %s86, %s87
      %p96 = scmp.eq.s32.totalorder %s29, 0
      %p97 = por %p95, %p96
      %p98 = scmp.ne.s32.totalorder %s86, %s87
      %p99 = scmp.eq.s32.totalorder %s30, 2
      %p100 = por %p98, %p99
      %p102 = scmp.ne.s32.totalorder %s87, %s101
      %p103 = scmp.eq.s32.totalorder %s30, 0
      %p104 = por %p102, %p103
      %s106 = sadd.s32 %s105, 1
      %p109 = scmp.eq.s32.totalorder %s24, 2
      %p110 = scmp.ne.s32.totalorder %s105, %s107
      %p111 = scmp.eq.s32.totalorder %s24, 0
      %p112 = por %p110, %p111
      %p113 = scmp.ne.s32.totalorder %s105, %s107
      %p114 = scmp.eq.s32.totalorder %s29, 2
      %p115 = por %p113, %p114
      %p116 = scmp.ne.s32.totalorder %s107, %s108
      %p117 = scmp.eq.s32.totalorder %s29, 0
      %p118 = por %p116, %p117
      %p119 = scmp.ne.s32.totalorder %s107, %s108
      %p120 = scmp.eq.s32.totalorder %s30, 2
      %p121 = por %p119, %p120
      %p123 = scmp.ne.s32.totalorder %s108, %s122
      %p124 = scmp.eq.s32.totalorder %s30, 0
      %p125 = por %p123, %p124
      %s127 = sadd.s32 %s126, 1
      %p130 = scmp.eq.s32.totalorder %s24, 2
      %p131 = scmp.ne.s32.totalorder %s126, %s128
      %p132 = scmp.eq.s32.totalorder %s24, 0
      %p133 = por %p131, %p132
      %p134 = scmp.ne.s32.totalorder %s126, %s128
      %p135 = scmp.eq.s32.totalorder %s29, 2
      %p136 = por %p134, %p135
      %p137 = scmp.ne.s32.totalorder %s128, %s129
      %p138 = scmp.eq.s32.totalorder %s29, 0
      %p139 = por %p137, %p138
      %p140 = scmp.ne.s32.totalorder %s128, %s129
      %p141 = scmp.eq.s32.totalorder %s30, 2
      %p142 = por %p140, %p141
      %p144 = scmp.ne.s32.totalorder %s129, %s143
      %p145 = scmp.eq.s32.totalorder %s30, 0
      %p146 = por %p144, %p145
      %s148 = sadd.s32 %s147, 1
      %p151 = scmp.eq.s32.totalorder %s24, 2
      %p152 = scmp.ne.s32.totalorder %s147, %s149
      %p153 = scmp.eq.s32.totalorder %s24, 0
      %p154 = por %p152, %p153
      %p155 = scmp.ne.s32.totalorder %s147, %s149
      %p156 = scmp.eq.s32.totalorder %s29, 2
      %p157 = por %p155, %p156
      %p158 = scmp.ne.s32.totalorder %s149, %s150
      %p159 = scmp.eq.s32.totalorder %s29, 0
      %p160 = por %p158, %p159
      %p161 = scmp.ne.s32.totalorder %s149, %s150
      %p162 = scmp.eq.s32.totalorder %s30, 2
      %p163 = por %p161, %p162
      %p165 = scmp.ne.s32.totalorder %s150, %s164
      %p166 = scmp.eq.s32.totalorder %s30, 0
      %p167 = por %p165, %p166
      %s169 = sadd.s32 %s168, 1
      %p172 = scmp.eq.s32.totalorder %s24, 2
      %p173 = scmp.ne.s32.totalorder %s168, %s170
      %p174 = scmp.eq.s32.totalorder %s24, 0
      %p175 = por %p173, %p174
      %p176 = scmp.ne.s32.totalorder %s168, %s170
      %p177 = scmp.eq.s32.totalorder %s29, 2
      %p178 = por %p176, %p177
      %p179 = scmp.ne.s32.totalorder %s170, %s171
      %p180 = scmp.eq.s32.totalorder %s29, 0
      %p181 = por %p179, %p180
      %p182 = scmp.ne.s32.totalorder %s170, %s171
      %p183 = scmp.eq.s32.totalorder %s30, 2
      %p184 = por %p182, %p183
      %p186 = scmp.ne.s32.totalorder %s171, %s185
      %p187 = scmp.eq.s32.totalorder %s30, 0
      %p188 = por %p186, %p187
      %s190 = sadd.s32 %s189, 1
      %p193 = scmp.eq.s32.totalorder %s24, 2
      %p194 = scmp.ne.s32.totalorder %s189, %s191
      %p195 = scmp.eq.s32.totalorder %s24, 0
      %p196 = por %p194, %p195
      %p197 = scmp.ne.s32.totalorder %s189, %s191
      %p198 = scmp.eq.s32.totalorder %s29, 2
      %p199 = por %p197, %p198
      %p200 = scmp.ne.s32.totalorder %s191, %s192
      %p201 = scmp.eq.s32.totalorder %s29, 0
      %p202 = por %p200, %p201
      %p203 = scmp.ne.s32.totalorder %s191, %s192
      %p204 = scmp.eq.s32.totalorder %s30, 2
      %p205 = por %p203, %p204
      %p207 = scmp.ne.s32.totalorder %s192, %s206
      %p208 = scmp.eq.s32.totalorder %s30, 0
      %p209 = por %p207, %p208
      %s211 = sadd.s32 %s210, 1
      %p214 = scmp.eq.s32.totalorder %s24, 2
      %p215 = scmp.ne.s32.totalorder %s210, %s212
      %p216 = scmp.eq.s32.totalorder %s24, 0
      %p217 = por %p215, %p216
      %p218 = scmp.ne.s32.totalorder %s210, %s212
      %p219 = scmp.eq.s32.totalorder %s29, 2
      %p220 = por %p218, %p219
      %p221 = scmp.ne.s32.totalorder %s212, %s213
      %p222 = scmp.eq.s32.totalorder %s29, 0
      %p223 = por %p221, %p222
      %p224 = scmp.ne.s32.totalorder %s212, %s213
      %p225 = scmp.eq.s32.totalorder %s30, 2
      %p226 = por %p224, %p225
      %p228 = scmp.ne.s32.totalorder %s213, %s227
      %p229 = scmp.eq.s32.totalorder %s30, 0
      %p230 = por %p228, %p229
      %p231 = scmp.le.s32.totalorder 1, %s24
      %p232 = scmp.lt.s32.totalorder %s24, 4
      %p233 = pnand %p231, %p232
      %p234 = pneg %p233
      // Predicated region
      $region9: #{tpu_custom_call.1} parent=5 // pred_check
        _
      $region10: #{tpu_custom_call.1} parent=5 // pred_check_branch
        %236 = sbr.rel (%p233) target = $region12
      $region11: #{tpu_custom_call.1} parent=5 // pred_region
        %s237 = ssub.s32 %s24, 1
        // Predicated region
        $region13: #{tpu_custom_call.1} parent=11 // pred_check
          %p238 = pneg %p97
        $region14: #{tpu_custom_call.1} parent=11 // pred_check_branch
          %240 = sbr.rel (%p238) target = $region16
        $region15: #{tpu_custom_call.1} parent=11 // pred_region
          %242 = vsyncadd [#allocation7], 0
          %s243 = sshll.u32 %s2, 4
          %s244 = int_to_ptr.hbm [resolvable:$true] %s243
          %s245 = sshll.u32 [#allocation8], 4
          %s246 = int_to_ptr.vmem [resolvable:$true] %s245
          %251 = dma.hbm_to_vmem [thread:$0]  %s244, 16384, %s246, [#allocation7], 256, 256, 16
        $region16: #{tpu_custom_call.1} parent=11 // pred_fallthru
          _
        // Predicated region
        $region17: #{tpu_custom_call.1} parent=11 // pred_check
          %p252 = pneg %p118
        $region18: #{tpu_custom_call.1} parent=11 // pred_check_branch
          %254 = sbr.rel (%p252) target = $region20
        $region19: #{tpu_custom_call.1} parent=11 // pred_region
          %256 = vsyncadd [#allocation10], 0
          %s257 = sshll.u32 %s3, 4
          %s258 = int_to_ptr.hbm [resolvable:$true] %s257
          %s259 = sshll.u32 [#allocation9], 4
          %s260 = int_to_ptr.vmem [resolvable:$true] %s259
          %265 = dma.hbm_to_vmem [thread:$0]  %s258, 16384, %s260, [#allocation10], 256, 256, 16
        $region20: #{tpu_custom_call.1} parent=11 // pred_fallthru
          _
        // Predicated region
        $region21: #{tpu_custom_call.1} parent=11 // pred_check
          %p266 = pneg %p139
        $region22: #{tpu_custom_call.1} parent=11 // pred_check_branch
          %268 = sbr.rel (%p266) target = $region24
        $region23: #{tpu_custom_call.1} parent=11 // pred_region
          %270 = vsyncadd [#allocation10], 0
          %s271 = sshll.u32 %s4, 4
          %s272 = int_to_ptr.hbm [resolvable:$true] %s271
          %s273 = sshll.u32 [#allocation11], 4
          %s274 = int_to_ptr.vmem [resolvable:$true] %s273
          %279 = dma.hbm_to_vmem [thread:$0]  %s272, 16384, %s274, [#allocation10], 256, 256, 16
        $region24: #{tpu_custom_call.1} parent=11 // pred_fallthru
          _
        // Predicated region
        $region25: #{tpu_custom_call.1} parent=11 // pred_check
          %p280 = pneg %p160
        $region26: #{tpu_custom_call.1} parent=11 // pred_check_branch
          %282 = sbr.rel (%p280) target = $region28
        $region27: #{tpu_custom_call.1} parent=11 // pred_region
          %284 = vsyncadd [#allocation13], 0
          %s285 = sshll.u32 %s5, 4
          %s286 = int_to_ptr.hbm [resolvable:$true] %s285
          %s287 = sshll.u32 [#allocation12], 4
          %s288 = int_to_ptr.vmem [resolvable:$true] %s287
          %293 = dma.hbm_to_vmem [thread:$0]  %s286, 4096, %s288, [#allocation13], 64, 64, 4
        $region28: #{tpu_custom_call.1} parent=11 // pred_fallthru
          _
        // Predicated region
        $region29: #{tpu_custom_call.1} parent=11 // pred_check
          %p294 = pneg %p181
        $region30: #{tpu_custom_call.1} parent=11 // pred_check_branch
          %296 = sbr.rel (%p294) target = $region32
        $region31: #{tpu_custom_call.1} parent=11 // pred_region
          %298 = vsyncadd [#allocation13], 0
          %s300 = sshll.u32 %s6, 4
          %s301 = int_to_ptr.hbm [resolvable:$true] %s300
          %s302 = sshll.u32 [#allocation14], 4
          %s303 = int_to_ptr.vmem [resolvable:$true] %s302
          %305 = dma.hbm_to_vmem [thread:$0]  %s301, 256, %s303, [#allocation13]
        $region32: #{tpu_custom_call.1} parent=11 // pred_fallthru
          _
        // Predicated region
        $region33: #{tpu_custom_call.1} parent=11 // pred_check
          %p306 = pneg %p202
        $region34: #{tpu_custom_call.1} parent=11 // pred_check_branch
          %308 = sbr.rel (%p306) target = $region36
        $region35: #{tpu_custom_call.1} parent=11 // pred_region
          %310 = vsyncadd [#allocation16], 0
          %s312 = sshll.u32 %s7, 4
          %s313 = int_to_ptr.hbm [resolvable:$true] %s312
          %s314 = sshll.u32 [#allocation15], 4
          %s315 = int_to_ptr.vmem [resolvable:$true] %s314
          %317 = dma.hbm_to_vmem [thread:$0]  %s313, 16, %s315, [#allocation16]
        $region36: #{tpu_custom_call.1} parent=11 // pred_fallthru
          _
      $region12: #{tpu_custom_call.1} parent=5 // pred_fallthru
        _
      %p318 = scmp.lt.s32.totalorder %s24, 3
      // Predicated region
      $region37: #{tpu_custom_call.1} parent=5 // pred_check
        %p319 = pneg %p318
      $region38: #{tpu_custom_call.1} parent=5 // pred_check_branch
        %321 = sbr.rel (%p319) target = $region40
      $region39: #{tpu_custom_call.1} parent=5 // pred_region
        // Predicated region
        $region41: #{tpu_custom_call.1} parent=39 // pred_check
          %p322 = pneg %p44
        $region42: #{tpu_custom_call.1} parent=39 // pred_check_branch
          %324 = sbr.rel (%p322) target = $region44
        $region43: #{tpu_custom_call.1} parent=39 // pred_region
          %s325 = sand.u32 %s34, 1
          %s326 = scalar_lea.sflag [#allocation4], %s325
          %s327 = sand.u32 %s34, 1
          %s328 = smul.addr %s327, 32
          %s329 = scalar_lea.vmem [#allocation3], %s328
          %s330 = smul.u32 8, %s24
          %332 = vsyncadd %s326, 0
          %s333 = smul.addr %s330, 4
          %s334 = scalar_lea.hbm %s0, %s333
          %s336 = sshll.u32 %s334, 4
          %s337 = int_to_ptr.hbm [resolvable:$true] %s336
          %s338 = sshll.u32 %s329, 4
          %s339 = int_to_ptr.vmem [resolvable:$true] %s338
          %341 = dma.hbm_to_vmem [thread:$0]  %s337, 512, %s339, %s326
        $region44: #{tpu_custom_call.1} parent=39 // pred_fallthru
          _
        // Predicated region
        $region45: #{tpu_custom_call.1} parent=39 // pred_check
          %p342 = pneg %p70
        $region46: #{tpu_custom_call.1} parent=39 // pred_check_branch
          %344 = sbr.rel (%p342) target = $region48
        $region47: #{tpu_custom_call.1} parent=39 // pred_region
          %s345 = sand.u32 %s24, 1
          %s346 = scalar_lea.sflag [#allocation7], %s345
          %s347 = sand.u32 %s60, 1
          %s348 = smul.addr %s347, 2048
          %s349 = scalar_lea.vmem [#allocation6], %s348
          %s350 = smul.u32 128, %s24
          %352 = vsyncadd %s346, 0
          %s353 = smul.addr %s350, 4
          %s354 = smul.addr %s353, 4
          %s355 = scalar_lea.hbm %s1, %s354
          %s356 = sshll.u32 %s355, 4
          %s357 = int_to_ptr.hbm [resolvable:$true] %s356
          %s358 = sshll.u32 %s349, 4
          %s359 = int_to_ptr.vmem [resolvable:$true] %s358
          %364 = dma.hbm_to_vmem [thread:$0]  %s357, 32768, %s359, %s346, 256, 256, 16
        $region48: #{tpu_custom_call.1} parent=39 // pred_fallthru
          _
      $region40: #{tpu_custom_call.1} parent=5 // pred_fallthru
        _
      %p365 = scmp.le.s32.totalorder 1, %s24
      %p366 = scmp.lt.s32.totalorder %s24, 4
      %p367 = pnand %p365, %p366
      %p368 = pneg %p367
      // Predicated region
      $region49: #{tpu_custom_call.1} parent=5 // pred_check
        _
      $region50: #{tpu_custom_call.1} parent=5 // pred_check_branch
        %370 = sbr.rel (%p367) target = $region52
      $region51: #{tpu_custom_call.1} parent=5 // pred_region
        %s371 = ssub.s32 %s24, 1
        %s372 = sand.u32 %s37, 1
        %s373 = scalar_lea.sflag [#allocation4], %s372
        %s374 = sand.u32 %s37, 1
        %s375 = smul.addr %s374, 32
        %s376 = scalar_lea.vmem [#allocation3], %s375
        // Predicated region
        $region53: #{tpu_custom_call.1} parent=51 // pred_check
          %p377 = pneg %p50
        $region54: #{tpu_custom_call.1} parent=51 // pred_check_branch
          %379 = sbr.rel (%p377) target = $region56
        $region55: #{tpu_custom_call.1} parent=51 // pred_region
          %381 = dma.done %s373, 512
        $region56: #{tpu_custom_call.1} parent=51 // pred_fallthru
          _
        %s382 = sand.u32 %s29, 1
        %s383 = scalar_lea.sflag [#allocation7], %s382
        %s384 = sand.u32 %s63, 1
        %s385 = smul.addr %s384, 2048
        %s386 = scalar_lea.vmem [#allocation6], %s385
        // Predicated region
        $region57: #{tpu_custom_call.1} parent=51 // pred_check
          %p387 = pneg %p76
        $region58: #{tpu_custom_call.1} parent=51 // pred_check_branch
          %389 = sbr.rel (%p387) target = $region60
        $region59: #{tpu_custom_call.1} parent=51 // pred_region
          %391 = dma.done %s383, 32768
        $region60: #{tpu_custom_call.1} parent=51 // pred_fallthru
          _
        // Predicated region
        $region61: #{tpu_custom_call.1} parent=51 // pred_check
          %p392 = pneg %p97
        $region62: #{tpu_custom_call.1} parent=51 // pred_check_branch
          %394 = sbr.rel (%p392) target = $region64
        $region63: #{tpu_custom_call.1} parent=51 // pred_region
          %396 = dma.done [#allocation7], 16384
        $region64: #{tpu_custom_call.1} parent=51 // pred_fallthru
          _
        // Predicated region
        $region65: #{tpu_custom_call.1} parent=51 // pred_check
          %p397 = pneg %p118
        $region66: #{tpu_custom_call.1} parent=51 // pred_check_branch
          %399 = sbr.rel (%p397) target = $region68
        $region67: #{tpu_custom_call.1} parent=51 // pred_region
          %401 = dma.done [#allocation10], 16384
        $region68: #{tpu_custom_call.1} parent=51 // pred_fallthru
          _
        // Predicated region
        $region69: #{tpu_custom_call.1} parent=51 // pred_check
          %p402 = pneg %p139
        $region70: #{tpu_custom_call.1} parent=51 // pred_check_branch
          %404 = sbr.rel (%p402) target = $region72
        $region71: #{tpu_custom_call.1} parent=51 // pred_region
          %406 = dma.done [#allocation10], 16384
        $region72: #{tpu_custom_call.1} parent=51 // pred_fallthru
          _
        // Predicated region
        $region73: #{tpu_custom_call.1} parent=51 // pred_check
          %p407 = pneg %p160
        $region74: #{tpu_custom_call.1} parent=51 // pred_check_branch
          %409 = sbr.rel (%p407) target = $region76
        $region75: #{tpu_custom_call.1} parent=51 // pred_region
          %411 = dma.done [#allocation13], 4096
        $region76: #{tpu_custom_call.1} parent=51 // pred_fallthru
          _
        // Predicated region
        $region77: #{tpu_custom_call.1} parent=51 // pred_check
          %p412 = pneg %p181
        $region78: #{tpu_custom_call.1} parent=51 // pred_check_branch
          %414 = sbr.rel (%p412) target = $region80
        $region79: #{tpu_custom_call.1} parent=51 // pred_region
          %416 = dma.done [#allocation13], 256
        $region80: #{tpu_custom_call.1} parent=51 // pred_fallthru
          _
        // Predicated region
        $region81: #{tpu_custom_call.1} parent=51 // pred_check
          %p417 = pneg %p202
        $region82: #{tpu_custom_call.1} parent=51 // pred_check_branch
          %419 = sbr.rel (%p417) target = $region84
        $region83: #{tpu_custom_call.1} parent=51 // pred_region
          %421 = dma.done [#allocation16], 16
        $region84: #{tpu_custom_call.1} parent=51 // pred_fallthru
          _
        %s422 = sand.u32 %s37, 1
        %s423 = scalar_lea.sflag [#allocation4], %s422
        %s424 = sand.u32 %s37, 1
        %s425 = smul.addr %s424, 32
        %s426 = scalar_lea.vmem [#allocation3], %s425
        %p427 = pneg %p50
        %p428 = pneg %p47
        %s429 = sand.u32 %s29, 1
        %s430 = scalar_lea.sflag [#allocation7], %s429
        %s431 = sand.u32 %s63, 1
        %s432 = smul.addr %s431, 2048
        %s433 = scalar_lea.vmem [#allocation6], %s432
        %p434 = pneg %p76
        %p435 = pneg %p73
        %p436 = pneg %p97
        %p437 = pneg %p94
        %p438 = pneg %p118
        %p439 = pneg %p115
        %p440 = pneg %p139
        %p441 = pneg %p136
        %p442 = pneg %p160
        %p443 = pneg %p157
        %p444 = pneg %p181
        %p445 = pneg %p178
        %p446 = pneg %p202
        %p447 = pneg %p199
        %p448 = pneg %p223
        %p449 = pneg %p220
        %s450 = smul.u32 8, %s29
        %s451 = smul.u32 128, %s29
        %p452 = scmp.eq.s32.totalorder %s29, 0
        // Predicated region
        $region85: #{tpu_custom_call.1} parent=51 // pred_check
          %p453 = pneg %p452
        $region86: #{tpu_custom_call.1} parent=51 // pred_check_branch
          %455 = sbr.rel (%p453) target = $region88
        $region87: #{tpu_custom_call.1} parent=51 // pred_region
          %456 = vst [vmem:[#allocation2] sm:$0xff] 0.0
          %457 = vst [vmem:[#allocation2 + $0x8] sm:$0xff] 0.0
          %458 = vst [vmem:[#allocation2 + $0x10] sm:$0xff] 0.0
          %459 = vst [vmem:[#allocation2 + $0x18] sm:$0xff] 0.0
        $region88: #{tpu_custom_call.1} parent=51 // pred_fallthru
          _
        %v460 = vld [vmem:[#allocation2] sm:$0xff]
        %v461 = vld [vmem:[#allocation2 + $0x8] sm:$0xff]
        %v462 = vld [vmem:[#allocation2 + $0x10] sm:$0xff]
        %v463 = vld [vmem:[#allocation2 + $0x18] sm:$0xff]
        %v464 = vld [vmem:[%s376] sm:$0xff]
        %v465 = vld [vmem:[%s376 + $0x8] sm:$0xff]
        %v466 = vld [vmem:[%s376 + $0x10] sm:$0xff]
        %v467 = vld [vmem:[%s376 + $0x18] sm:$0xff]
        %v468 = vld [vmem:[%s386] sm:$0xff]
        %v469 = vld [vmem:[%s386 + $0x8] sm:$0xff]
        %v470 = vld [vmem:[%s386 + $0x10] sm:$0xff]
        %v471 = vld [vmem:[%s386 + $0x18] sm:$0xff]
        %v472 = vld [vmem:[%s386 + $0x20] sm:$0xff]
        %v473 = vld [vmem:[%s386 + $0x28] sm:$0xff]
        %v474 = vld [vmem:[%s386 + $0x30] sm:$0xff]
        %v475 = vld [vmem:[%s386 + $0x38] sm:$0xff]
        %v476 = vld [vmem:[%s386 + $0x40] sm:$0xff]
        %v477 = vld [vmem:[%s386 + $0x48] sm:$0xff]
        %v478 = vld [vmem:[%s386 + $0x50] sm:$0xff]
        %v479 = vld [vmem:[%s386 + $0x58] sm:$0xff]
        %v480 = vld [vmem:[%s386 + $0x60] sm:$0xff]
        %v481 = vld [vmem:[%s386 + $0x68] sm:$0xff]
        %v482 = vld [vmem:[%s386 + $0x70] sm:$0xff]
        %v483 = vld [vmem:[%s386 + $0x78] sm:$0xff]
        %v484 = vld [vmem:[%s386 + $0x80] sm:$0xff]
        %v485 = vld [vmem:[%s386 + $0x88] sm:$0xff]
        %v486 = vld [vmem:[%s386 + $0x90] sm:$0xff]
        %v487 = vld [vmem:[%s386 + $0x98] sm:$0xff]
        %v488 = vld [vmem:[%s386 + $0xa0] sm:$0xff]
        %v489 = vld [vmem:[%s386 + $0xa8] sm:$0xff]
        %v490 = vld [vmem:[%s386 + $0xb0] sm:$0xff]
        %v491 = vld [vmem:[%s386 + $0xb8] sm:$0xff]
        %v492 = vld [vmem:[%s386 + $0xc0] sm:$0xff]
        %v493 = vld [vmem:[%s386 + $0xc8] sm:$0xff]
        %v494 = vld [vmem:[%s386 + $0xd0] sm:$0xff]
        %v495 = vld [vmem:[%s386 + $0xd8] sm:$0xff]
        %v496 = vld [vmem:[%s386 + $0xe0] sm:$0xff]
        %v497 = vld [vmem:[%s386 + $0xe8] sm:$0xff]
        %v498 = vld [vmem:[%s386 + $0xf0] sm:$0xff]
        %v499 = vld [vmem:[%s386 + $0xf8] sm:$0xff]
        %v500 = vld [vmem:[%s386 + $0x100] sm:$0xff]
        %v501 = vld [vmem:[%s386 + $0x108] sm:$0xff]
        %v502 = vld [vmem:[%s386 + $0x110] sm:$0xff]
        %v503 = vld [vmem:[%s386 + $0x118] sm:$0xff]
        %v504 = vld [vmem:[%s386 + $0x120] sm:$0xff]
        %v505 = vld [vmem:[%s386 + $0x128] sm:$0xff]
        %v506 = vld [vmem:[%s386 + $0x130] sm:$0xff]
        %v507 = vld [vmem:[%s386 + $0x138] sm:$0xff]
        %v508 = vld [vmem:[%s386 + $0x140] sm:$0xff]
        %v509 = vld [vmem:[%s386 + $0x148] sm:$0xff]
        %v510 = vld [vmem:[%s386 + $0x150] sm:$0xff]
        %v511 = vld [vmem:[%s386 + $0x158] sm:$0xff]
        %v512 = vld [vmem:[%s386 + $0x160] sm:$0xff]
        %v513 = vld [vmem:[%s386 + $0x168] sm:$0xff]
        %v514 = vld [vmem:[%s386 + $0x170] sm:$0xff]
        %v515 = vld [vmem:[%s386 + $0x178] sm:$0xff]
        %v516 = vld [vmem:[%s386 + $0x180] sm:$0xff]
        %v517 = vld [vmem:[%s386 + $0x188] sm:$0xff]
        %v518 = vld [vmem:[%s386 + $0x190] sm:$0xff]
        %v519 = vld [vmem:[%s386 + $0x198] sm:$0xff]
        %v520 = vld [vmem:[%s386 + $0x1a0] sm:$0xff]
        %v521 = vld [vmem:[%s386 + $0x1a8] sm:$0xff]
        %v522 = vld [vmem:[%s386 + $0x1b0] sm:$0xff]
        %v523 = vld [vmem:[%s386 + $0x1b8] sm:$0xff]
        %v524 = vld [vmem:[%s386 + $0x1c0] sm:$0xff]
        %v525 = vld [vmem:[%s386 + $0x1c8] sm:$0xff]
        %v526 = vld [vmem:[%s386 + $0x1d0] sm:$0xff]
        %v527 = vld [vmem:[%s386 + $0x1d8] sm:$0xff]
        %v528 = vld [vmem:[%s386 + $0x1e0] sm:$0xff]
        %v529 = vld [vmem:[%s386 + $0x1e8] sm:$0xff]
        %v530 = vld [vmem:[%s386 + $0x1f0] sm:$0xff]
        %v531 = vld [vmem:[%s386 + $0x1f8] sm:$0xff]
        %v532 = vld [vmem:[%s386 + $0x200] sm:$0xff]
        %v533 = vld [vmem:[%s386 + $0x208] sm:$0xff]
        %v534 = vld [vmem:[%s386 + $0x210] sm:$0xff]
        %v535 = vld [vmem:[%s386 + $0x218] sm:$0xff]
        %v536 = vld [vmem:[%s386 + $0x220] sm:$0xff]
        %v537 = vld [vmem:[%s386 + $0x228] sm:$0xff]
        %v538 = vld [vmem:[%s386 + $0x230] sm:$0xff]
        %v539 = vld [vmem:[%s386 + $0x238] sm:$0xff]
        %v540 = vld [vmem:[%s386 + $0x240] sm:$0xff]
        %v541 = vld [vmem:[%s386 + $0x248] sm:$0xff]
        %v542 = vld [vmem:[%s386 + $0x250] sm:$0xff]
        %v543 = vld [vmem:[%s386 + $0x258] sm:$0xff]
        %v544 = vld [vmem:[%s386 + $0x260] sm:$0xff]
        %v545 = vld [vmem:[%s386 + $0x268] sm:$0xff]
        %v546 = vld [vmem:[%s386 + $0x270] sm:$0xff]
        %v547 = vld [vmem:[%s386 + $0x278] sm:$0xff]
        %v548 = vld [vmem:[%s386 + $0x280] sm:$0xff]
        %v549 = vld [vmem:[%s386 + $0x288] sm:$0xff]
        %v550 = vld [vmem:[%s386 + $0x290] sm:$0xff]
        %v551 = vld [vmem:[%s386 + $0x298] sm:$0xff]
        %v552 = vld [vmem:[%s386 + $0x2a0] sm:$0xff]
        %v553 = vld [vmem:[%s386 + $0x2a8] sm:$0xff]
        %v554 = vld [vmem:[%s386 + $0x2b0] sm:$0xff]
        %v555 = vld [vmem:[%s386 + $0x2b8] sm:$0xff]
        %v556 = vld [vmem:[%s386 + $0x2c0] sm:$0xff]
        %v557 = vld [vmem:[%s386 + $0x2c8] sm:$0xff]
        %v558 = vld [vmem:[%s386 + $0x2d0] sm:$0xff]
        %v559 = vld [vmem:[%s386 + $0x2d8] sm:$0xff]
        %v560 = vld [vmem:[%s386 + $0x2e0] sm:$0xff]
        %v561 = vld [vmem:[%s386 + $0x2e8] sm:$0xff]
        %v562 = vld [vmem:[%s386 + $0x2f0] sm:$0xff]
        %v563 = vld [vmem:[%s386 + $0x2f8] sm:$0xff]
        %v564 = vld [vmem:[%s386 + $0x300] sm:$0xff]
        %v565 = vld [vmem:[%s386 + $0x308] sm:$0xff]
        %v566 = vld [vmem:[%s386 + $0x310] sm:$0xff]
        %v567 = vld [vmem:[%s386 + $0x318] sm:$0xff]
        %v568 = vld [vmem:[%s386 + $0x320] sm:$0xff]
        %v569 = vld [vmem:[%s386 + $0x328] sm:$0xff]
        %v570 = vld [vmem:[%s386 + $0x330] sm:$0xff]
        %v571 = vld [vmem:[%s386 + $0x338] sm:$0xff]
        %v572 = vld [vmem:[%s386 + $0x340] sm:$0xff]
        %v573 = vld [vmem:[%s386 + $0x348] sm:$0xff]
        %v574 = vld [vmem:[%s386 + $0x350] sm:$0xff]
        %v575 = vld [vmem:[%s386 + $0x358] sm:$0xff]
        %v576 = vld [vmem:[%s386 + $0x360] sm:$0xff]
        %v577 = vld [vmem:[%s386 + $0x368] sm:$0xff]
        %v578 = vld [vmem:[%s386 + $0x370] sm:$0xff]
        %v579 = vld [vmem:[%s386 + $0x378] sm:$0xff]
        %v580 = vld [vmem:[%s386 + $0x380] sm:$0xff]
        %v581 = vld [vmem:[%s386 + $0x388] sm:$0xff]
        %v582 = vld [vmem:[%s386 + $0x390] sm:$0xff]
        %v583 = vld [vmem:[%s386 + $0x398] sm:$0xff]
        %v584 = vld [vmem:[%s386 + $0x3a0] sm:$0xff]
        %v585 = vld [vmem:[%s386 + $0x3a8] sm:$0xff]
        %v586 = vld [vmem:[%s386 + $0x3b0] sm:$0xff]
        %v587 = vld [vmem:[%s386 + $0x3b8] sm:$0xff]
        %v588 = vld [vmem:[%s386 + $0x3c0] sm:$0xff]
        %v589 = vld [vmem:[%s386 + $0x3c8] sm:$0xff]
        %v590 = vld [vmem:[%s386 + $0x3d0] sm:$0xff]
        %v591 = vld [vmem:[%s386 + $0x3d8] sm:$0xff]
        %v592 = vld [vmem:[%s386 + $0x3e0] sm:$0xff]
        %v593 = vld [vmem:[%s386 + $0x3e8] sm:$0xff]
        %v594 = vld [vmem:[%s386 + $0x3f0] sm:$0xff]
        %v595 = vld [vmem:[%s386 + $0x3f8] sm:$0xff]
        %v596 = vld [vmem:[%s386 + $0x400] sm:$0xff]
        %v597 = vld [vmem:[%s386 + $0x408] sm:$0xff]
        %v598 = vld [vmem:[%s386 + $0x410] sm:$0xff]
        %v599 = vld [vmem:[%s386 + $0x418] sm:$0xff]
        %v600 = vld [vmem:[%s386 + $0x420] sm:$0xff]
        %v601 = vld [vmem:[%s386 + $0x428] sm:$0xff]
        %v602 = vld [vmem:[%s386 + $0x430] sm:$0xff]
        %v603 = vld [vmem:[%s386 + $0x438] sm:$0xff]
        %v604 = vld [vmem:[%s386 + $0x440] sm:$0xff]
        %v605 = vld [vmem:[%s386 + $0x448] sm:$0xff]
        %v606 = vld [vmem:[%s386 + $0x450] sm:$0xff]
        %v607 = vld [vmem:[%s386 + $0x458] sm:$0xff]
        %v608 = vld [vmem:[%s386 + $0x460] sm:$0xff]
        %v609 = vld [vmem:[%s386 + $0x468] sm:$0xff]
        %v610 = vld [vmem:[%s386 + $0x470] sm:$0xff]
        %v611 = vld [vmem:[%s386 + $0x478] sm:$0xff]
        %v612 = vld [vmem:[%s386 + $0x480] sm:$0xff]
        %v613 = vld [vmem:[%s386 + $0x488] sm:$0xff]
        %v614 = vld [vmem:[%s386 + $0x490] sm:$0xff]
        %v615 = vld [vmem:[%s386 + $0x498] sm:$0xff]
        %v616 = vld [vmem:[%s386 + $0x4a0] sm:$0xff]
        %v617 = vld [vmem:[%s386 + $0x4a8] sm:$0xff]
        %v618 = vld [vmem:[%s386 + $0x4b0] sm:$0xff]
        %v619 = vld [vmem:[%s386 + $0x4b8] sm:$0xff]
        %v620 = vld [vmem:[%s386 + $0x4c0] sm:$0xff]
        %v621 = vld [vmem:[%s386 + $0x4c8] sm:$0xff]
        %v622 = vld [vmem:[%s386 + $0x4d0] sm:$0xff]
        %v623 = vld [vmem:[%s386 + $0x4d8] sm:$0xff]
        %v624 = vld [vmem:[%s386 + $0x4e0] sm:$0xff]
        %v625 = vld [vmem:[%s386 + $0x4e8] sm:$0xff]
        %v626 = vld [vmem:[%s386 + $0x4f0] sm:$0xff]
        %v627 = vld [vmem:[%s386 + $0x4f8] sm:$0xff]
        %v628 = vld [vmem:[%s386 + $0x500] sm:$0xff]
        %v629 = vld [vmem:[%s386 + $0x508] sm:$0xff]
        %v630 = vld [vmem:[%s386 + $0x510] sm:$0xff]
        %v631 = vld [vmem:[%s386 + $0x518] sm:$0xff]
        %v632 = vld [vmem:[%s386 + $0x520] sm:$0xff]
        %v633 = vld [vmem:[%s386 + $0x528] sm:$0xff]
        %v634 = vld [vmem:[%s386 + $0x530] sm:$0xff]
        %v635 = vld [vmem:[%s386 + $0x538] sm:$0xff]
        %v636 = vld [vmem:[%s386 + $0x540] sm:$0xff]
        %v637 = vld [vmem:[%s386 + $0x548] sm:$0xff]
        %v638 = vld [vmem:[%s386 + $0x550] sm:$0xff]
        %v639 = vld [vmem:[%s386 + $0x558] sm:$0xff]
        %v640 = vld [vmem:[%s386 + $0x560] sm:$0xff]
        %v641 = vld [vmem:[%s386 + $0x568] sm:$0xff]
        %v642 = vld [vmem:[%s386 + $0x570] sm:$0xff]
        %v643 = vld [vmem:[%s386 + $0x578] sm:$0xff]
        %v644 = vld [vmem:[%s386 + $0x580] sm:$0xff]
        %v645 = vld [vmem:[%s386 + $0x588] sm:$0xff]
        %v646 = vld [vmem:[%s386 + $0x590] sm:$0xff]
        %v647 = vld [vmem:[%s386 + $0x598] sm:$0xff]
        %v648 = vld [vmem:[%s386 + $0x5a0] sm:$0xff]
        %v649 = vld [vmem:[%s386 + $0x5a8] sm:$0xff]
        %v650 = vld [vmem:[%s386 + $0x5b0] sm:$0xff]
        %v651 = vld [vmem:[%s386 + $0x5b8] sm:$0xff]
        %v652 = vld [vmem:[%s386 + $0x5c0] sm:$0xff]
        %v653 = vld [vmem:[%s386 + $0x5c8] sm:$0xff]
        %v654 = vld [vmem:[%s386 + $0x5d0] sm:$0xff]
        %v655 = vld [vmem:[%s386 + $0x5d8] sm:$0xff]
        %v656 = vld [vmem:[%s386 + $0x5e0] sm:$0xff]
        %v657 = vld [vmem:[%s386 + $0x5e8] sm:$0xff]
        %v658 = vld [vmem:[%s386 + $0x5f0] sm:$0xff]
        %v659 = vld [vmem:[%s386 + $0x5f8] sm:$0xff]
        %v660 = vld [vmem:[%s386 + $0x600] sm:$0xff]
        %v661 = vld [vmem:[%s386 + $0x608] sm:$0xff]
        %v662 = vld [vmem:[%s386 + $0x610] sm:$0xff]
        %v663 = vld [vmem:[%s386 + $0x618] sm:$0xff]
        %v664 = vld [vmem:[%s386 + $0x620] sm:$0xff]
        %v665 = vld [vmem:[%s386 + $0x628] sm:$0xff]
        %v666 = vld [vmem:[%s386 + $0x630] sm:$0xff]
        %v667 = vld [vmem:[%s386 + $0x638] sm:$0xff]
        %v668 = vld [vmem:[%s386 + $0x640] sm:$0xff]
        %v669 = vld [vmem:[%s386 + $0x648] sm:$0xff]
        %v670 = vld [vmem:[%s386 + $0x650] sm:$0xff]
        %v671 = vld [vmem:[%s386 + $0x658] sm:$0xff]
        %v672 = vld [vmem:[%s386 + $0x660] sm:$0xff]
        %v673 = vld [vmem:[%s386 + $0x668] sm:$0xff]
        %v674 = vld [vmem:[%s386 + $0x670] sm:$0xff]
        %v675 = vld [vmem:[%s386 + $0x678] sm:$0xff]
        %v676 = vld [vmem:[%s386 + $0x680] sm:$0xff]
        %v677 = vld [vmem:[%s386 + $0x688] sm:$0xff]
        %v678 = vld [vmem:[%s386 + $0x690] sm:$0xff]
        %v679 = vld [vmem:[%s386 + $0x698] sm:$0xff]
        %v680 = vld [vmem:[%s386 + $0x6a0] sm:$0xff]
        %v681 = vld [vmem:[%s386 + $0x6a8] sm:$0xff]
        %v682 = vld [vmem:[%s386 + $0x6b0] sm:$0xff]
        %v683 = vld [vmem:[%s386 + $0x6b8] sm:$0xff]
        %v684 = vld [vmem:[%s386 + $0x6c0] sm:$0xff]
        %v685 = vld [vmem:[%s386 + $0x6c8] sm:$0xff]
        %v686 = vld [vmem:[%s386 + $0x6d0] sm:$0xff]
        %v687 = vld [vmem:[%s386 + $0x6d8] sm:$0xff]
        %v688 = vld [vmem:[%s386 + $0x6e0] sm:$0xff]
        %v689 = vld [vmem:[%s386 + $0x6e8] sm:$0xff]
        %v690 = vld [vmem:[%s386 + $0x6f0] sm:$0xff]
        %v691 = vld [vmem:[%s386 + $0x6f8] sm:$0xff]
        %v692 = vld [vmem:[%s386 + $0x700] sm:$0xff]
        %v693 = vld [vmem:[%s386 + $0x708] sm:$0xff]
        %v694 = vld [vmem:[%s386 + $0x710] sm:$0xff]
        %v695 = vld [vmem:[%s386 + $0x718] sm:$0xff]
        %v696 = vld [vmem:[%s386 + $0x720] sm:$0xff]
        %v697 = vld [vmem:[%s386 + $0x728] sm:$0xff]
        %v698 = vld [vmem:[%s386 + $0x730] sm:$0xff]
        %v699 = vld [vmem:[%s386 + $0x738] sm:$0xff]
        %v700 = vld [vmem:[%s386 + $0x740] sm:$0xff]
        %v701 = vld [vmem:[%s386 + $0x748] sm:$0xff]
        %v702 = vld [vmem:[%s386 + $0x750] sm:$0xff]
        %v703 = vld [vmem:[%s386 + $0x758] sm:$0xff]
        %v704 = vld [vmem:[%s386 + $0x760] sm:$0xff]
        %v705 = vld [vmem:[%s386 + $0x768] sm:$0xff]
        %v706 = vld [vmem:[%s386 + $0x770] sm:$0xff]
        %v707 = vld [vmem:[%s386 + $0x778] sm:$0xff]
        %v708 = vld [vmem:[%s386 + $0x780] sm:$0xff]
        %v709 = vld [vmem:[%s386 + $0x788] sm:$0xff]
        %v710 = vld [vmem:[%s386 + $0x790] sm:$0xff]
        %v711 = vld [vmem:[%s386 + $0x798] sm:$0xff]
        %v712 = vld [vmem:[%s386 + $0x7a0] sm:$0xff]
        %v713 = vld [vmem:[%s386 + $0x7a8] sm:$0xff]
        %v714 = vld [vmem:[%s386 + $0x7b0] sm:$0xff]
        %v715 = vld [vmem:[%s386 + $0x7b8] sm:$0xff]
        %v716 = vld [vmem:[%s386 + $0x7c0] sm:$0xff]
        %v717 = vld [vmem:[%s386 + $0x7c8] sm:$0xff]
        %v718 = vld [vmem:[%s386 + $0x7d0] sm:$0xff]
        %v719 = vld [vmem:[%s386 + $0x7d8] sm:$0xff]
        %v720 = vld [vmem:[%s386 + $0x7e0] sm:$0xff]
        %v721 = vld [vmem:[%s386 + $0x7e8] sm:$0xff]
        %v722 = vld [vmem:[%s386 + $0x7f0] sm:$0xff]
        %v723 = vld [vmem:[%s386 + $0x7f8] sm:$0xff]
        %v728 = vunpack.c.l.b16 %v464
        %v729 = vunpack.c.h.b16 %v464
        %v730 = vunpack.c.l.b16 %v465
        %v731 = vunpack.c.h.b16 %v465
        %v732 = vunpack.c.l.b16 %v466
        %v733 = vunpack.c.h.b16 %v466
        %v734 = vunpack.c.l.b16 %v467
        %v735 = vunpack.c.h.b16 %v467
        %v736 = vpack.c.b16 %v728, %v728
        %v737 = vpack.c.b16 %v729, %v729
        %v738 = vpack.c.b16 %v730, %v730
        %v739 = vpack.c.b16 %v731, %v731
        %v740 = vpack.c.b16 %v732, %v732
        %v741 = vpack.c.b16 %v733, %v733
        %v742 = vpack.c.b16 %v734, %v734
        %v743 = vpack.c.b16 %v735, %v735
        %v1008 = vunpack.c.l.b16 %v468
        %v1009 = vunpack.c.h.b16 %v468
        %v1010 = vunpack.c.l.b16 %v469
        %v1011 = vunpack.c.h.b16 %v469
        %v1012 = vunpack.c.l.b16 %v470
        %v1013 = vunpack.c.h.b16 %v470
        %v1014 = vunpack.c.l.b16 %v471
        %v1015 = vunpack.c.h.b16 %v471
        %v1016 = vunpack.c.l.b16 %v472
        %v1017 = vunpack.c.h.b16 %v472
        %v1018 = vunpack.c.l.b16 %v473
        %v1019 = vunpack.c.h.b16 %v473
        %v1020 = vunpack.c.l.b16 %v474
        %v1021 = vunpack.c.h.b16 %v474
        %v1022 = vunpack.c.l.b16 %v475
        %v1023 = vunpack.c.h.b16 %v475
        %v1024 = vunpack.c.l.b16 %v476
        %v1025 = vunpack.c.h.b16 %v476
        %v1026 = vunpack.c.l.b16 %v477
        %v1027 = vunpack.c.h.b16 %v477
        %v1028 = vunpack.c.l.b16 %v478
        %v1029 = vunpack.c.h.b16 %v478
        %v1030 = vunpack.c.l.b16 %v479
        %v1031 = vunpack.c.h.b16 %v479
        %v1032 = vunpack.c.l.b16 %v480
        %v1033 = vunpack.c.h.b16 %v480
        %v1034 = vunpack.c.l.b16 %v481
        %v1035 = vunpack.c.h.b16 %v481
        %v1036 = vunpack.c.l.b16 %v482
        %v1037 = vunpack.c.h.b16 %v482
        %v1038 = vunpack.c.l.b16 %v483
        %v1039 = vunpack.c.h.b16 %v483
        %v1040 = vunpack.c.l.b16 %v484
        %v1041 = vunpack.c.h.b16 %v484
        %v1042 = vunpack.c.l.b16 %v485
        %v1043 = vunpack.c.h.b16 %v485
        %v1044 = vunpack.c.l.b16 %v486
        %v1045 = vunpack.c.h.b16 %v486
        %v1046 = vunpack.c.l.b16 %v487
        %v1047 = vunpack.c.h.b16 %v487
        %v1048 = vunpack.c.l.b16 %v488
        %v1049 = vunpack.c.h.b16 %v488
        %v1050 = vunpack.c.l.b16 %v489
        %v1051 = vunpack.c.h.b16 %v489
        %v1052 = vunpack.c.l.b16 %v490
        %v1053 = vunpack.c.h.b16 %v490
        %v1054 = vunpack.c.l.b16 %v491
        %v1055 = vunpack.c.h.b16 %v491
        %v1056 = vunpack.c.l.b16 %v492
        %v1057 = vunpack.c.h.b16 %v492
        %v1058 = vunpack.c.l.b16 %v493
        %v1059 = vunpack.c.h.b16 %v493
        %v1060 = vunpack.c.l.b16 %v494
        %v1061 = vunpack.c.h.b16 %v494
        %v1062 = vunpack.c.l.b16 %v495
        %v1063 = vunpack.c.h.b16 %v495
        %v1064 = vunpack.c.l.b16 %v496
        %v1065 = vunpack.c.h.b16 %v496
        %v1066 = vunpack.c.l.b16 %v497
        %v1067 = vunpack.c.h.b16 %v497
        %v1068 = vunpack.c.l.b16 %v498
        %v1069 = vunpack.c.h.b16 %v498
        %v1070 = vunpack.c.l.b16 %v499
        %v1071 = vunpack.c.h.b16 %v499
        %v1072 = vunpack.c.l.b16 %v500
        %v1073 = vunpack.c.h.b16 %v500
        %v1074 = vunpack.c.l.b16 %v501
        %v1075 = vunpack.c.h.b16 %v501
        %v1076 = vunpack.c.l.b16 %v502
        %v1077 = vunpack.c.h.b16 %v502
        %v1078 = vunpack.c.l.b16 %v503
        %v1079 = vunpack.c.h.b16 %v503
        %v1080 = vunpack.c.l.b16 %v504
        %v1081 = vunpack.c.h.b16 %v504
        %v1082 = vunpack.c.l.b16 %v505
        %v1083 = vunpack.c.h.b16 %v505
        %v1084 = vunpack.c.l.b16 %v506
        %v1085 = vunpack.c.h.b16 %v506
        %v1086 = vunpack.c.l.b16 %v507
        %v1087 = vunpack.c.h.b16 %v507
        %v1088 = vunpack.c.l.b16 %v508
        %v1089 = vunpack.c.h.b16 %v508
        %v1090 = vunpack.c.l.b16 %v509
        %v1091 = vunpack.c.h.b16 %v509
        %v1092 = vunpack.c.l.b16 %v510
        %v1093 = vunpack.c.h.b16 %v510
        %v1094 = vunpack.c.l.b16 %v511
        %v1095 = vunpack.c.h.b16 %v511
        %v1096 = vunpack.c.l.b16 %v512
        %v1097 = vunpack.c.h.b16 %v512
        %v1098 = vunpack.c.l.b16 %v513
        %v1099 = vunpack.c.h.b16 %v513
        %v1100 = vunpack.c.l.b16 %v514
        %v1101 = vunpack.c.h.b16 %v514
        %v1102 = vunpack.c.l.b16 %v515
        %v1103 = vunpack.c.h.b16 %v515
        %v1104 = vunpack.c.l.b16 %v516
        %v1105 = vunpack.c.h.b16 %v516
        %v1106 = vunpack.c.l.b16 %v517
        %v1107 = vunpack.c.h.b16 %v517
        %v1108 = vunpack.c.l.b16 %v518
        %v1109 = vunpack.c.h.b16 %v518
        %v1110 = vunpack.c.l.b16 %v519
        %v1111 = vunpack.c.h.b16 %v519
        %v1112 = vunpack.c.l.b16 %v520
        %v1113 = vunpack.c.h.b16 %v520
        %v1114 = vunpack.c.l.b16 %v521
        %v1115 = vunpack.c.h.b16 %v521
        %v1116 = vunpack.c.l.b16 %v522
        %v1117 = vunpack.c.h.b16 %v522
        %v1118 = vunpack.c.l.b16 %v523
        %v1119 = vunpack.c.h.b16 %v523
        %v1120 = vunpack.c.l.b16 %v524
        %v1121 = vunpack.c.h.b16 %v524
        %v1122 = vunpack.c.l.b16 %v525
        %v1123 = vunpack.c.h.b16 %v525
        %v1124 = vunpack.c.l.b16 %v526
        %v1125 = vunpack.c.h.b16 %v526
        %v1126 = vunpack.c.l.b16 %v527
        %v1127 = vunpack.c.h.b16 %v527
        %v1128 = vunpack.c.l.b16 %v528
        %v1129 = vunpack.c.h.b16 %v528
        %v1130 = vunpack.c.l.b16 %v529
        %v1131 = vunpack.c.h.b16 %v529
        %v1132 = vunpack.c.l.b16 %v530
        %v1133 = vunpack.c.h.b16 %v530
        %v1134 = vunpack.c.l.b16 %v531
        %v1135 = vunpack.c.h.b16 %v531
        %v1136 = vunpack.c.l.b16 %v532
        %v1137 = vunpack.c.h.b16 %v532
        %v1138 = vunpack.c.l.b16 %v533
        %v1139 = vunpack.c.h.b16 %v533
        %v1140 = vunpack.c.l.b16 %v534
        %v1141 = vunpack.c.h.b16 %v534
        %v1142 = vunpack.c.l.b16 %v535
        %v1143 = vunpack.c.h.b16 %v535
        %v1144 = vunpack.c.l.b16 %v536
        %v1145 = vunpack.c.h.b16 %v536
        %v1146 = vunpack.c.l.b16 %v537
        %v1147 = vunpack.c.h.b16 %v537
        %v1148 = vunpack.c.l.b16 %v538
        %v1149 = vunpack.c.h.b16 %v538
        %v1150 = vunpack.c.l.b16 %v539
        %v1151 = vunpack.c.h.b16 %v539
        %v1152 = vunpack.c.l.b16 %v540
        %v1153 = vunpack.c.h.b16 %v540
        %v1154 = vunpack.c.l.b16 %v541
        %v1155 = vunpack.c.h.b16 %v541
        %v1156 = vunpack.c.l.b16 %v542
        %v1157 = vunpack.c.h.b16 %v542
        %v1158 = vunpack.c.l.b16 %v543
        %v1159 = vunpack.c.h.b16 %v543
        %v1160 = vunpack.c.l.b16 %v544
        %v1161 = vunpack.c.h.b16 %v544
        %v1162 = vunpack.c.l.b16 %v545
        %v1163 = vunpack.c.h.b16 %v545
        %v1164 = vunpack.c.l.b16 %v546
        %v1165 = vunpack.c.h.b16 %v546
        %v1166 = vunpack.c.l.b16 %v547
        %v1167 = vunpack.c.h.b16 %v547
        %v1168 = vunpack.c.l.b16 %v548
        %v1169 = vunpack.c.h.b16 %v548
        %v1170 = vunpack.c.l.b16 %v549
        %v1171 = vunpack.c.h.b16 %v549
        %v1172 = vunpack.c.l.b16 %v550
        %v1173 = vunpack.c.h.b16 %v550
        %v1174 = vunpack.c.l.b16 %v551
        %v1175 = vunpack.c.h.b16 %v551
        %v1176 = vunpack.c.l.b16 %v552
        %v1177 = vunpack.c.h.b16 %v552
        %v1178 = vunpack.c.l.b16 %v553
        %v1179 = vunpack.c.h.b16 %v553
        %v1180 = vunpack.c.l.b16 %v554
        %v1181 = vunpack.c.h.b16 %v554
        %v1182 = vunpack.c.l.b16 %v555
        %v1183 = vunpack.c.h.b16 %v555
        %v1184 = vunpack.c.l.b16 %v556
        %v1185 = vunpack.c.h.b16 %v556
        %v1186 = vunpack.c.l.b16 %v557
        %v1187 = vunpack.c.h.b16 %v557
        %v1188 = vunpack.c.l.b16 %v558
        %v1189 = vunpack.c.h.b16 %v558
        %v1190 = vunpack.c.l.b16 %v559
        %v1191 = vunpack.c.h.b16 %v559
        %v1192 = vunpack.c.l.b16 %v560
        %v1193 = vunpack.c.h.b16 %v560
        %v1194 = vunpack.c.l.b16 %v561
        %v1195 = vunpack.c.h.b16 %v561
        %v1196 = vunpack.c.l.b16 %v562
        %v1197 = vunpack.c.h.b16 %v562
        %v1198 = vunpack.c.l.b16 %v563
        %v1199 = vunpack.c.h.b16 %v563
        %v1200 = vunpack.c.l.b16 %v564
        %v1201 = vunpack.c.h.b16 %v564
        %v1202 = vunpack.c.l.b16 %v565
        %v1203 = vunpack.c.h.b16 %v565
        %v1204 = vunpack.c.l.b16 %v566
        %v1205 = vunpack.c.h.b16 %v566
        %v1206 = vunpack.c.l.b16 %v567
        %v1207 = vunpack.c.h.b16 %v567
        %v1208 = vunpack.c.l.b16 %v568
        %v1209 = vunpack.c.h.b16 %v568
        %v1210 = vunpack.c.l.b16 %v569
        %v1211 = vunpack.c.h.b16 %v569
        %v1212 = vunpack.c.l.b16 %v570
        %v1213 = vunpack.c.h.b16 %v570
        %v1214 = vunpack.c.l.b16 %v571
        %v1215 = vunpack.c.h.b16 %v571
        %v1216 = vunpack.c.l.b16 %v572
        %v1217 = vunpack.c.h.b16 %v572
        %v1218 = vunpack.c.l.b16 %v573
        %v1219 = vunpack.c.h.b16 %v573
        %v1220 = vunpack.c.l.b16 %v574
        %v1221 = vunpack.c.h.b16 %v574
        %v1222 = vunpack.c.l.b16 %v575
        %v1223 = vunpack.c.h.b16 %v575
        %v1224 = vunpack.c.l.b16 %v576
        %v1225 = vunpack.c.h.b16 %v576
        %v1226 = vunpack.c.l.b16 %v577
        %v1227 = vunpack.c.h.b16 %v577
        %v1228 = vunpack.c.l.b16 %v578
        %v1229 = vunpack.c.h.b16 %v578
        %v1230 = vunpack.c.l.b16 %v579
        %v1231 = vunpack.c.h.b16 %v579
        %v1232 = vunpack.c.l.b16 %v580
        %v1233 = vunpack.c.h.b16 %v580
        %v1234 = vunpack.c.l.b16 %v581
        %v1235 = vunpack.c.h.b16 %v581
        %v1236 = vunpack.c.l.b16 %v582
        %v1237 = vunpack.c.h.b16 %v582
        %v1238 = vunpack.c.l.b16 %v583
        %v1239 = vunpack.c.h.b16 %v583
        %v1240 = vunpack.c.l.b16 %v584
        %v1241 = vunpack.c.h.b16 %v584
        %v1242 = vunpack.c.l.b16 %v585
        %v1243 = vunpack.c.h.b16 %v585
        %v1244 = vunpack.c.l.b16 %v586
        %v1245 = vunpack.c.h.b16 %v586
        %v1246 = vunpack.c.l.b16 %v587
        %v1247 = vunpack.c.h.b16 %v587
        %v1248 = vunpack.c.l.b16 %v588
        %v1249 = vunpack.c.h.b16 %v588
        %v1250 = vunpack.c.l.b16 %v589
        %v1251 = vunpack.c.h.b16 %v589
        %v1252 = vunpack.c.l.b16 %v590
        %v1253 = vunpack.c.h.b16 %v590
        %v1254 = vunpack.c.l.b16 %v591
        %v1255 = vunpack.c.h.b16 %v591
        %v1256 = vunpack.c.l.b16 %v592
        %v1257 = vunpack.c.h.b16 %v592
        %v1258 = vunpack.c.l.b16 %v593
        %v1259 = vunpack.c.h.b16 %v593
        %v1260 = vunpack.c.l.b16 %v594
        %v1261 = vunpack.c.h.b16 %v594
        %v1262 = vunpack.c.l.b16 %v595
        %v1263 = vunpack.c.h.b16 %v595
        %v1264 = vunpack.c.l.b16 %v596
        %v1265 = vunpack.c.h.b16 %v596
        %v1266 = vunpack.c.l.b16 %v597
        %v1267 = vunpack.c.h.b16 %v597
        %v1268 = vunpack.c.l.b16 %v598
        %v1269 = vunpack.c.h.b16 %v598
        %v1270 = vunpack.c.l.b16 %v599
        %v1271 = vunpack.c.h.b16 %v599
        %v1272 = vunpack.c.l.b16 %v600
        %v1273 = vunpack.c.h.b16 %v600
        %v1274 = vunpack.c.l.b16 %v601
        %v1275 = vunpack.c.h.b16 %v601
        %v1276 = vunpack.c.l.b16 %v602
        %v1277 = vunpack.c.h.b16 %v602
        %v1278 = vunpack.c.l.b16 %v603
        %v1279 = vunpack.c.h.b16 %v603
        %v1280 = vunpack.c.l.b16 %v604
        %v1281 = vunpack.c.h.b16 %v604
        %v1282 = vunpack.c.l.b16 %v605
        %v1283 = vunpack.c.h.b16 %v605
        %v1284 = vunpack.c.l.b16 %v606
        %v1285 = vunpack.c.h.b16 %v606
        %v1286 = vunpack.c.l.b16 %v607
        %v1287 = vunpack.c.h.b16 %v607
        %v1288 = vunpack.c.l.b16 %v608
        %v1289 = vunpack.c.h.b16 %v608
        %v1290 = vunpack.c.l.b16 %v609
        %v1291 = vunpack.c.h.b16 %v609
        %v1292 = vunpack.c.l.b16 %v610
        %v1293 = vunpack.c.h.b16 %v610
        %v1294 = vunpack.c.l.b16 %v611
        %v1295 = vunpack.c.h.b16 %v611
        %v1296 = vunpack.c.l.b16 %v612
        %v1297 = vunpack.c.h.b16 %v612
        %v1298 = vunpack.c.l.b16 %v613
        %v1299 = vunpack.c.h.b16 %v613
        %v1300 = vunpack.c.l.b16 %v614
        %v1301 = vunpack.c.h.b16 %v614
        %v1302 = vunpack.c.l.b16 %v615
        %v1303 = vunpack.c.h.b16 %v615
        %v1304 = vunpack.c.l.b16 %v616
        %v1305 = vunpack.c.h.b16 %v616
        %v1306 = vunpack.c.l.b16 %v617
        %v1307 = vunpack.c.h.b16 %v617
        %v1308 = vunpack.c.l.b16 %v618
        %v1309 = vunpack.c.h.b16 %v618
        %v1310 = vunpack.c.l.b16 %v619
        %v1311 = vunpack.c.h.b16 %v619
        %v1312 = vunpack.c.l.b16 %v620
        %v1313 = vunpack.c.h.b16 %v620
        %v1314 = vunpack.c.l.b16 %v621
        %v1315 = vunpack.c.h.b16 %v621
        %v1316 = vunpack.c.l.b16 %v622
        %v1317 = vunpack.c.h.b16 %v622
        %v1318 = vunpack.c.l.b16 %v623
        %v1319 = vunpack.c.h.b16 %v623
        %v1320 = vunpack.c.l.b16 %v624
        %v1321 = vunpack.c.h.b16 %v624
        %v1322 = vunpack.c.l.b16 %v625
        %v1323 = vunpack.c.h.b16 %v625
        %v1324 = vunpack.c.l.b16 %v626
        %v1325 = vunpack.c.h.b16 %v626
        %v1326 = vunpack.c.l.b16 %v627
        %v1327 = vunpack.c.h.b16 %v627
        %v1328 = vunpack.c.l.b16 %v628
        %v1329 = vunpack.c.h.b16 %v628
        %v1330 = vunpack.c.l.b16 %v629
        %v1331 = vunpack.c.h.b16 %v629
        %v1332 = vunpack.c.l.b16 %v630
        %v1333 = vunpack.c.h.b16 %v630
        %v1334 = vunpack.c.l.b16 %v631
        %v1335 = vunpack.c.h.b16 %v631
        %v1336 = vunpack.c.l.b16 %v632
        %v1337 = vunpack.c.h.b16 %v632
        %v1338 = vunpack.c.l.b16 %v633
        %v1339 = vunpack.c.h.b16 %v633
        %v1340 = vunpack.c.l.b16 %v634
        %v1341 = vunpack.c.h.b16 %v634
        %v1342 = vunpack.c.l.b16 %v635
        %v1343 = vunpack.c.h.b16 %v635
        %v1344 = vunpack.c.l.b16 %v636
        %v1345 = vunpack.c.h.b16 %v636
        %v1346 = vunpack.c.l.b16 %v637
        %v1347 = vunpack.c.h.b16 %v637
        %v1348 = vunpack.c.l.b16 %v638
        %v1349 = vunpack.c.h.b16 %v638
        %v1350 = vunpack.c.l.b16 %v639
        %v1351 = vunpack.c.h.b16 %v639
        %v1352 = vunpack.c.l.b16 %v640
        %v1353 = vunpack.c.h.b16 %v640
        %v1354 = vunpack.c.l.b16 %v641
        %v1355 = vunpack.c.h.b16 %v641
        %v1356 = vunpack.c.l.b16 %v642
        %v1357 = vunpack.c.h.b16 %v642
        %v1358 = vunpack.c.l.b16 %v643
        %v1359 = vunpack.c.h.b16 %v643
        %v1360 = vunpack.c.l.b16 %v644
        %v1361 = vunpack.c.h.b16 %v644
        %v1362 = vunpack.c.l.b16 %v645
        %v1363 = vunpack.c.h.b16 %v645
        %v1364 = vunpack.c.l.b16 %v646
        %v1365 = vunpack.c.h.b16 %v646
        %v1366 = vunpack.c.l.b16 %v647
        %v1367 = vunpack.c.h.b16 %v647
        %v1368 = vunpack.c.l.b16 %v648
        %v1369 = vunpack.c.h.b16 %v648
        %v1370 = vunpack.c.l.b16 %v649
        %v1371 = vunpack.c.h.b16 %v649
        %v1372 = vunpack.c.l.b16 %v650
        %v1373 = vunpack.c.h.b16 %v650
        %v1374 = vunpack.c.l.b16 %v651
        %v1375 = vunpack.c.h.b16 %v651
        %v1376 = vunpack.c.l.b16 %v652
        %v1377 = vunpack.c.h.b16 %v652
        %v1378 = vunpack.c.l.b16 %v653
        %v1379 = vunpack.c.h.b16 %v653
        %v1380 = vunpack.c.l.b16 %v654
        %v1381 = vunpack.c.h.b16 %v654
        %v1382 = vunpack.c.l.b16 %v655
        %v1383 = vunpack.c.h.b16 %v655
        %v1384 = vunpack.c.l.b16 %v656
        %v1385 = vunpack.c.h.b16 %v656
        %v1386 = vunpack.c.l.b16 %v657
        %v1387 = vunpack.c.h.b16 %v657
        %v1388 = vunpack.c.l.b16 %v658
        %v1389 = vunpack.c.h.b16 %v658
        %v1390 = vunpack.c.l.b16 %v659
        %v1391 = vunpack.c.h.b16 %v659
        %v1392 = vunpack.c.l.b16 %v660
        %v1393 = vunpack.c.h.b16 %v660
        %v1394 = vunpack.c.l.b16 %v661
        %v1395 = vunpack.c.h.b16 %v661
        %v1396 = vunpack.c.l.b16 %v662
        %v1397 = vunpack.c.h.b16 %v662
        %v1398 = vunpack.c.l.b16 %v663
        %v1399 = vunpack.c.h.b16 %v663
        %v1400 = vunpack.c.l.b16 %v664
        %v1401 = vunpack.c.h.b16 %v664
        %v1402 = vunpack.c.l.b16 %v665
        %v1403 = vunpack.c.h.b16 %v665
        %v1404 = vunpack.c.l.b16 %v666
        %v1405 = vunpack.c.h.b16 %v666
        %v1406 = vunpack.c.l.b16 %v667
        %v1407 = vunpack.c.h.b16 %v667
        %v1408 = vunpack.c.l.b16 %v668
        %v1409 = vunpack.c.h.b16 %v668
        %v1410 = vunpack.c.l.b16 %v669
        %v1411 = vunpack.c.h.b16 %v669
        %v1412 = vunpack.c.l.b16 %v670
        %v1413 = vunpack.c.h.b16 %v670
        %v1414 = vunpack.c.l.b16 %v671
        %v1415 = vunpack.c.h.b16 %v671
        %v1416 = vunpack.c.l.b16 %v672
        %v1417 = vunpack.c.h.b16 %v672
        %v1418 = vunpack.c.l.b16 %v673
        %v1419 = vunpack.c.h.b16 %v673
        %v1420 = vunpack.c.l.b16 %v674
        %v1421 = vunpack.c.h.b16 %v674
        %v1422 = vunpack.c.l.b16 %v675
        %v1423 = vunpack.c.h.b16 %v675
        %v1424 = vunpack.c.l.b16 %v676
        %v1425 = vunpack.c.h.b16 %v676
        %v1426 = vunpack.c.l.b16 %v677
        %v1427 = vunpack.c.h.b16 %v677
        %v1428 = vunpack.c.l.b16 %v678
        %v1429 = vunpack.c.h.b16 %v678
        %v1430 = vunpack.c.l.b16 %v679
        %v1431 = vunpack.c.h.b16 %v679
        %v1432 = vunpack.c.l.b16 %v680
        %v1433 = vunpack.c.h.b16 %v680
        %v1434 = vunpack.c.l.b16 %v681
        %v1435 = vunpack.c.h.b16 %v681
        %v1436 = vunpack.c.l.b16 %v682
        %v1437 = vunpack.c.h.b16 %v682
        %v1438 = vunpack.c.l.b16 %v683
        %v1439 = vunpack.c.h.b16 %v683
        %v1440 = vunpack.c.l.b16 %v684
        %v1441 = vunpack.c.h.b16 %v684
        %v1442 = vunpack.c.l.b16 %v685
        %v1443 = vunpack.c.h.b16 %v685
        %v1444 = vunpack.c.l.b16 %v686
        %v1445 = vunpack.c.h.b16 %v686
        %v1446 = vunpack.c.l.b16 %v687
        %v1447 = vunpack.c.h.b16 %v687
        %v1448 = vunpack.c.l.b16 %v688
        %v1449 = vunpack.c.h.b16 %v688
        %v1450 = vunpack.c.l.b16 %v689
        %v1451 = vunpack.c.h.b16 %v689
        %v1452 = vunpack.c.l.b16 %v690
        %v1453 = vunpack.c.h.b16 %v690
        %v1454 = vunpack.c.l.b16 %v691
        %v1455 = vunpack.c.h.b16 %v691
        %v1456 = vunpack.c.l.b16 %v692
        %v1457 = vunpack.c.h.b16 %v692
        %v1458 = vunpack.c.l.b16 %v693
        %v1459 = vunpack.c.h.b16 %v693
        %v1460 = vunpack.c.l.b16 %v694
        %v1461 = vunpack.c.h.b16 %v694
        %v1462 = vunpack.c.l.b16 %v695
        %v1463 = vunpack.c.h.b16 %v695
        %v1464 = vunpack.c.l.b16 %v696
        %v1465 = vunpack.c.h.b16 %v696
        %v1466 = vunpack.c.l.b16 %v697
        %v1467 = vunpack.c.h.b16 %v697
        %v1468 = vunpack.c.l.b16 %v698
        %v1469 = vunpack.c.h.b16 %v698
        %v1470 = vunpack.c.l.b16 %v699
        %v1471 = vunpack.c.h.b16 %v699
        %v1472 = vunpack.c.l.b16 %v700
        %v1473 = vunpack.c.h.b16 %v700
        %v1474 = vunpack.c.l.b16 %v701
        %v1475 = vunpack.c.h.b16 %v701
        %v1476 = vunpack.c.l.b16 %v702
        %v1477 = vunpack.c.h.b16 %v702
        %v1478 = vunpack.c.l.b16 %v703
        %v1479 = vunpack.c.h.b16 %v703
        %v1480 = vunpack.c.l.b16 %v704
        %v1481 = vunpack.c.h.b16 %v704
        %v1482 = vunpack.c.l.b16 %v705
        %v1483 = vunpack.c.h.b16 %v705
        %v1484 = vunpack.c.l.b16 %v706
        %v1485 = vunpack.c.h.b16 %v706
        %v1486 = vunpack.c.l.b16 %v707
        %v1487 = vunpack.c.h.b16 %v707
        %v1488 = vunpack.c.l.b16 %v708
        %v1489 = vunpack.c.h.b16 %v708
        %v1490 = vunpack.c.l.b16 %v709
        %v1491 = vunpack.c.h.b16 %v709
        %v1492 = vunpack.c.l.b16 %v710
        %v1493 = vunpack.c.h.b16 %v710
        %v1494 = vunpack.c.l.b16 %v711
        %v1495 = vunpack.c.h.b16 %v711
        %v1496 = vunpack.c.l.b16 %v712
        %v1497 = vunpack.c.h.b16 %v712
        %v1498 = vunpack.c.l.b16 %v713
        %v1499 = vunpack.c.h.b16 %v713
        %v1500 = vunpack.c.l.b16 %v714
        %v1501 = vunpack.c.h.b16 %v714
        %v1502 = vunpack.c.l.b16 %v715
        %v1503 = vunpack.c.h.b16 %v715
        %v1504 = vunpack.c.l.b16 %v716
        %v1505 = vunpack.c.h.b16 %v716
        %v1506 = vunpack.c.l.b16 %v717
        %v1507 = vunpack.c.h.b16 %v717
        %v1508 = vunpack.c.l.b16 %v718
        %v1509 = vunpack.c.h.b16 %v718
        %v1510 = vunpack.c.l.b16 %v719
        %v1511 = vunpack.c.h.b16 %v719
        %v1512 = vunpack.c.l.b16 %v720
        %v1513 = vunpack.c.h.b16 %v720
        %v1514 = vunpack.c.l.b16 %v721
        %v1515 = vunpack.c.h.b16 %v721
        %v1516 = vunpack.c.l.b16 %v722
        %v1517 = vunpack.c.h.b16 %v722
        %v1518 = vunpack.c.l.b16 %v723
        %v1519 = vunpack.c.h.b16 %v723
        %v1520 = vpack.c.b16 %v1012, %v1008
        %v1521 = vpack.c.b16 %v1013, %v1009
        %v1522 = vpack.c.b16 %v1014, %v1010
        %v1523 = vpack.c.b16 %v1015, %v1011
        %v1524 = vpack.c.b16 %v1020, %v1016
        %v1525 = vpack.c.b16 %v1021, %v1017
        %v1526 = vpack.c.b16 %v1022, %v1018
        %v1527 = vpack.c.b16 %v1023, %v1019
        %v1528 = vpack.c.b16 %v1028, %v1024
        %v1529 = vpack.c.b16 %v1029, %v1025
        %v1530 = vpack.c.b16 %v1030, %v1026
        %v1531 = vpack.c.b16 %v1031, %v1027
        %v1532 = vpack.c.b16 %v1036, %v1032
        %v1533 = vpack.c.b16 %v1037, %v1033
        %v1534 = vpack.c.b16 %v1038, %v1034
        %v1535 = vpack.c.b16 %v1039, %v1035
        %v1536 = vpack.c.b16 %v1044, %v1040
        %v1537 = vpack.c.b16 %v1045, %v1041
        %v1538 = vpack.c.b16 %v1046, %v1042
        %v1539 = vpack.c.b16 %v1047, %v1043
        %v1540 = vpack.c.b16 %v1052, %v1048
        %v1541 = vpack.c.b16 %v1053, %v1049
        %v1542 = vpack.c.b16 %v1054, %v1050
        %v1543 = vpack.c.b16 %v1055, %v1051
        %v1544 = vpack.c.b16 %v1060, %v1056
        %v1545 = vpack.c.b16 %v1061, %v1057
        %v1546 = vpack.c.b16 %v1062, %v1058
        %v1547 = vpack.c.b16 %v1063, %v1059
        %v1548 = vpack.c.b16 %v1068, %v1064
        %v1549 = vpack.c.b16 %v1069, %v1065
        %v1550 = vpack.c.b16 %v1070, %v1066
        %v1551 = vpack.c.b16 %v1071, %v1067
        %v1552 = vpack.c.b16 %v1076, %v1072
        %v1553 = vpack.c.b16 %v1077, %v1073
        %v1554 = vpack.c.b16 %v1078, %v1074
        %v1555 = vpack.c.b16 %v1079, %v1075
        %v1556 = vpack.c.b16 %v1084, %v1080
        %v1557 = vpack.c.b16 %v1085, %v1081
        %v1558 = vpack.c.b16 %v1086, %v1082
        %v1559 = vpack.c.b16 %v1087, %v1083
        %v1560 = vpack.c.b16 %v1092, %v1088
        %v1561 = vpack.c.b16 %v1093, %v1089
        %v1562 = vpack.c.b16 %v1094, %v1090
        %v1563 = vpack.c.b16 %v1095, %v1091
        %v1564 = vpack.c.b16 %v1100, %v1096
        %v1565 = vpack.c.b16 %v1101, %v1097
        %v1566 = vpack.c.b16 %v1102, %v1098
        %v1567 = vpack.c.b16 %v1103, %v1099
        %v1568 = vpack.c.b16 %v1108, %v1104
        %v1569 = vpack.c.b16 %v1109, %v1105
        %v1570 = vpack.c.b16 %v1110, %v1106
        %v1571 = vpack.c.b16 %v1111, %v1107
        %v1572 = vpack.c.b16 %v1116, %v1112
        %v1573 = vpack.c.b16 %v1117, %v1113
        %v1574 = vpack.c.b16 %v1118, %v1114
        %v1575 = vpack.c.b16 %v1119, %v1115
        %v1576 = vpack.c.b16 %v1124, %v1120
        %v1577 = vpack.c.b16 %v1125, %v1121
        %v1578 = vpack.c.b16 %v1126, %v1122
        %v1579 = vpack.c.b16 %v1127, %v1123
        %v1580 = vpack.c.b16 %v1132, %v1128
        %v1581 = vpack.c.b16 %v1133, %v1129
        %v1582 = vpack.c.b16 %v1134, %v1130
        %v1583 = vpack.c.b16 %v1135, %v1131
        %v1584 = vpack.c.b16 %v1140, %v1136
        %v1585 = vpack.c.b16 %v1141, %v1137
        %v1586 = vpack.c.b16 %v1142, %v1138
        %v1587 = vpack.c.b16 %v1143, %v1139
        %v1588 = vpack.c.b16 %v1148, %v1144
        %v1589 = vpack.c.b16 %v1149, %v1145
        %v1590 = vpack.c.b16 %v1150, %v1146
        %v1591 = vpack.c.b16 %v1151, %v1147
        %v1592 = vpack.c.b16 %v1156, %v1152
        %v1593 = vpack.c.b16 %v1157, %v1153
        %v1594 = vpack.c.b16 %v1158, %v1154
        %v1595 = vpack.c.b16 %v1159, %v1155
        %v1596 = vpack.c.b16 %v1164, %v1160
        %v1597 = vpack.c.b16 %v1165, %v1161
        %v1598 = vpack.c.b16 %v1166, %v1162
        %v1599 = vpack.c.b16 %v1167, %v1163
        %v1600 = vpack.c.b16 %v1172, %v1168
        %v1601 = vpack.c.b16 %v1173, %v1169
        %v1602 = vpack.c.b16 %v1174, %v1170
        %v1603 = vpack.c.b16 %v1175, %v1171
        %v1604 = vpack.c.b16 %v1180, %v1176
        %v1605 = vpack.c.b16 %v1181, %v1177
        %v1606 = vpack.c.b16 %v1182, %v1178
        %v1607 = vpack.c.b16 %v1183, %v1179
        %v1608 = vpack.c.b16 %v1188, %v1184
        %v1609 = vpack.c.b16 %v1189, %v1185
        %v1610 = vpack.c.b16 %v1190, %v1186
        %v1611 = vpack.c.b16 %v1191, %v1187
        %v1612 = vpack.c.b16 %v1196, %v1192
        %v1613 = vpack.c.b16 %v1197, %v1193
        %v1614 = vpack.c.b16 %v1198, %v1194
        %v1615 = vpack.c.b16 %v1199, %v1195
        %v1616 = vpack.c.b16 %v1204, %v1200
        %v1617 = vpack.c.b16 %v1205, %v1201
        %v1618 = vpack.c.b16 %v1206, %v1202
        %v1619 = vpack.c.b16 %v1207, %v1203
        %v1620 = vpack.c.b16 %v1212, %v1208
        %v1621 = vpack.c.b16 %v1213, %v1209
        %v1622 = vpack.c.b16 %v1214, %v1210
        %v1623 = vpack.c.b16 %v1215, %v1211
        %v1624 = vpack.c.b16 %v1220, %v1216
        %v1625 = vpack.c.b16 %v1221, %v1217
        %v1626 = vpack.c.b16 %v1222, %v1218
        %v1627 = vpack.c.b16 %v1223, %v1219
        %v1628 = vpack.c.b16 %v1228, %v1224
        %v1629 = vpack.c.b16 %v1229, %v1225
        %v1630 = vpack.c.b16 %v1230, %v1226
        %v1631 = vpack.c.b16 %v1231, %v1227
        %v1632 = vpack.c.b16 %v1236, %v1232
        %v1633 = vpack.c.b16 %v1237, %v1233
        %v1634 = vpack.c.b16 %v1238, %v1234
        %v1635 = vpack.c.b16 %v1239, %v1235
        %v1636 = vpack.c.b16 %v1244, %v1240
        %v1637 = vpack.c.b16 %v1245, %v1241
        %v1638 = vpack.c.b16 %v1246, %v1242
        %v1639 = vpack.c.b16 %v1247, %v1243
        %v1640 = vpack.c.b16 %v1252, %v1248
        %v1641 = vpack.c.b16 %v1253, %v1249
        %v1642 = vpack.c.b16 %v1254, %v1250
        %v1643 = vpack.c.b16 %v1255, %v1251
        %v1644 = vpack.c.b16 %v1260, %v1256
        %v1645 = vpack.c.b16 %v1261, %v1257
        %v1646 = vpack.c.b16 %v1262, %v1258
        %v1647 = vpack.c.b16 %v1263, %v1259
        %v1648 = vpack.c.b16 %v1268, %v1264
        %v1649 = vpack.c.b16 %v1269, %v1265
        %v1650 = vpack.c.b16 %v1270, %v1266
        %v1651 = vpack.c.b16 %v1271, %v1267
        %v1652 = vpack.c.b16 %v1276, %v1272
        %v1653 = vpack.c.b16 %v1277, %v1273
        %v1654 = vpack.c.b16 %v1278, %v1274
        %v1655 = vpack.c.b16 %v1279, %v1275
        %v1656 = vpack.c.b16 %v1284, %v1280
        %v1657 = vpack.c.b16 %v1285, %v1281
        %v1658 = vpack.c.b16 %v1286, %v1282
        %v1659 = vpack.c.b16 %v1287, %v1283
        %v1660 = vpack.c.b16 %v1292, %v1288
        %v1661 = vpack.c.b16 %v1293, %v1289
        %v1662 = vpack.c.b16 %v1294, %v1290
        %v1663 = vpack.c.b16 %v1295, %v1291
        %v1664 = vpack.c.b16 %v1300, %v1296
        %v1665 = vpack.c.b16 %v1301, %v1297
        %v1666 = vpack.c.b16 %v1302, %v1298
        %v1667 = vpack.c.b16 %v1303, %v1299
        %v1668 = vpack.c.b16 %v1308, %v1304
        %v1669 = vpack.c.b16 %v1309, %v1305
        %v1670 = vpack.c.b16 %v1310, %v1306
        %v1671 = vpack.c.b16 %v1311, %v1307
        %v1672 = vpack.c.b16 %v1316, %v1312
        %v1673 = vpack.c.b16 %v1317, %v1313
        %v1674 = vpack.c.b16 %v1318, %v1314
        %v1675 = vpack.c.b16 %v1319, %v1315
        %v1676 = vpack.c.b16 %v1324, %v1320
        %v1677 = vpack.c.b16 %v1325, %v1321
        %v1678 = vpack.c.b16 %v1326, %v1322
        %v1679 = vpack.c.b16 %v1327, %v1323
        %v1680 = vpack.c.b16 %v1332, %v1328
        %v1681 = vpack.c.b16 %v1333, %v1329
        %v1682 = vpack.c.b16 %v1334, %v1330
        %v1683 = vpack.c.b16 %v1335, %v1331
        %v1684 = vpack.c.b16 %v1340, %v1336
        %v1685 = vpack.c.b16 %v1341, %v1337
        %v1686 = vpack.c.b16 %v1342, %v1338
        %v1687 = vpack.c.b16 %v1343, %v1339
        %v1688 = vpack.c.b16 %v1348, %v1344
        %v1689 = vpack.c.b16 %v1349, %v1345
        %v1690 = vpack.c.b16 %v1350, %v1346
        %v1691 = vpack.c.b16 %v1351, %v1347
        %v1692 = vpack.c.b16 %v1356, %v1352
        %v1693 = vpack.c.b16 %v1357, %v1353
        %v1694 = vpack.c.b16 %v1358, %v1354
        %v1695 = vpack.c.b16 %v1359, %v1355
        %v1696 = vpack.c.b16 %v1364, %v1360
        %v1697 = vpack.c.b16 %v1365, %v1361
        %v1698 = vpack.c.b16 %v1366, %v1362
        %v1699 = vpack.c.b16 %v1367, %v1363
        %v1700 = vpack.c.b16 %v1372, %v1368
        %v1701 = vpack.c.b16 %v1373, %v1369
        %v1702 = vpack.c.b16 %v1374, %v1370
        %v1703 = vpack.c.b16 %v1375, %v1371
        %v1704 = vpack.c.b16 %v1380, %v1376
        %v1705 = vpack.c.b16 %v1381, %v1377
        %v1706 = vpack.c.b16 %v1382, %v1378
        %v1707 = vpack.c.b16 %v1383, %v1379
        %v1708 = vpack.c.b16 %v1388, %v1384
        %v1709 = vpack.c.b16 %v1389, %v1385
        %v1710 = vpack.c.b16 %v1390, %v1386
        %v1711 = vpack.c.b16 %v1391, %v1387
        %v1712 = vpack.c.b16 %v1396, %v1392
        %v1713 = vpack.c.b16 %v1397, %v1393
        %v1714 = vpack.c.b16 %v1398, %v1394
        %v1715 = vpack.c.b16 %v1399, %v1395
        %v1716 = vpack.c.b16 %v1404, %v1400
        %v1717 = vpack.c.b16 %v1405, %v1401
        %v1718 = vpack.c.b16 %v1406, %v1402
        %v1719 = vpack.c.b16 %v1407, %v1403
        %v1720 = vpack.c.b16 %v1412, %v1408
        %v1721 = vpack.c.b16 %v1413, %v1409
        %v1722 = vpack.c.b16 %v1414, %v1410
        %v1723 = vpack.c.b16 %v1415, %v1411
        %v1724 = vpack.c.b16 %v1420, %v1416
        %v1725 = vpack.c.b16 %v1421, %v1417
        %v1726 = vpack.c.b16 %v1422, %v1418
        %v1727 = vpack.c.b16 %v1423, %v1419
        %v1728 = vpack.c.b16 %v1428, %v1424
        %v1729 = vpack.c.b16 %v1429, %v1425
        %v1730 = vpack.c.b16 %v1430, %v1426
        %v1731 = vpack.c.b16 %v1431, %v1427
        %v1732 = vpack.c.b16 %v1436, %v1432
        %v1733 = vpack.c.b16 %v1437, %v1433
        %v1734 = vpack.c.b16 %v1438, %v1434
        %v1735 = vpack.c.b16 %v1439, %v1435
        %v1736 = vpack.c.b16 %v1444, %v1440
        %v1737 = vpack.c.b16 %v1445, %v1441
        %v1738 = vpack.c.b16 %v1446, %v1442
        %v1739 = vpack.c.b16 %v1447, %v1443
        %v1740 = vpack.c.b16 %v1452, %v1448
        %v1741 = vpack.c.b16 %v1453, %v1449
        %v1742 = vpack.c.b16 %v1454, %v1450
        %v1743 = vpack.c.b16 %v1455, %v1451
        %v1744 = vpack.c.b16 %v1460, %v1456
        %v1745 = vpack.c.b16 %v1461, %v1457
        %v1746 = vpack.c.b16 %v1462, %v1458
        %v1747 = vpack.c.b16 %v1463, %v1459
        %v1748 = vpack.c.b16 %v1468, %v1464
        %v1749 = vpack.c.b16 %v1469, %v1465
        %v1750 = vpack.c.b16 %v1470, %v1466
        %v1751 = vpack.c.b16 %v1471, %v1467
        %v1752 = vpack.c.b16 %v1476, %v1472
        %v1753 = vpack.c.b16 %v1477, %v1473
        %v1754 = vpack.c.b16 %v1478, %v1474
        %v1755 = vpack.c.b16 %v1479, %v1475
        %v1756 = vpack.c.b16 %v1484, %v1480
        %v1757 = vpack.c.b16 %v1485, %v1481
        %v1758 = vpack.c.b16 %v1486, %v1482
        %v1759 = vpack.c.b16 %v1487, %v1483
        %v1760 = vpack.c.b16 %v1492, %v1488
        %v1761 = vpack.c.b16 %v1493, %v1489
        %v1762 = vpack.c.b16 %v1494, %v1490
        %v1763 = vpack.c.b16 %v1495, %v1491
        %v1764 = vpack.c.b16 %v1500, %v1496
        %v1765 = vpack.c.b16 %v1501, %v1497
        %v1766 = vpack.c.b16 %v1502, %v1498
        %v1767 = vpack.c.b16 %v1503, %v1499
        %v1768 = vpack.c.b16 %v1508, %v1504
        %v1769 = vpack.c.b16 %v1509, %v1505
        %v1770 = vpack.c.b16 %v1510, %v1506
        %v1771 = vpack.c.b16 %v1511, %v1507
        %v1772 = vpack.c.b16 %v1516, %v1512
        %v1773 = vpack.c.b16 %v1517, %v1513
        %v1774 = vpack.c.b16 %v1518, %v1514
        %v1775 = vpack.c.b16 %v1519, %v1515
        %2032 = vmatpush.bf16.msra.mxu0 %v1548
        %2033 = vmatpush.bf16.msra.mxu0 %v1544
        %2034 = vmatpush.bf16.msra.mxu0 %v1540
        %2035 = vmatpush.bf16.msra.mxu0 %v1536
        %2036 = vmatpush.bf16.msra.mxu0 %v1532
        %2037 = vmatpush.bf16.msra.mxu0 %v1528
        %2038 = vmatpush.bf16.msra.mxu0 %v1524
        %2039 = vmatpush.bf16.msra.mxu0 %v1520
        %2040 = vmatmul.bf16.gmra.mxu0 %v736
        %v2041 = vpop.f32.mrf.mxu0
        %v2042 = vadd.f32 0.0, %v2041
        %v2043 = vpop.f32.mrf.mxu0
        %2044 = vdwg.mxu0
        %2045 = vmatpush.bf16.msra.mxu0 %v1580
        %2046 = vmatpush.bf16.msra.mxu0 %v1576
        %2047 = vmatpush.bf16.msra.mxu0 %v1572
        %2048 = vmatpush.bf16.msra.mxu0 %v1568
        %2049 = vmatpush.bf16.msra.mxu0 %v1564
        %2050 = vmatpush.bf16.msra.mxu0 %v1560
        %2051 = vmatpush.bf16.msra.mxu0 %v1556
        %2052 = vmatpush.bf16.msra.mxu0 %v1552
        %2053 = vmatmul.bf16.gmra.mxu0 %v737
        %v2054 = vpop.f32.mrf.mxu0
        %v2055 = vadd.f32 %v2042, %v2054
        %v2056 = vpop.f32.mrf.mxu0
        %2057 = vdwg.mxu0
        %2058 = vmatpush.bf16.msra.mxu0 %v1612
        %2059 = vmatpush.bf16.msra.mxu0 %v1608
        %2060 = vmatpush.bf16.msra.mxu0 %v1604
        %2061 = vmatpush.bf16.msra.mxu0 %v1600
        %2062 = vmatpush.bf16.msra.mxu0 %v1596
        %2063 = vmatpush.bf16.msra.mxu0 %v1592
        %2064 = vmatpush.bf16.msra.mxu0 %v1588
        %2065 = vmatpush.bf16.msra.mxu0 %v1584
        %2066 = vmatmul.bf16.gmra.mxu0 %v738
        %v2067 = vpop.f32.mrf.mxu0
        %v2068 = vadd.f32 %v2055, %v2067
        %v2069 = vpop.f32.mrf.mxu0
        %2070 = vdwg.mxu0
        %2071 = vmatpush.bf16.msra.mxu0 %v1644
        %2072 = vmatpush.bf16.msra.mxu0 %v1640
        %2073 = vmatpush.bf16.msra.mxu0 %v1636
        %2074 = vmatpush.bf16.msra.mxu0 %v1632
        %2075 = vmatpush.bf16.msra.mxu0 %v1628
        %2076 = vmatpush.bf16.msra.mxu0 %v1624
        %2077 = vmatpush.bf16.msra.mxu0 %v1620
        %2078 = vmatpush.bf16.msra.mxu0 %v1616
        %2079 = vmatmul.bf16.gmra.mxu0 %v739
        %v2080 = vpop.f32.mrf.mxu0
        %v2081 = vadd.f32 %v2068, %v2080
        %v2082 = vpop.f32.mrf.mxu0
        %2083 = vdwg.mxu0
        %2084 = vmatpush.bf16.msra.mxu0 %v1676
        %2085 = vmatpush.bf16.msra.mxu0 %v1672
        %2086 = vmatpush.bf16.msra.mxu0 %v1668
        %2087 = vmatpush.bf16.msra.mxu0 %v1664
        %2088 = vmatpush.bf16.msra.mxu0 %v1660
        %2089 = vmatpush.bf16.msra.mxu0 %v1656
        %2090 = vmatpush.bf16.msra.mxu0 %v1652
        %2091 = vmatpush.bf16.msra.mxu0 %v1648
        %2092 = vmatmul.bf16.gmra.mxu0 %v740
        %v2093 = vpop.f32.mrf.mxu0
        %v2094 = vadd.f32 %v2081, %v2093
        %v2095 = vpop.f32.mrf.mxu0
        %2096 = vdwg.mxu0
        %2097 = vmatpush.bf16.msra.mxu0 %v1708
        %2098 = vmatpush.bf16.msra.mxu0 %v1704
        %2099 = vmatpush.bf16.msra.mxu0 %v1700
        %2100 = vmatpush.bf16.msra.mxu0 %v1696
        %2101 = vmatpush.bf16.msra.mxu0 %v1692
        %2102 = vmatpush.bf16.msra.mxu0 %v1688
        %2103 = vmatpush.bf16.msra.mxu0 %v1684
        %2104 = vmatpush.bf16.msra.mxu0 %v1680
        %2105 = vmatmul.bf16.gmra.mxu0 %v741
        %v2106 = vpop.f32.mrf.mxu0
        %v2107 = vadd.f32 %v2094, %v2106
        %v2108 = vpop.f32.mrf.mxu0
        %2109 = vdwg.mxu0
        %2110 = vmatpush.bf16.msra.mxu0 %v1740
        %2111 = vmatpush.bf16.msra.mxu0 %v1736
        %2112 = vmatpush.bf16.msra.mxu0 %v1732
        %2113 = vmatpush.bf16.msra.mxu0 %v1728
        %2114 = vmatpush.bf16.msra.mxu0 %v1724
        %2115 = vmatpush.bf16.msra.mxu0 %v1720
        %2116 = vmatpush.bf16.msra.mxu0 %v1716
        %2117 = vmatpush.bf16.msra.mxu0 %v1712
        %2118 = vmatmul.bf16.gmra.mxu0 %v742
        %v2119 = vpop.f32.mrf.mxu0
        %v2120 = vadd.f32 %v2107, %v2119
        %v2121 = vpop.f32.mrf.mxu0
        %2122 = vdwg.mxu0
        %2123 = vmatpush.bf16.msra.mxu0 %v1772
        %2124 = vmatpush.bf16.msra.mxu0 %v1768
        %2125 = vmatpush.bf16.msra.mxu0 %v1764
        %2126 = vmatpush.bf16.msra.mxu0 %v1760
        %2127 = vmatpush.bf16.msra.mxu0 %v1756
        %2128 = vmatpush.bf16.msra.mxu0 %v1752
        %2129 = vmatpush.bf16.msra.mxu0 %v1748
        %2130 = vmatpush.bf16.msra.mxu0 %v1744
        %2131 = vmatmul.bf16.gmra.mxu0 %v743
        %v2132 = vpop.f32.mrf.mxu0
        %v2133 = vadd.f32 %v2120, %v2132
        %v2134 = vpop.f32.mrf.mxu0
        %2135 = vdwg.mxu0
        %2136 = vmatpush.bf16.msra.mxu0 %v1549
        %2137 = vmatpush.bf16.msra.mxu0 %v1545
        %2138 = vmatpush.bf16.msra.mxu0 %v1541
        %2139 = vmatpush.bf16.msra.mxu0 %v1537
        %2140 = vmatpush.bf16.msra.mxu0 %v1533
        %2141 = vmatpush.bf16.msra.mxu0 %v1529
        %2142 = vmatpush.bf16.msra.mxu0 %v1525
        %2143 = vmatpush.bf16.msra.mxu0 %v1521
        %2144 = vmatmul.bf16.gmra.mxu0 %v736
        %v2145 = vpop.f32.mrf.mxu0
        %v2146 = vadd.f32 0.0, %v2145
        %v2147 = vpop.f32.mrf.mxu0
        %2148 = vdwg.mxu0
        %2149 = vmatpush.bf16.msra.mxu0 %v1581
        %2150 = vmatpush.bf16.msra.mxu0 %v1577
        %2151 = vmatpush.bf16.msra.mxu0 %v1573
        %2152 = vmatpush.bf16.msra.mxu0 %v1569
        %2153 = vmatpush.bf16.msra.mxu0 %v1565
        %2154 = vmatpush.bf16.msra.mxu0 %v1561
        %2155 = vmatpush.bf16.msra.mxu0 %v1557
        %2156 = vmatpush.bf16.msra.mxu0 %v1553
        %2157 = vmatmul.bf16.gmra.mxu0 %v737
        %v2158 = vpop.f32.mrf.mxu0
        %v2159 = vadd.f32 %v2146, %v2158
        %v2160 = vpop.f32.mrf.mxu0
        %2161 = vdwg.mxu0
        %2162 = vmatpush.bf16.msra.mxu0 %v1613
        %2163 = vmatpush.bf16.msra.mxu0 %v1609
        %2164 = vmatpush.bf16.msra.mxu0 %v1605
        %2165 = vmatpush.bf16.msra.mxu0 %v1601
        %2166 = vmatpush.bf16.msra.mxu0 %v1597
        %2167 = vmatpush.bf16.msra.mxu0 %v1593
        %2168 = vmatpush.bf16.msra.mxu0 %v1589
        %2169 = vmatpush.bf16.msra.mxu0 %v1585
        %2170 = vmatmul.bf16.gmra.mxu0 %v738
        %v2171 = vpop.f32.mrf.mxu0
        %v2172 = vadd.f32 %v2159, %v2171
        %v2173 = vpop.f32.mrf.mxu0
        %2174 = vdwg.mxu0
        %2175 = vmatpush.bf16.msra.mxu0 %v1645
        %2176 = vmatpush.bf16.msra.mxu0 %v1641
        %2177 = vmatpush.bf16.msra.mxu0 %v1637
        %2178 = vmatpush.bf16.msra.mxu0 %v1633
        %2179 = vmatpush.bf16.msra.mxu0 %v1629
        %2180 = vmatpush.bf16.msra.mxu0 %v1625
        %2181 = vmatpush.bf16.msra.mxu0 %v1621
        %2182 = vmatpush.bf16.msra.mxu0 %v1617
        %2183 = vmatmul.bf16.gmra.mxu0 %v739
        %v2184 = vpop.f32.mrf.mxu0
        %v2185 = vadd.f32 %v2172, %v2184
        %v2186 = vpop.f32.mrf.mxu0
        %2187 = vdwg.mxu0
        %2188 = vmatpush.bf16.msra.mxu0 %v1677
        %2189 = vmatpush.bf16.msra.mxu0 %v1673
        %2190 = vmatpush.bf16.msra.mxu0 %v1669
        %2191 = vmatpush.bf16.msra.mxu0 %v1665
        %2192 = vmatpush.bf16.msra.mxu0 %v1661
        %2193 = vmatpush.bf16.msra.mxu0 %v1657
        %2194 = vmatpush.bf16.msra.mxu0 %v1653
        %2195 = vmatpush.bf16.msra.mxu0 %v1649
        %2196 = vmatmul.bf16.gmra.mxu0 %v740
        %v2197 = vpop.f32.mrf.mxu0
        %v2198 = vadd.f32 %v2185, %v2197
        %v2199 = vpop.f32.mrf.mxu0
        %2200 = vdwg.mxu0
        %2201 = vmatpush.bf16.msra.mxu0 %v1709
        %2202 = vmatpush.bf16.msra.mxu0 %v1705
        %2203 = vmatpush.bf16.msra.mxu0 %v1701
        %2204 = vmatpush.bf16.msra.mxu0 %v1697
        %2205 = vmatpush.bf16.msra.mxu0 %v1693
        %2206 = vmatpush.bf16.msra.mxu0 %v1689
        %2207 = vmatpush.bf16.msra.mxu0 %v1685
        %2208 = vmatpush.bf16.msra.mxu0 %v1681
        %2209 = vmatmul.bf16.gmra.mxu0 %v741
        %v2210 = vpop.f32.mrf.mxu0
        %v2211 = vadd.f32 %v2198, %v2210
        %v2212 = vpop.f32.mrf.mxu0
        %2213 = vdwg.mxu0
        %2214 = vmatpush.bf16.msra.mxu0 %v1741
        %2215 = vmatpush.bf16.msra.mxu0 %v1737
        %2216 = vmatpush.bf16.msra.mxu0 %v1733
        %2217 = vmatpush.bf16.msra.mxu0 %v1729
        %2218 = vmatpush.bf16.msra.mxu0 %v1725
        %2219 = vmatpush.bf16.msra.mxu0 %v1721
        %2220 = vmatpush.bf16.msra.mxu0 %v1717
        %2221 = vmatpush.bf16.msra.mxu0 %v1713
        %2222 = vmatmul.bf16.gmra.mxu0 %v742
        %v2223 = vpop.f32.mrf.mxu0
        %v2224 = vadd.f32 %v2211, %v2223
        %v2225 = vpop.f32.mrf.mxu0
        %2226 = vdwg.mxu0
        %2227 = vmatpush.bf16.msra.mxu0 %v1773
        %2228 = vmatpush.bf16.msra.mxu0 %v1769
        %2229 = vmatpush.bf16.msra.mxu0 %v1765
        %2230 = vmatpush.bf16.msra.mxu0 %v1761
        %2231 = vmatpush.bf16.msra.mxu0 %v1757
        %2232 = vmatpush.bf16.msra.mxu0 %v1753
        %2233 = vmatpush.bf16.msra.mxu0 %v1749
        %2234 = vmatpush.bf16.msra.mxu0 %v1745
        %2235 = vmatmul.bf16.gmra.mxu0 %v743
        %v2236 = vpop.f32.mrf.mxu0
        %v2237 = vadd.f32 %v2224, %v2236
        %v2238 = vpop.f32.mrf.mxu0
        %2239 = vdwg.mxu0
        %2240 = vmatpush.bf16.msra.mxu0 %v1550
        %2241 = vmatpush.bf16.msra.mxu0 %v1546
        %2242 = vmatpush.bf16.msra.mxu0 %v1542
        %2243 = vmatpush.bf16.msra.mxu0 %v1538
        %2244 = vmatpush.bf16.msra.mxu0 %v1534
        %2245 = vmatpush.bf16.msra.mxu0 %v1530
        %2246 = vmatpush.bf16.msra.mxu0 %v1526
        %2247 = vmatpush.bf16.msra.mxu0 %v1522
        %2248 = vmatmul.bf16.gmra.mxu0 %v736
        %v2249 = vpop.f32.mrf.mxu0
        %v2250 = vadd.f32 0.0, %v2249
        %v2251 = vpop.f32.mrf.mxu0
        %2252 = vdwg.mxu0
        %2253 = vmatpush.bf16.msra.mxu0 %v1582
        %2254 = vmatpush.bf16.msra.mxu0 %v1578
        %2255 = vmatpush.bf16.msra.mxu0 %v1574
        %2256 = vmatpush.bf16.msra.mxu0 %v1570
        %2257 = vmatpush.bf16.msra.mxu0 %v1566
        %2258 = vmatpush.bf16.msra.mxu0 %v1562
        %2259 = vmatpush.bf16.msra.mxu0 %v1558
        %2260 = vmatpush.bf16.msra.mxu0 %v1554
        %2261 = vmatmul.bf16.gmra.mxu0 %v737
        %v2262 = vpop.f32.mrf.mxu0
        %v2263 = vadd.f32 %v2250, %v2262
        %v2264 = vpop.f32.mrf.mxu0
        %2265 = vdwg.mxu0
        %2266 = vmatpush.bf16.msra.mxu0 %v1614
        %2267 = vmatpush.bf16.msra.mxu0 %v1610
        %2268 = vmatpush.bf16.msra.mxu0 %v1606
        %2269 = vmatpush.bf16.msra.mxu0 %v1602
        %2270 = vmatpush.bf16.msra.mxu0 %v1598
        %2271 = vmatpush.bf16.msra.mxu0 %v1594
        %2272 = vmatpush.bf16.msra.mxu0 %v1590
        %2273 = vmatpush.bf16.msra.mxu0 %v1586
        %2274 = vmatmul.bf16.gmra.mxu0 %v738
        %v2275 = vpop.f32.mrf.mxu0
        %v2276 = vadd.f32 %v2263, %v2275
        %v2277 = vpop.f32.mrf.mxu0
        %2278 = vdwg.mxu0
        %2279 = vmatpush.bf16.msra.mxu0 %v1646
        %2280 = vmatpush.bf16.msra.mxu0 %v1642
        %2281 = vmatpush.bf16.msra.mxu0 %v1638
        %2282 = vmatpush.bf16.msra.mxu0 %v1634
        %2283 = vmatpush.bf16.msra.mxu0 %v1630
        %2284 = vmatpush.bf16.msra.mxu0 %v1626
        %2285 = vmatpush.bf16.msra.mxu0 %v1622
        %2286 = vmatpush.bf16.msra.mxu0 %v1618
        %2287 = vmatmul.bf16.gmra.mxu0 %v739
        %v2288 = vpop.f32.mrf.mxu0
        %v2289 = vadd.f32 %v2276, %v2288
        %v2290 = vpop.f32.mrf.mxu0
        %2291 = vdwg.mxu0
        %2292 = vmatpush.bf16.msra.mxu0 %v1678
        %2293 = vmatpush.bf16.msra.mxu0 %v1674
        %2294 = vmatpush.bf16.msra.mxu0 %v1670
        %2295 = vmatpush.bf16.msra.mxu0 %v1666
        %2296 = vmatpush.bf16.msra.mxu0 %v1662
        %2297 = vmatpush.bf16.msra.mxu0 %v1658
        %2298 = vmatpush.bf16.msra.mxu0 %v1654
        %2299 = vmatpush.bf16.msra.mxu0 %v1650
        %2300 = vmatmul.bf16.gmra.mxu0 %v740
        %v2301 = vpop.f32.mrf.mxu0
        %v2302 = vadd.f32 %v2289, %v2301
        %v2303 = vpop.f32.mrf.mxu0
        %2304 = vdwg.mxu0
        %2305 = vmatpush.bf16.msra.mxu0 %v1710
        %2306 = vmatpush.bf16.msra.mxu0 %v1706
        %2307 = vmatpush.bf16.msra.mxu0 %v1702
        %2308 = vmatpush.bf16.msra.mxu0 %v1698
        %2309 = vmatpush.bf16.msra.mxu0 %v1694
        %2310 = vmatpush.bf16.msra.mxu0 %v1690
        %2311 = vmatpush.bf16.msra.mxu0 %v1686
        %2312 = vmatpush.bf16.msra.mxu0 %v1682
        %2313 = vmatmul.bf16.gmra.mxu0 %v741
        %v2314 = vpop.f32.mrf.mxu0
        %v2315 = vadd.f32 %v2302, %v2314
        %v2316 = vpop.f32.mrf.mxu0
        %2317 = vdwg.mxu0
        %2318 = vmatpush.bf16.msra.mxu0 %v1742
        %2319 = vmatpush.bf16.msra.mxu0 %v1738
        %2320 = vmatpush.bf16.msra.mxu0 %v1734
        %2321 = vmatpush.bf16.msra.mxu0 %v1730
        %2322 = vmatpush.bf16.msra.mxu0 %v1726
        %2323 = vmatpush.bf16.msra.mxu0 %v1722
        %2324 = vmatpush.bf16.msra.mxu0 %v1718
        %2325 = vmatpush.bf16.msra.mxu0 %v1714
        %2326 = vmatmul.bf16.gmra.mxu0 %v742
        %v2327 = vpop.f32.mrf.mxu0
        %v2328 = vadd.f32 %v2315, %v2327
        %v2329 = vpop.f32.mrf.mxu0
        %2330 = vdwg.mxu0
        %2331 = vmatpush.bf16.msra.mxu0 %v1774
        %2332 = vmatpush.bf16.msra.mxu0 %v1770
        %2333 = vmatpush.bf16.msra.mxu0 %v1766
        %2334 = vmatpush.bf16.msra.mxu0 %v1762
        %2335 = vmatpush.bf16.msra.mxu0 %v1758
        %2336 = vmatpush.bf16.msra.mxu0 %v1754
        %2337 = vmatpush.bf16.msra.mxu0 %v1750
        %2338 = vmatpush.bf16.msra.mxu0 %v1746
        %2339 = vmatmul.bf16.gmra.mxu0 %v743
        %v2340 = vpop.f32.mrf.mxu0
        %v2341 = vadd.f32 %v2328, %v2340
        %v2342 = vpop.f32.mrf.mxu0
        %2343 = vdwg.mxu0
        %2344 = vmatpush.bf16.msra.mxu0 %v1551
        %2345 = vmatpush.bf16.msra.mxu0 %v1547
        %2346 = vmatpush.bf16.msra.mxu0 %v1543
        %2347 = vmatpush.bf16.msra.mxu0 %v1539
        %2348 = vmatpush.bf16.msra.mxu0 %v1535
        %2349 = vmatpush.bf16.msra.mxu0 %v1531
        %2350 = vmatpush.bf16.msra.mxu0 %v1527
        %2351 = vmatpush.bf16.msra.mxu0 %v1523
        %2352 = vmatmul.bf16.gmra.mxu0 %v736
        %v2353 = vpop.f32.mrf.mxu0
        %v2354 = vadd.f32 0.0, %v2353
        %v2355 = vpop.f32.mrf.mxu0
        %2356 = vdwg.mxu0
        %2357 = vmatpush.bf16.msra.mxu0 %v1583
        %2358 = vmatpush.bf16.msra.mxu0 %v1579
        %2359 = vmatpush.bf16.msra.mxu0 %v1575
        %2360 = vmatpush.bf16.msra.mxu0 %v1571
        %2361 = vmatpush.bf16.msra.mxu0 %v1567
        %2362 = vmatpush.bf16.msra.mxu0 %v1563
        %2363 = vmatpush.bf16.msra.mxu0 %v1559
        %2364 = vmatpush.bf16.msra.mxu0 %v1555
        %2365 = vmatmul.bf16.gmra.mxu0 %v737
        %v2366 = vpop.f32.mrf.mxu0
        %v2367 = vadd.f32 %v2354, %v2366
        %v2368 = vpop.f32.mrf.mxu0
        %2369 = vdwg.mxu0
        %2370 = vmatpush.bf16.msra.mxu0 %v1615
        %2371 = vmatpush.bf16.msra.mxu0 %v1611
        %2372 = vmatpush.bf16.msra.mxu0 %v1607
        %2373 = vmatpush.bf16.msra.mxu0 %v1603
        %2374 = vmatpush.bf16.msra.mxu0 %v1599
        %2375 = vmatpush.bf16.msra.mxu0 %v1595
        %2376 = vmatpush.bf16.msra.mxu0 %v1591
        %2377 = vmatpush.bf16.msra.mxu0 %v1587
        %2378 = vmatmul.bf16.gmra.mxu0 %v738
        %v2379 = vpop.f32.mrf.mxu0
        %v2380 = vadd.f32 %v2367, %v2379
        %v2381 = vpop.f32.mrf.mxu0
        %2382 = vdwg.mxu0
        %2383 = vmatpush.bf16.msra.mxu0 %v1647
        %2384 = vmatpush.bf16.msra.mxu0 %v1643
        %2385 = vmatpush.bf16.msra.mxu0 %v1639
        %2386 = vmatpush.bf16.msra.mxu0 %v1635
        %2387 = vmatpush.bf16.msra.mxu0 %v1631
        %2388 = vmatpush.bf16.msra.mxu0 %v1627
        %2389 = vmatpush.bf16.msra.mxu0 %v1623
        %2390 = vmatpush.bf16.msra.mxu0 %v1619
        %2391 = vmatmul.bf16.gmra.mxu0 %v739
        %v2392 = vpop.f32.mrf.mxu0
        %v2393 = vadd.f32 %v2380, %v2392
        %v2394 = vpop.f32.mrf.mxu0
        %2395 = vdwg.mxu0
        %2396 = vmatpush.bf16.msra.mxu0 %v1679
        %2397 = vmatpush.bf16.msra.mxu0 %v1675
        %2398 = vmatpush.bf16.msra.mxu0 %v1671
        %2399 = vmatpush.bf16.msra.mxu0 %v1667
        %2400 = vmatpush.bf16.msra.mxu0 %v1663
        %2401 = vmatpush.bf16.msra.mxu0 %v1659
        %2402 = vmatpush.bf16.msra.mxu0 %v1655
        %2403 = vmatpush.bf16.msra.mxu0 %v1651
        %2404 = vmatmul.bf16.gmra.mxu0 %v740
        %v2405 = vpop.f32.mrf.mxu0
        %v2406 = vadd.f32 %v2393, %v2405
        %v2407 = vpop.f32.mrf.mxu0
        %2408 = vdwg.mxu0
        %2409 = vmatpush.bf16.msra.mxu0 %v1711
        %2410 = vmatpush.bf16.msra.mxu0 %v1707
        %2411 = vmatpush.bf16.msra.mxu0 %v1703
        %2412 = vmatpush.bf16.msra.mxu0 %v1699
        %2413 = vmatpush.bf16.msra.mxu0 %v1695
        %2414 = vmatpush.bf16.msra.mxu0 %v1691
        %2415 = vmatpush.bf16.msra.mxu0 %v1687
        %2416 = vmatpush.bf16.msra.mxu0 %v1683
        %2417 = vmatmul.bf16.gmra.mxu0 %v741
        %v2418 = vpop.f32.mrf.mxu0
        %v2419 = vadd.f32 %v2406, %v2418
        %v2420 = vpop.f32.mrf.mxu0
        %2421 = vdwg.mxu0
        %2422 = vmatpush.bf16.msra.mxu0 %v1743
        %2423 = vmatpush.bf16.msra.mxu0 %v1739
        %2424 = vmatpush.bf16.msra.mxu0 %v1735
        %2425 = vmatpush.bf16.msra.mxu0 %v1731
        %2426 = vmatpush.bf16.msra.mxu0 %v1727
        %2427 = vmatpush.bf16.msra.mxu0 %v1723
        %2428 = vmatpush.bf16.msra.mxu0 %v1719
        %2429 = vmatpush.bf16.msra.mxu0 %v1715
        %2430 = vmatmul.bf16.gmra.mxu0 %v742
        %v2431 = vpop.f32.mrf.mxu0
        %v2432 = vadd.f32 %v2419, %v2431
        %v2433 = vpop.f32.mrf.mxu0
        %2434 = vdwg.mxu0
        %2435 = vmatpush.bf16.msra.mxu0 %v1775
        %2436 = vmatpush.bf16.msra.mxu0 %v1771
        %2437 = vmatpush.bf16.msra.mxu0 %v1767
        %2438 = vmatpush.bf16.msra.mxu0 %v1763
        %2439 = vmatpush.bf16.msra.mxu0 %v1759
        %2440 = vmatpush.bf16.msra.mxu0 %v1755
        %2441 = vmatpush.bf16.msra.mxu0 %v1751
        %2442 = vmatpush.bf16.msra.mxu0 %v1747
        %2443 = vmatmul.bf16.gmra.mxu0 %v743
        %v2444 = vpop.f32.mrf.mxu0
        %v2445 = vadd.f32 %v2432, %v2444
        %v2446 = vpop.f32.mrf.mxu0
        %2447 = vdwg.mxu0
        %v2448 = vadd.f32 %v460, %v2133
        %v2449 = vadd.f32 %v461, %v2237
        %v2450 = vadd.f32 %v462, %v2341
        %v2451 = vadd.f32 %v463, %v2445
        %2452 = vst [vmem:[#allocation2] sm:$0xff] %v2448
        %2453 = vst [vmem:[#allocation2 + $0x8] sm:$0xff] %v2449
        %2454 = vst [vmem:[#allocation2 + $0x10] sm:$0xff] %v2450
        %2455 = vst [vmem:[#allocation2 + $0x18] sm:$0xff] %v2451
        %p2456 = scmp.eq.s32.totalorder %s29, 2
        // Predicated region
        $region89: #{tpu_custom_call.1} parent=51 // pred_check
          %p2457 = pneg %p2456
        $region90: #{tpu_custom_call.1} parent=51 // pred_check_branch
          %2459 = sbr.rel (%p2457) target = $region92
        $region91: #{tpu_custom_call.1} parent=51 // pred_region
          %v2460 = vld [vmem:[#allocation2] sm:$0xff]
          %v2461 = vld [vmem:[#allocation2 + $0x8] sm:$0xff]
          %v2462 = vld [vmem:[#allocation2 + $0x10] sm:$0xff]
          %v2463 = vld [vmem:[#allocation2 + $0x18] sm:$0xff]
          %v2464 = vld [vmem:[#allocation14] ss:$4 sm:$0xf]
          %v2466 = vperm.slane %v2464, 0
          %v2467 = vperm.slane %v2464, 1
          %v2468 = vperm.slane %v2464, 2
          %v2469 = vperm.slane %v2464, 3
          %v2474 = vadd.f32 %v2460, %v2466
          %v2475 = vadd.f32 %v2461, %v2467
          %v2476 = vadd.f32 %v2462, %v2468
          %v2477 = vadd.f32 %v2463, %v2469
          %v2478 = vmax.f32 %v2474, 0.0
          %v2479 = vmax.f32 %v2475, 0.0
          %v2480 = vmax.f32 %v2476, 0.0
          %v2481 = vmax.f32 %v2477, 0.0
          %v2482 = vpack.c.bf16 %v2478, %v2478
          %v2483 = vpack.c.bf16 %v2479, %v2479
          %v2484 = vpack.c.bf16 %v2480, %v2480
          %v2485 = vpack.c.bf16 %v2481, %v2481
          %v2486 = vld [vmem:[#allocation8] sm:$0xff]
          %v2487 = vld [vmem:[#allocation8 + $0x8] sm:$0xff]
          %v2488 = vld [vmem:[#allocation8 + $0x10] sm:$0xff]
          %v2489 = vld [vmem:[#allocation8 + $0x18] sm:$0xff]
          %v2490 = vld [vmem:[#allocation8 + $0x20] sm:$0xff]
          %v2491 = vld [vmem:[#allocation8 + $0x28] sm:$0xff]
          %v2492 = vld [vmem:[#allocation8 + $0x30] sm:$0xff]
          %v2493 = vld [vmem:[#allocation8 + $0x38] sm:$0xff]
          %v2494 = vld [vmem:[#allocation8 + $0x40] sm:$0xff]
          %v2495 = vld [vmem:[#allocation8 + $0x48] sm:$0xff]
          %v2496 = vld [vmem:[#allocation8 + $0x50] sm:$0xff]
          %v2497 = vld [vmem:[#allocation8 + $0x58] sm:$0xff]
          %v2498 = vld [vmem:[#allocation8 + $0x60] sm:$0xff]
          %v2499 = vld [vmem:[#allocation8 + $0x68] sm:$0xff]
          %v2500 = vld [vmem:[#allocation8 + $0x70] sm:$0xff]
          %v2501 = vld [vmem:[#allocation8 + $0x78] sm:$0xff]
          %v2502 = vld [vmem:[#allocation8 + $0x80] sm:$0xff]
          %v2503 = vld [vmem:[#allocation8 + $0x88] sm:$0xff]
          %v2504 = vld [vmem:[#allocation8 + $0x90] sm:$0xff]
          %v2505 = vld [vmem:[#allocation8 + $0x98] sm:$0xff]
          %v2506 = vld [vmem:[#allocation8 + $0xa0] sm:$0xff]
          %v2507 = vld [vmem:[#allocation8 + $0xa8] sm:$0xff]
          %v2508 = vld [vmem:[#allocation8 + $0xb0] sm:$0xff]
          %v2509 = vld [vmem:[#allocation8 + $0xb8] sm:$0xff]
          %v2510 = vld [vmem:[#allocation8 + $0xc0] sm:$0xff]
          %v2511 = vld [vmem:[#allocation8 + $0xc8] sm:$0xff]
          %v2512 = vld [vmem:[#allocation8 + $0xd0] sm:$0xff]
          %v2513 = vld [vmem:[#allocation8 + $0xd8] sm:$0xff]
          %v2514 = vld [vmem:[#allocation8 + $0xe0] sm:$0xff]
          %v2515 = vld [vmem:[#allocation8 + $0xe8] sm:$0xff]
          %v2516 = vld [vmem:[#allocation8 + $0xf0] sm:$0xff]
          %v2517 = vld [vmem:[#allocation8 + $0xf8] sm:$0xff]
          %v2518 = vld [vmem:[#allocation8 + $0x100] sm:$0xff]
          %v2519 = vld [vmem:[#allocation8 + $0x108] sm:$0xff]
          %v2520 = vld [vmem:[#allocation8 + $0x110] sm:$0xff]
          %v2521 = vld [vmem:[#allocation8 + $0x118] sm:$0xff]
          %v2522 = vld [vmem:[#allocation8 + $0x120] sm:$0xff]
          %v2523 = vld [vmem:[#allocation8 + $0x128] sm:$0xff]
          %v2524 = vld [vmem:[#allocation8 + $0x130] sm:$0xff]
          %v2525 = vld [vmem:[#allocation8 + $0x138] sm:$0xff]
          %v2526 = vld [vmem:[#allocation8 + $0x140] sm:$0xff]
          %v2527 = vld [vmem:[#allocation8 + $0x148] sm:$0xff]
          %v2528 = vld [vmem:[#allocation8 + $0x150] sm:$0xff]
          %v2529 = vld [vmem:[#allocation8 + $0x158] sm:$0xff]
          %v2530 = vld [vmem:[#allocation8 + $0x160] sm:$0xff]
          %v2531 = vld [vmem:[#allocation8 + $0x168] sm:$0xff]
          %v2532 = vld [vmem:[#allocation8 + $0x170] sm:$0xff]
          %v2533 = vld [vmem:[#allocation8 + $0x178] sm:$0xff]
          %v2534 = vld [vmem:[#allocation8 + $0x180] sm:$0xff]
          %v2535 = vld [vmem:[#allocation8 + $0x188] sm:$0xff]
          %v2536 = vld [vmem:[#allocation8 + $0x190] sm:$0xff]
          %v2537 = vld [vmem:[#allocation8 + $0x198] sm:$0xff]
          %v2538 = vld [vmem:[#allocation8 + $0x1a0] sm:$0xff]
          %v2539 = vld [vmem:[#allocation8 + $0x1a8] sm:$0xff]
          %v2540 = vld [vmem:[#allocation8 + $0x1b0] sm:$0xff]
          %v2541 = vld [vmem:[#allocation8 + $0x1b8] sm:$0xff]
          %v2542 = vld [vmem:[#allocation8 + $0x1c0] sm:$0xff]
          %v2543 = vld [vmem:[#allocation8 + $0x1c8] sm:$0xff]
          %v2544 = vld [vmem:[#allocation8 + $0x1d0] sm:$0xff]
          %v2545 = vld [vmem:[#allocation8 + $0x1d8] sm:$0xff]
          %v2546 = vld [vmem:[#allocation8 + $0x1e0] sm:$0xff]
          %v2547 = vld [vmem:[#allocation8 + $0x1e8] sm:$0xff]
          %v2548 = vld [vmem:[#allocation8 + $0x1f0] sm:$0xff]
          %v2549 = vld [vmem:[#allocation8 + $0x1f8] sm:$0xff]
          %v2550 = vld [vmem:[#allocation8 + $0x200] sm:$0xff]
          %v2551 = vld [vmem:[#allocation8 + $0x208] sm:$0xff]
          %v2552 = vld [vmem:[#allocation8 + $0x210] sm:$0xff]
          %v2553 = vld [vmem:[#allocation8 + $0x218] sm:$0xff]
          %v2554 = vld [vmem:[#allocation8 + $0x220] sm:$0xff]
          %v2555 = vld [vmem:[#allocation8 + $0x228] sm:$0xff]
          %v2556 = vld [vmem:[#allocation8 + $0x230] sm:$0xff]
          %v2557 = vld [vmem:[#allocation8 + $0x238] sm:$0xff]
          %v2558 = vld [vmem:[#allocation8 + $0x240] sm:$0xff]
          %v2559 = vld [vmem:[#allocation8 + $0x248] sm:$0xff]
          %v2560 = vld [vmem:[#allocation8 + $0x250] sm:$0xff]
          %v2561 = vld [vmem:[#allocation8 + $0x258] sm:$0xff]
          %v2562 = vld [vmem:[#allocation8 + $0x260] sm:$0xff]
          %v2563 = vld [vmem:[#allocation8 + $0x268] sm:$0xff]
          %v2564 = vld [vmem:[#allocation8 + $0x270] sm:$0xff]
          %v2565 = vld [vmem:[#allocation8 + $0x278] sm:$0xff]
          %v2566 = vld [vmem:[#allocation8 + $0x280] sm:$0xff]
          %v2567 = vld [vmem:[#allocation8 + $0x288] sm:$0xff]
          %v2568 = vld [vmem:[#allocation8 + $0x290] sm:$0xff]
          %v2569 = vld [vmem:[#allocation8 + $0x298] sm:$0xff]
          %v2570 = vld [vmem:[#allocation8 + $0x2a0] sm:$0xff]
          %v2571 = vld [vmem:[#allocation8 + $0x2a8] sm:$0xff]
          %v2572 = vld [vmem:[#allocation8 + $0x2b0] sm:$0xff]
          %v2573 = vld [vmem:[#allocation8 + $0x2b8] sm:$0xff]
          %v2574 = vld [vmem:[#allocation8 + $0x2c0] sm:$0xff]
          %v2575 = vld [vmem:[#allocation8 + $0x2c8] sm:$0xff]
          %v2576 = vld [vmem:[#allocation8 + $0x2d0] sm:$0xff]
          %v2577 = vld [vmem:[#allocation8 + $0x2d8] sm:$0xff]
          %v2578 = vld [vmem:[#allocation8 + $0x2e0] sm:$0xff]
          %v2579 = vld [vmem:[#allocation8 + $0x2e8] sm:$0xff]
          %v2580 = vld [vmem:[#allocation8 + $0x2f0] sm:$0xff]
          %v2581 = vld [vmem:[#allocation8 + $0x2f8] sm:$0xff]
          %v2582 = vld [vmem:[#allocation8 + $0x300] sm:$0xff]
          %v2583 = vld [vmem:[#allocation8 + $0x308] sm:$0xff]
          %v2584 = vld [vmem:[#allocation8 + $0x310] sm:$0xff]
          %v2585 = vld [vmem:[#allocation8 + $0x318] sm:$0xff]
          %v2586 = vld [vmem:[#allocation8 + $0x320] sm:$0xff]
          %v2587 = vld [vmem:[#allocation8 + $0x328] sm:$0xff]
          %v2588 = vld [vmem:[#allocation8 + $0x330] sm:$0xff]
          %v2589 = vld [vmem:[#allocation8 + $0x338] sm:$0xff]
          %v2590 = vld [vmem:[#allocation8 + $0x340] sm:$0xff]
          %v2591 = vld [vmem:[#allocation8 + $0x348] sm:$0xff]
          %v2592 = vld [vmem:[#allocation8 + $0x350] sm:$0xff]
          %v2593 = vld [vmem:[#allocation8 + $0x358] sm:$0xff]
          %v2594 = vld [vmem:[#allocation8 + $0x360] sm:$0xff]
          %v2595 = vld [vmem:[#allocation8 + $0x368] sm:$0xff]
          %v2596 = vld [vmem:[#allocation8 + $0x370] sm:$0xff]
          %v2597 = vld [vmem:[#allocation8 + $0x378] sm:$0xff]
          %v2598 = vld [vmem:[#allocation8 + $0x380] sm:$0xff]
          %v2599 = vld [vmem:[#allocation8 + $0x388] sm:$0xff]
          %v2600 = vld [vmem:[#allocation8 + $0x390] sm:$0xff]
          %v2601 = vld [vmem:[#allocation8 + $0x398] sm:$0xff]
          %v2602 = vld [vmem:[#allocation8 + $0x3a0] sm:$0xff]
          %v2603 = vld [vmem:[#allocation8 + $0x3a8] sm:$0xff]
          %v2604 = vld [vmem:[#allocation8 + $0x3b0] sm:$0xff]
          %v2605 = vld [vmem:[#allocation8 + $0x3b8] sm:$0xff]
          %v2606 = vld [vmem:[#allocation8 + $0x3c0] sm:$0xff]
          %v2607 = vld [vmem:[#allocation8 + $0x3c8] sm:$0xff]
          %v2608 = vld [vmem:[#allocation8 + $0x3d0] sm:$0xff]
          %v2609 = vld [vmem:[#allocation8 + $0x3d8] sm:$0xff]
          %v2610 = vld [vmem:[#allocation8 + $0x3e0] sm:$0xff]
          %v2611 = vld [vmem:[#allocation8 + $0x3e8] sm:$0xff]
          %v2612 = vld [vmem:[#allocation8 + $0x3f0] sm:$0xff]
          %v2613 = vld [vmem:[#allocation8 + $0x3f8] sm:$0xff]
          %s2614 = scalar_lea.vmem [#allocation14], 1
          %v2615 = vld [vmem:[%s2614] ss:$4 sm:$0xf]
          %v2617 = vperm.slane %v2615, 0
          %v2618 = vperm.slane %v2615, 1
          %v2619 = vperm.slane %v2615, 2
          %v2620 = vperm.slane %v2615, 3
          %v2753 = vunpack.c.l.b16 %v2486
          %v2754 = vunpack.c.h.b16 %v2486
          %v2755 = vunpack.c.l.b16 %v2487
          %v2756 = vunpack.c.h.b16 %v2487
          %v2757 = vunpack.c.l.b16 %v2488
          %v2758 = vunpack.c.h.b16 %v2488
          %v2759 = vunpack.c.l.b16 %v2489
          %v2760 = vunpack.c.h.b16 %v2489
          %v2761 = vunpack.c.l.b16 %v2490
          %v2762 = vunpack.c.h.b16 %v2490
          %v2763 = vunpack.c.l.b16 %v2491
          %v2764 = vunpack.c.h.b16 %v2491
          %v2765 = vunpack.c.l.b16 %v2492
          %v2766 = vunpack.c.h.b16 %v2492
          %v2767 = vunpack.c.l.b16 %v2493
          %v2768 = vunpack.c.h.b16 %v2493
          %v2769 = vunpack.c.l.b16 %v2494
          %v2770 = vunpack.c.h.b16 %v2494
          %v2771 = vunpack.c.l.b16 %v2495
          %v2772 = vunpack.c.h.b16 %v2495
          %v2773 = vunpack.c.l.b16 %v2496
          %v2774 = vunpack.c.h.b16 %v2496
          %v2775 = vunpack.c.l.b16 %v2497
          %v2776 = vunpack.c.h.b16 %v2497
          %v2777 = vunpack.c.l.b16 %v2498
          %v2778 = vunpack.c.h.b16 %v2498
          %v2779 = vunpack.c.l.b16 %v2499
          %v2780 = vunpack.c.h.b16 %v2499
          %v2781 = vunpack.c.l.b16 %v2500
          %v2782 = vunpack.c.h.b16 %v2500
          %v2783 = vunpack.c.l.b16 %v2501
          %v2784 = vunpack.c.h.b16 %v2501
          %v2785 = vunpack.c.l.b16 %v2502
          %v2786 = vunpack.c.h.b16 %v2502
          %v2787 = vunpack.c.l.b16 %v2503
          %v2788 = vunpack.c.h.b16 %v2503
          %v2789 = vunpack.c.l.b16 %v2504
          %v2790 = vunpack.c.h.b16 %v2504
          %v2791 = vunpack.c.l.b16 %v2505
          %v2792 = vunpack.c.h.b16 %v2505
          %v2793 = vunpack.c.l.b16 %v2506
          %v2794 = vunpack.c.h.b16 %v2506
          %v2795 = vunpack.c.l.b16 %v2507
          %v2796 = vunpack.c.h.b16 %v2507
          %v2797 = vunpack.c.l.b16 %v2508
          %v2798 = vunpack.c.h.b16 %v2508
          %v2799 = vunpack.c.l.b16 %v2509
          %v2800 = vunpack.c.h.b16 %v2509
          %v2801 = vunpack.c.l.b16 %v2510
          %v2802 = vunpack.c.h.b16 %v2510
          %v2803 = vunpack.c.l.b16 %v2511
          %v2804 = vunpack.c.h.b16 %v2511
          %v2805 = vunpack.c.l.b16 %v2512
          %v2806 = vunpack.c.h.b16 %v2512
          %v2807 = vunpack.c.l.b16 %v2513
          %v2808 = vunpack.c.h.b16 %v2513
          %v2809 = vunpack.c.l.b16 %v2514
          %v2810 = vunpack.c.h.b16 %v2514
          %v2811 = vunpack.c.l.b16 %v2515
          %v2812 = vunpack.c.h.b16 %v2515
          %v2813 = vunpack.c.l.b16 %v2516
          %v2814 = vunpack.c.h.b16 %v2516
          %v2815 = vunpack.c.l.b16 %v2517
          %v2816 = vunpack.c.h.b16 %v2517
          %v2817 = vunpack.c.l.b16 %v2518
          %v2818 = vunpack.c.h.b16 %v2518
          %v2819 = vunpack.c.l.b16 %v2519
          %v2820 = vunpack.c.h.b16 %v2519
          %v2821 = vunpack.c.l.b16 %v2520
          %v2822 = vunpack.c.h.b16 %v2520
          %v2823 = vunpack.c.l.b16 %v2521
          %v2824 = vunpack.c.h.b16 %v2521
          %v2825 = vunpack.c.l.b16 %v2522
          %v2826 = vunpack.c.h.b16 %v2522
          %v2827 = vunpack.c.l.b16 %v2523
          %v2828 = vunpack.c.h.b16 %v2523
          %v2829 = vunpack.c.l.b16 %v2524
          %v2830 = vunpack.c.h.b16 %v2524
          %v2831 = vunpack.c.l.b16 %v2525
          %v2832 = vunpack.c.h.b16 %v2525
          %v2833 = vunpack.c.l.b16 %v2526
          %v2834 = vunpack.c.h.b16 %v2526
          %v2835 = vunpack.c.l.b16 %v2527
          %v2836 = vunpack.c.h.b16 %v2527
          %v2837 = vunpack.c.l.b16 %v2528
          %v2838 = vunpack.c.h.b16 %v2528
          %v2839 = vunpack.c.l.b16 %v2529
          %v2840 = vunpack.c.h.b16 %v2529
          %v2841 = vunpack.c.l.b16 %v2530
          %v2842 = vunpack.c.h.b16 %v2530
          %v2843 = vunpack.c.l.b16 %v2531
          %v2844 = vunpack.c.h.b16 %v2531
          %v2845 = vunpack.c.l.b16 %v2532
          %v2846 = vunpack.c.h.b16 %v2532
          %v2847 = vunpack.c.l.b16 %v2533
          %v2848 = vunpack.c.h.b16 %v2533
          %v2849 = vunpack.c.l.b16 %v2534
          %v2850 = vunpack.c.h.b16 %v2534
          %v2851 = vunpack.c.l.b16 %v2535
          %v2852 = vunpack.c.h.b16 %v2535
          %v2853 = vunpack.c.l.b16 %v2536
          %v2854 = vunpack.c.h.b16 %v2536
          %v2855 = vunpack.c.l.b16 %v2537
          %v2856 = vunpack.c.h.b16 %v2537
          %v2857 = vunpack.c.l.b16 %v2538
          %v2858 = vunpack.c.h.b16 %v2538
          %v2859 = vunpack.c.l.b16 %v2539
          %v2860 = vunpack.c.h.b16 %v2539
          %v2861 = vunpack.c.l.b16 %v2540
          %v2862 = vunpack.c.h.b16 %v2540
          %v2863 = vunpack.c.l.b16 %v2541
          %v2864 = vunpack.c.h.b16 %v2541
          %v2865 = vunpack.c.l.b16 %v2542
          %v2866 = vunpack.c.h.b16 %v2542
          %v2867 = vunpack.c.l.b16 %v2543
          %v2868 = vunpack.c.h.b16 %v2543
          %v2869 = vunpack.c.l.b16 %v2544
          %v2870 = vunpack.c.h.b16 %v2544
          %v2871 = vunpack.c.l.b16 %v2545
          %v2872 = vunpack.c.h.b16 %v2545
          %v2873 = vunpack.c.l.b16 %v2546
          %v2874 = vunpack.c.h.b16 %v2546
          %v2875 = vunpack.c.l.b16 %v2547
          %v2876 = vunpack.c.h.b16 %v2547
          %v2877 = vunpack.c.l.b16 %v2548
          %v2878 = vunpack.c.h.b16 %v2548
          %v2879 = vunpack.c.l.b16 %v2549
          %v2880 = vunpack.c.h.b16 %v2549
          %v2881 = vunpack.c.l.b16 %v2550
          %v2882 = vunpack.c.h.b16 %v2550
          %v2883 = vunpack.c.l.b16 %v2551
          %v2884 = vunpack.c.h.b16 %v2551
          %v2885 = vunpack.c.l.b16 %v2552
          %v2886 = vunpack.c.h.b16 %v2552
          %v2887 = vunpack.c.l.b16 %v2553
          %v2888 = vunpack.c.h.b16 %v2553
          %v2889 = vunpack.c.l.b16 %v2554
          %v2890 = vunpack.c.h.b16 %v2554
          %v2891 = vunpack.c.l.b16 %v2555
          %v2892 = vunpack.c.h.b16 %v2555
          %v2893 = vunpack.c.l.b16 %v2556
          %v2894 = vunpack.c.h.b16 %v2556
          %v2895 = vunpack.c.l.b16 %v2557
          %v2896 = vunpack.c.h.b16 %v2557
          %v2897 = vunpack.c.l.b16 %v2558
          %v2898 = vunpack.c.h.b16 %v2558
          %v2899 = vunpack.c.l.b16 %v2559
          %v2900 = vunpack.c.h.b16 %v2559
          %v2901 = vunpack.c.l.b16 %v2560
          %v2902 = vunpack.c.h.b16 %v2560
          %v2903 = vunpack.c.l.b16 %v2561
          %v2904 = vunpack.c.h.b16 %v2561
          %v2905 = vunpack.c.l.b16 %v2562
          %v2906 = vunpack.c.h.b16 %v2562
          %v2907 = vunpack.c.l.b16 %v2563
          %v2908 = vunpack.c.h.b16 %v2563
          %v2909 = vunpack.c.l.b16 %v2564
          %v2910 = vunpack.c.h.b16 %v2564
          %v2911 = vunpack.c.l.b16 %v2565
          %v2912 = vunpack.c.h.b16 %v2565
          %v2913 = vunpack.c.l.b16 %v2566
          %v2914 = vunpack.c.h.b16 %v2566
          %v2915 = vunpack.c.l.b16 %v2567
          %v2916 = vunpack.c.h.b16 %v2567
          %v2917 = vunpack.c.l.b16 %v2568
          %v2918 = vunpack.c.h.b16 %v2568
          %v2919 = vunpack.c.l.b16 %v2569
          %v2920 = vunpack.c.h.b16 %v2569
          %v2921 = vunpack.c.l.b16 %v2570
          %v2922 = vunpack.c.h.b16 %v2570
          %v2923 = vunpack.c.l.b16 %v2571
          %v2924 = vunpack.c.h.b16 %v2571
          %v2925 = vunpack.c.l.b16 %v2572
          %v2926 = vunpack.c.h.b16 %v2572
          %v2927 = vunpack.c.l.b16 %v2573
          %v2928 = vunpack.c.h.b16 %v2573
          %v2929 = vunpack.c.l.b16 %v2574
          %v2930 = vunpack.c.h.b16 %v2574
          %v2931 = vunpack.c.l.b16 %v2575
          %v2932 = vunpack.c.h.b16 %v2575
          %v2933 = vunpack.c.l.b16 %v2576
          %v2934 = vunpack.c.h.b16 %v2576
          %v2935 = vunpack.c.l.b16 %v2577
          %v2936 = vunpack.c.h.b16 %v2577
          %v2937 = vunpack.c.l.b16 %v2578
          %v2938 = vunpack.c.h.b16 %v2578
          %v2939 = vunpack.c.l.b16 %v2579
          %v2940 = vunpack.c.h.b16 %v2579
          %v2941 = vunpack.c.l.b16 %v2580
          %v2942 = vunpack.c.h.b16 %v2580
          %v2943 = vunpack.c.l.b16 %v2581
          %v2944 = vunpack.c.h.b16 %v2581
          %v2945 = vunpack.c.l.b16 %v2582
          %v2946 = vunpack.c.h.b16 %v2582
          %v2947 = vunpack.c.l.b16 %v2583
          %v2948 = vunpack.c.h.b16 %v2583
          %v2949 = vunpack.c.l.b16 %v2584
          %v2950 = vunpack.c.h.b16 %v2584
          %v2951 = vunpack.c.l.b16 %v2585
          %v2952 = vunpack.c.h.b16 %v2585
          %v2953 = vunpack.c.l.b16 %v2586
          %v2954 = vunpack.c.h.b16 %v2586
          %v2955 = vunpack.c.l.b16 %v2587
          %v2956 = vunpack.c.h.b16 %v2587
          %v2957 = vunpack.c.l.b16 %v2588
          %v2958 = vunpack.c.h.b16 %v2588
          %v2959 = vunpack.c.l.b16 %v2589
          %v2960 = vunpack.c.h.b16 %v2589
          %v2961 = vunpack.c.l.b16 %v2590
          %v2962 = vunpack.c.h.b16 %v2590
          %v2963 = vunpack.c.l.b16 %v2591
          %v2964 = vunpack.c.h.b16 %v2591
          %v2965 = vunpack.c.l.b16 %v2592
          %v2966 = vunpack.c.h.b16 %v2592
          %v2967 = vunpack.c.l.b16 %v2593
          %v2968 = vunpack.c.h.b16 %v2593
          %v2969 = vunpack.c.l.b16 %v2594
          %v2970 = vunpack.c.h.b16 %v2594
          %v2971 = vunpack.c.l.b16 %v2595
          %v2972 = vunpack.c.h.b16 %v2595
          %v2973 = vunpack.c.l.b16 %v2596
          %v2974 = vunpack.c.h.b16 %v2596
          %v2975 = vunpack.c.l.b16 %v2597
          %v2976 = vunpack.c.h.b16 %v2597
          %v2977 = vunpack.c.l.b16 %v2598
          %v2978 = vunpack.c.h.b16 %v2598
          %v2979 = vunpack.c.l.b16 %v2599
          %v2980 = vunpack.c.h.b16 %v2599
          %v2981 = vunpack.c.l.b16 %v2600
          %v2982 = vunpack.c.h.b16 %v2600
          %v2983 = vunpack.c.l.b16 %v2601
          %v2984 = vunpack.c.h.b16 %v2601
          %v2985 = vunpack.c.l.b16 %v2602
          %v2986 = vunpack.c.h.b16 %v2602
          %v2987 = vunpack.c.l.b16 %v2603
          %v2988 = vunpack.c.h.b16 %v2603
          %v2989 = vunpack.c.l.b16 %v2604
          %v2990 = vunpack.c.h.b16 %v2604
          %v2991 = vunpack.c.l.b16 %v2605
          %v2992 = vunpack.c.h.b16 %v2605
          %v2993 = vunpack.c.l.b16 %v2606
          %v2994 = vunpack.c.h.b16 %v2606
          %v2995 = vunpack.c.l.b16 %v2607
          %v2996 = vunpack.c.h.b16 %v2607
          %v2997 = vunpack.c.l.b16 %v2608
          %v2998 = vunpack.c.h.b16 %v2608
          %v2999 = vunpack.c.l.b16 %v2609
          %v3000 = vunpack.c.h.b16 %v2609
          %v3001 = vunpack.c.l.b16 %v2610
          %v3002 = vunpack.c.h.b16 %v2610
          %v3003 = vunpack.c.l.b16 %v2611
          %v3004 = vunpack.c.h.b16 %v2611
          %v3005 = vunpack.c.l.b16 %v2612
          %v3006 = vunpack.c.h.b16 %v2612
          %v3007 = vunpack.c.l.b16 %v2613
          %v3008 = vunpack.c.h.b16 %v2613
          %v3009 = vpack.c.b16 %v2757, %v2753
          %v3010 = vpack.c.b16 %v2758, %v2754
          %v3011 = vpack.c.b16 %v2759, %v2755
          %v3012 = vpack.c.b16 %v2760, %v2756
          %v3013 = vpack.c.b16 %v2765, %v2761
          %v3014 = vpack.c.b16 %v2766, %v2762
          %v3015 = vpack.c.b16 %v2767, %v2763
          %v3016 = vpack.c.b16 %v2768, %v2764
          %v3017 = vpack.c.b16 %v2773, %v2769
          %v3018 = vpack.c.b16 %v2774, %v2770
          %v3019 = vpack.c.b16 %v2775, %v2771
          %v3020 = vpack.c.b16 %v2776, %v2772
          %v3021 = vpack.c.b16 %v2781, %v2777
          %v3022 = vpack.c.b16 %v2782, %v2778
          %v3023 = vpack.c.b16 %v2783, %v2779
          %v3024 = vpack.c.b16 %v2784, %v2780
          %v3025 = vpack.c.b16 %v2789, %v2785
          %v3026 = vpack.c.b16 %v2790, %v2786
          %v3027 = vpack.c.b16 %v2791, %v2787
          %v3028 = vpack.c.b16 %v2792, %v2788
          %v3029 = vpack.c.b16 %v2797, %v2793
          %v3030 = vpack.c.b16 %v2798, %v2794
          %v3031 = vpack.c.b16 %v2799, %v2795
          %v3032 = vpack.c.b16 %v2800, %v2796
          %v3033 = vpack.c.b16 %v2805, %v2801
          %v3034 = vpack.c.b16 %v2806, %v2802
          %v3035 = vpack.c.b16 %v2807, %v2803
          %v3036 = vpack.c.b16 %v2808, %v2804
          %v3037 = vpack.c.b16 %v2813, %v2809
          %v3038 = vpack.c.b16 %v2814, %v2810
          %v3039 = vpack.c.b16 %v2815, %v2811
          %v3040 = vpack.c.b16 %v2816, %v2812
          %v3041 = vpack.c.b16 %v2821, %v2817
          %v3042 = vpack.c.b16 %v2822, %v2818
          %v3043 = vpack.c.b16 %v2823, %v2819
          %v3044 = vpack.c.b16 %v2824, %v2820
          %v3045 = vpack.c.b16 %v2829, %v2825
          %v3046 = vpack.c.b16 %v2830, %v2826
          %v3047 = vpack.c.b16 %v2831, %v2827
          %v3048 = vpack.c.b16 %v2832, %v2828
          %v3049 = vpack.c.b16 %v2837, %v2833
          %v3050 = vpack.c.b16 %v2838, %v2834
          %v3051 = vpack.c.b16 %v2839, %v2835
          %v3052 = vpack.c.b16 %v2840, %v2836
          %v3053 = vpack.c.b16 %v2845, %v2841
          %v3054 = vpack.c.b16 %v2846, %v2842
          %v3055 = vpack.c.b16 %v2847, %v2843
          %v3056 = vpack.c.b16 %v2848, %v2844
          %v3057 = vpack.c.b16 %v2853, %v2849
          %v3058 = vpack.c.b16 %v2854, %v2850
          %v3059 = vpack.c.b16 %v2855, %v2851
          %v3060 = vpack.c.b16 %v2856, %v2852
          %v3061 = vpack.c.b16 %v2861, %v2857
          %v3062 = vpack.c.b16 %v2862, %v2858
          %v3063 = vpack.c.b16 %v2863, %v2859
          %v3064 = vpack.c.b16 %v2864, %v2860
          %v3065 = vpack.c.b16 %v2869, %v2865
          %v3066 = vpack.c.b16 %v2870, %v2866
          %v3067 = vpack.c.b16 %v2871, %v2867
          %v3068 = vpack.c.b16 %v2872, %v2868
          %v3069 = vpack.c.b16 %v2877, %v2873
          %v3070 = vpack.c.b16 %v2878, %v2874
          %v3071 = vpack.c.b16 %v2879, %v2875
          %v3072 = vpack.c.b16 %v2880, %v2876
          %v3073 = vpack.c.b16 %v2885, %v2881
          %v3074 = vpack.c.b16 %v2886, %v2882
          %v3075 = vpack.c.b16 %v2887, %v2883
          %v3076 = vpack.c.b16 %v2888, %v2884
          %v3077 = vpack.c.b16 %v2893, %v2889
          %v3078 = vpack.c.b16 %v2894, %v2890
          %v3079 = vpack.c.b16 %v2895, %v2891
          %v3080 = vpack.c.b16 %v2896, %v2892
          %v3081 = vpack.c.b16 %v2901, %v2897
          %v3082 = vpack.c.b16 %v2902, %v2898
          %v3083 = vpack.c.b16 %v2903, %v2899
          %v3084 = vpack.c.b16 %v2904, %v2900
          %v3085 = vpack.c.b16 %v2909, %v2905
          %v3086 = vpack.c.b16 %v2910, %v2906
          %v3087 = vpack.c.b16 %v2911, %v2907
          %v3088 = vpack.c.b16 %v2912, %v2908
          %v3089 = vpack.c.b16 %v2917, %v2913
          %v3090 = vpack.c.b16 %v2918, %v2914
          %v3091 = vpack.c.b16 %v2919, %v2915
          %v3092 = vpack.c.b16 %v2920, %v2916
          %v3093 = vpack.c.b16 %v2925, %v2921
          %v3094 = vpack.c.b16 %v2926, %v2922
          %v3095 = vpack.c.b16 %v2927, %v2923
          %v3096 = vpack.c.b16 %v2928, %v2924
          %v3097 = vpack.c.b16 %v2933, %v2929
          %v3098 = vpack.c.b16 %v2934, %v2930
          %v3099 = vpack.c.b16 %v2935, %v2931
          %v3100 = vpack.c.b16 %v2936, %v2932
          %v3101 = vpack.c.b16 %v2941, %v2937
          %v3102 = vpack.c.b16 %v2942, %v2938
          %v3103 = vpack.c.b16 %v2943, %v2939
          %v3104 = vpack.c.b16 %v2944, %v2940
          %v3105 = vpack.c.b16 %v2949, %v2945
          %v3106 = vpack.c.b16 %v2950, %v2946
          %v3107 = vpack.c.b16 %v2951, %v2947
          %v3108 = vpack.c.b16 %v2952, %v2948
          %v3109 = vpack.c.b16 %v2957, %v2953
          %v3110 = vpack.c.b16 %v2958, %v2954
          %v3111 = vpack.c.b16 %v2959, %v2955
          %v3112 = vpack.c.b16 %v2960, %v2956
          %v3113 = vpack.c.b16 %v2965, %v2961
          %v3114 = vpack.c.b16 %v2966, %v2962
          %v3115 = vpack.c.b16 %v2967, %v2963
          %v3116 = vpack.c.b16 %v2968, %v2964
          %v3117 = vpack.c.b16 %v2973, %v2969
          %v3118 = vpack.c.b16 %v2974, %v2970
          %v3119 = vpack.c.b16 %v2975, %v2971
          %v3120 = vpack.c.b16 %v2976, %v2972
          %v3121 = vpack.c.b16 %v2981, %v2977
          %v3122 = vpack.c.b16 %v2982, %v2978
          %v3123 = vpack.c.b16 %v2983, %v2979
          %v3124 = vpack.c.b16 %v2984, %v2980
          %v3125 = vpack.c.b16 %v2989, %v2985
          %v3126 = vpack.c.b16 %v2990, %v2986
          %v3127 = vpack.c.b16 %v2991, %v2987
          %v3128 = vpack.c.b16 %v2992, %v2988
          %v3129 = vpack.c.b16 %v2997, %v2993
          %v3130 = vpack.c.b16 %v2998, %v2994
          %v3131 = vpack.c.b16 %v2999, %v2995
          %v3132 = vpack.c.b16 %v3000, %v2996
          %v3133 = vpack.c.b16 %v3005, %v3001
          %v3134 = vpack.c.b16 %v3006, %v3002
          %v3135 = vpack.c.b16 %v3007, %v3003
          %v3136 = vpack.c.b16 %v3008, %v3004
          %3265 = vmatpush.bf16.msra.mxu0 %v3037
          %3266 = vmatpush.bf16.msra.mxu0 %v3033
          %3267 = vmatpush.bf16.msra.mxu0 %v3029
          %3268 = vmatpush.bf16.msra.mxu0 %v3025
          %3269 = vmatpush.bf16.msra.mxu0 %v3021
          %3270 = vmatpush.bf16.msra.mxu0 %v3017
          %3271 = vmatpush.bf16.msra.mxu0 %v3013
          %3272 = vmatpush.bf16.msra.mxu0 %v3009
          %3273 = vmatmul.bf16.gmra.mxu0 %v2482
          %v3274 = vpop.f32.mrf.mxu0
          %v3275 = vadd.f32 %v2617, %v3274
          %v3276 = vpop.f32.mrf.mxu0
          %3277 = vdwg.mxu0
          %3278 = vmatpush.bf16.msra.mxu0 %v3069
          %3279 = vmatpush.bf16.msra.mxu0 %v3065
          %3280 = vmatpush.bf16.msra.mxu0 %v3061
          %3281 = vmatpush.bf16.msra.mxu0 %v3057
          %3282 = vmatpush.bf16.msra.mxu0 %v3053
          %3283 = vmatpush.bf16.msra.mxu0 %v3049
          %3284 = vmatpush.bf16.msra.mxu0 %v3045
          %3285 = vmatpush.bf16.msra.mxu0 %v3041
          %3286 = vmatmul.bf16.gmra.mxu0 %v2483
          %v3287 = vpop.f32.mrf.mxu0
          %v3288 = vadd.f32 %v3275, %v3287
          %v3289 = vpop.f32.mrf.mxu0
          %3290 = vdwg.mxu0
          %3291 = vmatpush.bf16.msra.mxu0 %v3101
          %3292 = vmatpush.bf16.msra.mxu0 %v3097
          %3293 = vmatpush.bf16.msra.mxu0 %v3093
          %3294 = vmatpush.bf16.msra.mxu0 %v3089
          %3295 = vmatpush.bf16.msra.mxu0 %v3085
          %3296 = vmatpush.bf16.msra.mxu0 %v3081
          %3297 = vmatpush.bf16.msra.mxu0 %v3077
          %3298 = vmatpush.bf16.msra.mxu0 %v3073
          %3299 = vmatmul.bf16.gmra.mxu0 %v2484
          %v3300 = vpop.f32.mrf.mxu0
          %v3301 = vadd.f32 %v3288, %v3300
          %v3302 = vpop.f32.mrf.mxu0
          %3303 = vdwg.mxu0
          %3304 = vmatpush.bf16.msra.mxu0 %v3133
          %3305 = vmatpush.bf16.msra.mxu0 %v3129
          %3306 = vmatpush.bf16.msra.mxu0 %v3125
          %3307 = vmatpush.bf16.msra.mxu0 %v3121
          %3308 = vmatpush.bf16.msra.mxu0 %v3117
          %3309 = vmatpush.bf16.msra.mxu0 %v3113
          %3310 = vmatpush.bf16.msra.mxu0 %v3109
          %3311 = vmatpush.bf16.msra.mxu0 %v3105
          %3312 = vmatmul.bf16.gmra.mxu0 %v2485
          %v3313 = vpop.f32.mrf.mxu0
          %v3314 = vadd.f32 %v3301, %v3313
          %v3315 = vpop.f32.mrf.mxu0
          %3316 = vdwg.mxu0
          %3317 = vmatpush.bf16.msra.mxu0 %v3038
          %3318 = vmatpush.bf16.msra.mxu0 %v3034
          %3319 = vmatpush.bf16.msra.mxu0 %v3030
          %3320 = vmatpush.bf16.msra.mxu0 %v3026
          %3321 = vmatpush.bf16.msra.mxu0 %v3022
          %3322 = vmatpush.bf16.msra.mxu0 %v3018
          %3323 = vmatpush.bf16.msra.mxu0 %v3014
          %3324 = vmatpush.bf16.msra.mxu0 %v3010
          %3325 = vmatmul.bf16.gmra.mxu0 %v2482
          %v3326 = vpop.f32.mrf.mxu0
          %v3327 = vadd.f32 %v2618, %v3326
          %v3328 = vpop.f32.mrf.mxu0
          %3329 = vdwg.mxu0
          %3330 = vmatpush.bf16.msra.mxu0 %v3070
          %3331 = vmatpush.bf16.msra.mxu0 %v3066
          %3332 = vmatpush.bf16.msra.mxu0 %v3062
          %3333 = vmatpush.bf16.msra.mxu0 %v3058
          %3334 = vmatpush.bf16.msra.mxu0 %v3054
          %3335 = vmatpush.bf16.msra.mxu0 %v3050
          %3336 = vmatpush.bf16.msra.mxu0 %v3046
          %3337 = vmatpush.bf16.msra.mxu0 %v3042
          %3338 = vmatmul.bf16.gmra.mxu0 %v2483
          %v3339 = vpop.f32.mrf.mxu0
          %v3340 = vadd.f32 %v3327, %v3339
          %v3341 = vpop.f32.mrf.mxu0
          %3342 = vdwg.mxu0
          %3343 = vmatpush.bf16.msra.mxu0 %v3102
          %3344 = vmatpush.bf16.msra.mxu0 %v3098
          %3345 = vmatpush.bf16.msra.mxu0 %v3094
          %3346 = vmatpush.bf16.msra.mxu0 %v3090
          %3347 = vmatpush.bf16.msra.mxu0 %v3086
          %3348 = vmatpush.bf16.msra.mxu0 %v3082
          %3349 = vmatpush.bf16.msra.mxu0 %v3078
          %3350 = vmatpush.bf16.msra.mxu0 %v3074
          %3351 = vmatmul.bf16.gmra.mxu0 %v2484
          %v3352 = vpop.f32.mrf.mxu0
          %v3353 = vadd.f32 %v3340, %v3352
          %v3354 = vpop.f32.mrf.mxu0
          %3355 = vdwg.mxu0
          %3356 = vmatpush.bf16.msra.mxu0 %v3134
          %3357 = vmatpush.bf16.msra.mxu0 %v3130
          %3358 = vmatpush.bf16.msra.mxu0 %v3126
          %3359 = vmatpush.bf16.msra.mxu0 %v3122
          %3360 = vmatpush.bf16.msra.mxu0 %v3118
          %3361 = vmatpush.bf16.msra.mxu0 %v3114
          %3362 = vmatpush.bf16.msra.mxu0 %v3110
          %3363 = vmatpush.bf16.msra.mxu0 %v3106
          %3364 = vmatmul.bf16.gmra.mxu0 %v2485
          %v3365 = vpop.f32.mrf.mxu0
          %v3366 = vadd.f32 %v3353, %v3365
          %v3367 = vpop.f32.mrf.mxu0
          %3368 = vdwg.mxu0
          %3369 = vmatpush.bf16.msra.mxu0 %v3039
          %3370 = vmatpush.bf16.msra.mxu0 %v3035
          %3371 = vmatpush.bf16.msra.mxu0 %v3031
          %3372 = vmatpush.bf16.msra.mxu0 %v3027
          %3373 = vmatpush.bf16.msra.mxu0 %v3023
          %3374 = vmatpush.bf16.msra.mxu0 %v3019
          %3375 = vmatpush.bf16.msra.mxu0 %v3015
          %3376 = vmatpush.bf16.msra.mxu0 %v3011
          %3377 = vmatmul.bf16.gmra.mxu0 %v2482
          %v3378 = vpop.f32.mrf.mxu0
          %v3379 = vadd.f32 %v2619, %v3378
          %v3380 = vpop.f32.mrf.mxu0
          %3381 = vdwg.mxu0
          %3382 = vmatpush.bf16.msra.mxu0 %v3071
          %3383 = vmatpush.bf16.msra.mxu0 %v3067
          %3384 = vmatpush.bf16.msra.mxu0 %v3063
          %3385 = vmatpush.bf16.msra.mxu0 %v3059
          %3386 = vmatpush.bf16.msra.mxu0 %v3055
          %3387 = vmatpush.bf16.msra.mxu0 %v3051
          %3388 = vmatpush.bf16.msra.mxu0 %v3047
          %3389 = vmatpush.bf16.msra.mxu0 %v3043
          %3390 = vmatmul.bf16.gmra.mxu0 %v2483
          %v3391 = vpop.f32.mrf.mxu0
          %v3392 = vadd.f32 %v3379, %v3391
          %v3393 = vpop.f32.mrf.mxu0
          %3394 = vdwg.mxu0
          %3395 = vmatpush.bf16.msra.mxu0 %v3103
          %3396 = vmatpush.bf16.msra.mxu0 %v3099
          %3397 = vmatpush.bf16.msra.mxu0 %v3095
          %3398 = vmatpush.bf16.msra.mxu0 %v3091
          %3399 = vmatpush.bf16.msra.mxu0 %v3087
          %3400 = vmatpush.bf16.msra.mxu0 %v3083
          %3401 = vmatpush.bf16.msra.mxu0 %v3079
          %3402 = vmatpush.bf16.msra.mxu0 %v3075
          %3403 = vmatmul.bf16.gmra.mxu0 %v2484
          %v3404 = vpop.f32.mrf.mxu0
          %v3405 = vadd.f32 %v3392, %v3404
          %v3406 = vpop.f32.mrf.mxu0
          %3407 = vdwg.mxu0
          %3408 = vmatpush.bf16.msra.mxu0 %v3135
          %3409 = vmatpush.bf16.msra.mxu0 %v3131
          %3410 = vmatpush.bf16.msra.mxu0 %v3127
          %3411 = vmatpush.bf16.msra.mxu0 %v3123
          %3412 = vmatpush.bf16.msra.mxu0 %v3119
          %3413 = vmatpush.bf16.msra.mxu0 %v3115
          %3414 = vmatpush.bf16.msra.mxu0 %v3111
          %3415 = vmatpush.bf16.msra.mxu0 %v3107
          %3416 = vmatmul.bf16.gmra.mxu0 %v2485
          %v3417 = vpop.f32.mrf.mxu0
          %v3418 = vadd.f32 %v3405, %v3417
          %v3419 = vpop.f32.mrf.mxu0
          %3420 = vdwg.mxu0
          %3421 = vmatpush.bf16.msra.mxu0 %v3040
          %3422 = vmatpush.bf16.msra.mxu0 %v3036
          %3423 = vmatpush.bf16.msra.mxu0 %v3032
          %3424 = vmatpush.bf16.msra.mxu0 %v3028
          %3425 = vmatpush.bf16.msra.mxu0 %v3024
          %3426 = vmatpush.bf16.msra.mxu0 %v3020
          %3427 = vmatpush.bf16.msra.mxu0 %v3016
          %3428 = vmatpush.bf16.msra.mxu0 %v3012
          %3429 = vmatmul.bf16.gmra.mxu0 %v2482
          %v3430 = vpop.f32.mrf.mxu0
          %v3431 = vadd.f32 %v2620, %v3430
          %v3432 = vpop.f32.mrf.mxu0
          %3433 = vdwg.mxu0
          %3434 = vmatpush.bf16.msra.mxu0 %v3072
          %3435 = vmatpush.bf16.msra.mxu0 %v3068
          %3436 = vmatpush.bf16.msra.mxu0 %v3064
          %3437 = vmatpush.bf16.msra.mxu0 %v3060
          %3438 = vmatpush.bf16.msra.mxu0 %v3056
          %3439 = vmatpush.bf16.msra.mxu0 %v3052
          %3440 = vmatpush.bf16.msra.mxu0 %v3048
          %3441 = vmatpush.bf16.msra.mxu0 %v3044
          %3442 = vmatmul.bf16.gmra.mxu0 %v2483
          %v3443 = vpop.f32.mrf.mxu0
          %v3444 = vadd.f32 %v3431, %v3443
          %v3445 = vpop.f32.mrf.mxu0
          %3446 = vdwg.mxu0
          %3447 = vmatpush.bf16.msra.mxu0 %v3104
          %3448 = vmatpush.bf16.msra.mxu0 %v3100
          %3449 = vmatpush.bf16.msra.mxu0 %v3096
          %3450 = vmatpush.bf16.msra.mxu0 %v3092
          %3451 = vmatpush.bf16.msra.mxu0 %v3088
          %3452 = vmatpush.bf16.msra.mxu0 %v3084
          %3453 = vmatpush.bf16.msra.mxu0 %v3080
          %3454 = vmatpush.bf16.msra.mxu0 %v3076
          %3455 = vmatmul.bf16.gmra.mxu0 %v2484
          %v3456 = vpop.f32.mrf.mxu0
          %v3457 = vadd.f32 %v3444, %v3456
          %v3458 = vpop.f32.mrf.mxu0
          %3459 = vdwg.mxu0
          %3460 = vmatpush.bf16.msra.mxu0 %v3136
          %3461 = vmatpush.bf16.msra.mxu0 %v3132
          %3462 = vmatpush.bf16.msra.mxu0 %v3128
          %3463 = vmatpush.bf16.msra.mxu0 %v3124
          %3464 = vmatpush.bf16.msra.mxu0 %v3120
          %3465 = vmatpush.bf16.msra.mxu0 %v3116
          %3466 = vmatpush.bf16.msra.mxu0 %v3112
          %3467 = vmatpush.bf16.msra.mxu0 %v3108
          %3468 = vmatmul.bf16.gmra.mxu0 %v2485
          %v3469 = vpop.f32.mrf.mxu0
          %v3470 = vadd.f32 %v3457, %v3469
          %v3471 = vpop.f32.mrf.mxu0
          %3472 = vdwg.mxu0
          %v3473 = vmax.f32 %v3314, 0.0
          %v3474 = vmax.f32 %v3366, 0.0
          %v3475 = vmax.f32 %v3418, 0.0
          %v3476 = vmax.f32 %v3470, 0.0
          %v3477 = vpack.c.bf16 %v3473, %v3473
          %v3478 = vpack.c.bf16 %v3474, %v3474
          %v3479 = vpack.c.bf16 %v3475, %v3475
          %v3480 = vpack.c.bf16 %v3476, %v3476
          %v3481 = vld [vmem:[#allocation9] sm:$0xff]
          %v3482 = vld [vmem:[#allocation9 + $0x8] sm:$0xff]
          %v3483 = vld [vmem:[#allocation9 + $0x10] sm:$0xff]
          %v3484 = vld [vmem:[#allocation9 + $0x18] sm:$0xff]
          %v3485 = vld [vmem:[#allocation9 + $0x20] sm:$0xff]
          %v3486 = vld [vmem:[#allocation9 + $0x28] sm:$0xff]
          %v3487 = vld [vmem:[#allocation9 + $0x30] sm:$0xff]
          %v3488 = vld [vmem:[#allocation9 + $0x38] sm:$0xff]
          %v3489 = vld [vmem:[#allocation9 + $0x40] sm:$0xff]
          %v3490 = vld [vmem:[#allocation9 + $0x48] sm:$0xff]
          %v3491 = vld [vmem:[#allocation9 + $0x50] sm:$0xff]
          %v3492 = vld [vmem:[#allocation9 + $0x58] sm:$0xff]
          %v3493 = vld [vmem:[#allocation9 + $0x60] sm:$0xff]
          %v3494 = vld [vmem:[#allocation9 + $0x68] sm:$0xff]
          %v3495 = vld [vmem:[#allocation9 + $0x70] sm:$0xff]
          %v3496 = vld [vmem:[#allocation9 + $0x78] sm:$0xff]
          %v3497 = vld [vmem:[#allocation9 + $0x80] sm:$0xff]
          %v3498 = vld [vmem:[#allocation9 + $0x88] sm:$0xff]
          %v3499 = vld [vmem:[#allocation9 + $0x90] sm:$0xff]
          %v3500 = vld [vmem:[#allocation9 + $0x98] sm:$0xff]
          %v3501 = vld [vmem:[#allocation9 + $0xa0] sm:$0xff]
          %v3502 = vld [vmem:[#allocation9 + $0xa8] sm:$0xff]
          %v3503 = vld [vmem:[#allocation9 + $0xb0] sm:$0xff]
          %v3504 = vld [vmem:[#allocation9 + $0xb8] sm:$0xff]
          %v3505 = vld [vmem:[#allocation9 + $0xc0] sm:$0xff]
          %v3506 = vld [vmem:[#allocation9 + $0xc8] sm:$0xff]
          %v3507 = vld [vmem:[#allocation9 + $0xd0] sm:$0xff]
          %v3508 = vld [vmem:[#allocation9 + $0xd8] sm:$0xff]
          %v3509 = vld [vmem:[#allocation9 + $0xe0] sm:$0xff]
          %v3510 = vld [vmem:[#allocation9 + $0xe8] sm:$0xff]
          %v3511 = vld [vmem:[#allocation9 + $0xf0] sm:$0xff]
          %v3512 = vld [vmem:[#allocation9 + $0xf8] sm:$0xff]
          %v3513 = vld [vmem:[#allocation9 + $0x100] sm:$0xff]
          %v3514 = vld [vmem:[#allocation9 + $0x108] sm:$0xff]
          %v3515 = vld [vmem:[#allocation9 + $0x110] sm:$0xff]
          %v3516 = vld [vmem:[#allocation9 + $0x118] sm:$0xff]
          %v3517 = vld [vmem:[#allocation9 + $0x120] sm:$0xff]
          %v3518 = vld [vmem:[#allocation9 + $0x128] sm:$0xff]
          %v3519 = vld [vmem:[#allocation9 + $0x130] sm:$0xff]
          %v3520 = vld [vmem:[#allocation9 + $0x138] sm:$0xff]
          %v3521 = vld [vmem:[#allocation9 + $0x140] sm:$0xff]
          %v3522 = vld [vmem:[#allocation9 + $0x148] sm:$0xff]
          %v3523 = vld [vmem:[#allocation9 + $0x150] sm:$0xff]
          %v3524 = vld [vmem:[#allocation9 + $0x158] sm:$0xff]
          %v3525 = vld [vmem:[#allocation9 + $0x160] sm:$0xff]
          %v3526 = vld [vmem:[#allocation9 + $0x168] sm:$0xff]
          %v3527 = vld [vmem:[#allocation9 + $0x170] sm:$0xff]
          %v3528 = vld [vmem:[#allocation9 + $0x178] sm:$0xff]
          %v3529 = vld [vmem:[#allocation9 + $0x180] sm:$0xff]
          %v3530 = vld [vmem:[#allocation9 + $0x188] sm:$0xff]
          %v3531 = vld [vmem:[#allocation9 + $0x190] sm:$0xff]
          %v3532 = vld [vmem:[#allocation9 + $0x198] sm:$0xff]
          %v3533 = vld [vmem:[#allocation9 + $0x1a0] sm:$0xff]
          %v3534 = vld [vmem:[#allocation9 + $0x1a8] sm:$0xff]
          %v3535 = vld [vmem:[#allocation9 + $0x1b0] sm:$0xff]
          %v3536 = vld [vmem:[#allocation9 + $0x1b8] sm:$0xff]
          %v3537 = vld [vmem:[#allocation9 + $0x1c0] sm:$0xff]
          %v3538 = vld [vmem:[#allocation9 + $0x1c8] sm:$0xff]
          %v3539 = vld [vmem:[#allocation9 + $0x1d0] sm:$0xff]
          %v3540 = vld [vmem:[#allocation9 + $0x1d8] sm:$0xff]
          %v3541 = vld [vmem:[#allocation9 + $0x1e0] sm:$0xff]
          %v3542 = vld [vmem:[#allocation9 + $0x1e8] sm:$0xff]
          %v3543 = vld [vmem:[#allocation9 + $0x1f0] sm:$0xff]
          %v3544 = vld [vmem:[#allocation9 + $0x1f8] sm:$0xff]
          %v3545 = vld [vmem:[#allocation9 + $0x200] sm:$0xff]
          %v3546 = vld [vmem:[#allocation9 + $0x208] sm:$0xff]
          %v3547 = vld [vmem:[#allocation9 + $0x210] sm:$0xff]
          %v3548 = vld [vmem:[#allocation9 + $0x218] sm:$0xff]
          %v3549 = vld [vmem:[#allocation9 + $0x220] sm:$0xff]
          %v3550 = vld [vmem:[#allocation9 + $0x228] sm:$0xff]
          %v3551 = vld [vmem:[#allocation9 + $0x230] sm:$0xff]
          %v3552 = vld [vmem:[#allocation9 + $0x238] sm:$0xff]
          %v3553 = vld [vmem:[#allocation9 + $0x240] sm:$0xff]
          %v3554 = vld [vmem:[#allocation9 + $0x248] sm:$0xff]
          %v3555 = vld [vmem:[#allocation9 + $0x250] sm:$0xff]
          %v3556 = vld [vmem:[#allocation9 + $0x258] sm:$0xff]
          %v3557 = vld [vmem:[#allocation9 + $0x260] sm:$0xff]
          %v3558 = vld [vmem:[#allocation9 + $0x268] sm:$0xff]
          %v3559 = vld [vmem:[#allocation9 + $0x270] sm:$0xff]
          %v3560 = vld [vmem:[#allocation9 + $0x278] sm:$0xff]
          %v3561 = vld [vmem:[#allocation9 + $0x280] sm:$0xff]
          %v3562 = vld [vmem:[#allocation9 + $0x288] sm:$0xff]
          %v3563 = vld [vmem:[#allocation9 + $0x290] sm:$0xff]
          %v3564 = vld [vmem:[#allocation9 + $0x298] sm:$0xff]
          %v3565 = vld [vmem:[#allocation9 + $0x2a0] sm:$0xff]
          %v3566 = vld [vmem:[#allocation9 + $0x2a8] sm:$0xff]
          %v3567 = vld [vmem:[#allocation9 + $0x2b0] sm:$0xff]
          %v3568 = vld [vmem:[#allocation9 + $0x2b8] sm:$0xff]
          %v3569 = vld [vmem:[#allocation9 + $0x2c0] sm:$0xff]
          %v3570 = vld [vmem:[#allocation9 + $0x2c8] sm:$0xff]
          %v3571 = vld [vmem:[#allocation9 + $0x2d0] sm:$0xff]
          %v3572 = vld [vmem:[#allocation9 + $0x2d8] sm:$0xff]
          %v3573 = vld [vmem:[#allocation9 + $0x2e0] sm:$0xff]
          %v3574 = vld [vmem:[#allocation9 + $0x2e8] sm:$0xff]
          %v3575 = vld [vmem:[#allocation9 + $0x2f0] sm:$0xff]
          %v3576 = vld [vmem:[#allocation9 + $0x2f8] sm:$0xff]
          %v3577 = vld [vmem:[#allocation9 + $0x300] sm:$0xff]
          %v3578 = vld [vmem:[#allocation9 + $0x308] sm:$0xff]
          %v3579 = vld [vmem:[#allocation9 + $0x310] sm:$0xff]
          %v3580 = vld [vmem:[#allocation9 + $0x318] sm:$0xff]
          %v3581 = vld [vmem:[#allocation9 + $0x320] sm:$0xff]
          %v3582 = vld [vmem:[#allocation9 + $0x328] sm:$0xff]
          %v3583 = vld [vmem:[#allocation9 + $0x330] sm:$0xff]
          %v3584 = vld [vmem:[#allocation9 + $0x338] sm:$0xff]
          %v3585 = vld [vmem:[#allocation9 + $0x340] sm:$0xff]
          %v3586 = vld [vmem:[#allocation9 + $0x348] sm:$0xff]
          %v3587 = vld [vmem:[#allocation9 + $0x350] sm:$0xff]
          %v3588 = vld [vmem:[#allocation9 + $0x358] sm:$0xff]
          %v3589 = vld [vmem:[#allocation9 + $0x360] sm:$0xff]
          %v3590 = vld [vmem:[#allocation9 + $0x368] sm:$0xff]
          %v3591 = vld [vmem:[#allocation9 + $0x370] sm:$0xff]
          %v3592 = vld [vmem:[#allocation9 + $0x378] sm:$0xff]
          %v3593 = vld [vmem:[#allocation9 + $0x380] sm:$0xff]
          %v3594 = vld [vmem:[#allocation9 + $0x388] sm:$0xff]
          %v3595 = vld [vmem:[#allocation9 + $0x390] sm:$0xff]
          %v3596 = vld [vmem:[#allocation9 + $0x398] sm:$0xff]
          %v3597 = vld [vmem:[#allocation9 + $0x3a0] sm:$0xff]
          %v3598 = vld [vmem:[#allocation9 + $0x3a8] sm:$0xff]
          %v3599 = vld [vmem:[#allocation9 + $0x3b0] sm:$0xff]
          %v3600 = vld [vmem:[#allocation9 + $0x3b8] sm:$0xff]
          %v3601 = vld [vmem:[#allocation9 + $0x3c0] sm:$0xff]
          %v3602 = vld [vmem:[#allocation9 + $0x3c8] sm:$0xff]
          %v3603 = vld [vmem:[#allocation9 + $0x3d0] sm:$0xff]
          %v3604 = vld [vmem:[#allocation9 + $0x3d8] sm:$0xff]
          %v3605 = vld [vmem:[#allocation9 + $0x3e0] sm:$0xff]
          %v3606 = vld [vmem:[#allocation9 + $0x3e8] sm:$0xff]
          %v3607 = vld [vmem:[#allocation9 + $0x3f0] sm:$0xff]
          %v3608 = vld [vmem:[#allocation9 + $0x3f8] sm:$0xff]
          %s3609 = scalar_lea.vmem [#allocation14], 2
          %v3610 = vld [vmem:[%s3609] ss:$4 sm:$0xf]
          %v3612 = vperm.slane %v3610, 0
          %v3613 = vperm.slane %v3610, 1
          %v3614 = vperm.slane %v3610, 2
          %v3615 = vperm.slane %v3610, 3
          %v3748 = vunpack.c.l.b16 %v3481
          %v3749 = vunpack.c.h.b16 %v3481
          %v3750 = vunpack.c.l.b16 %v3482
          %v3751 = vunpack.c.h.b16 %v3482
          %v3752 = vunpack.c.l.b16 %v3483
          %v3753 = vunpack.c.h.b16 %v3483
          %v3754 = vunpack.c.l.b16 %v3484
          %v3755 = vunpack.c.h.b16 %v3484
          %v3756 = vunpack.c.l.b16 %v3485
          %v3757 = vunpack.c.h.b16 %v3485
          %v3758 = vunpack.c.l.b16 %v3486
          %v3759 = vunpack.c.h.b16 %v3486
          %v3760 = vunpack.c.l.b16 %v3487
          %v3761 = vunpack.c.h.b16 %v3487
          %v3762 = vunpack.c.l.b16 %v3488
          %v3763 = vunpack.c.h.b16 %v3488
          %v3764 = vunpack.c.l.b16 %v3489
          %v3765 = vunpack.c.h.b16 %v3489
          %v3766 = vunpack.c.l.b16 %v3490
          %v3767 = vunpack.c.h.b16 %v3490
          %v3768 = vunpack.c.l.b16 %v3491
          %v3769 = vunpack.c.h.b16 %v3491
          %v3770 = vunpack.c.l.b16 %v3492
          %v3771 = vunpack.c.h.b16 %v3492
          %v3772 = vunpack.c.l.b16 %v3493
          %v3773 = vunpack.c.h.b16 %v3493
          %v3774 = vunpack.c.l.b16 %v3494
          %v3775 = vunpack.c.h.b16 %v3494
          %v3776 = vunpack.c.l.b16 %v3495
          %v3777 = vunpack.c.h.b16 %v3495
          %v3778 = vunpack.c.l.b16 %v3496
          %v3779 = vunpack.c.h.b16 %v3496
          %v3780 = vunpack.c.l.b16 %v3497
          %v3781 = vunpack.c.h.b16 %v3497
          %v3782 = vunpack.c.l.b16 %v3498
          %v3783 = vunpack.c.h.b16 %v3498
          %v3784 = vunpack.c.l.b16 %v3499
          %v3785 = vunpack.c.h.b16 %v3499
          %v3786 = vunpack.c.l.b16 %v3500
          %v3787 = vunpack.c.h.b16 %v3500
          %v3788 = vunpack.c.l.b16 %v3501
          %v3789 = vunpack.c.h.b16 %v3501
          %v3790 = vunpack.c.l.b16 %v3502
          %v3791 = vunpack.c.h.b16 %v3502
          %v3792 = vunpack.c.l.b16 %v3503
          %v3793 = vunpack.c.h.b16 %v3503
          %v3794 = vunpack.c.l.b16 %v3504
          %v3795 = vunpack.c.h.b16 %v3504
          %v3796 = vunpack.c.l.b16 %v3505
          %v3797 = vunpack.c.h.b16 %v3505
          %v3798 = vunpack.c.l.b16 %v3506
          %v3799 = vunpack.c.h.b16 %v3506
          %v3800 = vunpack.c.l.b16 %v3507
          %v3801 = vunpack.c.h.b16 %v3507
          %v3802 = vunpack.c.l.b16 %v3508
          %v3803 = vunpack.c.h.b16 %v3508
          %v3804 = vunpack.c.l.b16 %v3509
          %v3805 = vunpack.c.h.b16 %v3509
          %v3806 = vunpack.c.l.b16 %v3510
          %v3807 = vunpack.c.h.b16 %v3510
          %v3808 = vunpack.c.l.b16 %v3511
          %v3809 = vunpack.c.h.b16 %v3511
          %v3810 = vunpack.c.l.b16 %v3512
          %v3811 = vunpack.c.h.b16 %v3512
          %v3812 = vunpack.c.l.b16 %v3513
          %v3813 = vunpack.c.h.b16 %v3513
          %v3814 = vunpack.c.l.b16 %v3514
          %v3815 = vunpack.c.h.b16 %v3514
          %v3816 = vunpack.c.l.b16 %v3515
          %v3817 = vunpack.c.h.b16 %v3515
          %v3818 = vunpack.c.l.b16 %v3516
          %v3819 = vunpack.c.h.b16 %v3516
          %v3820 = vunpack.c.l.b16 %v3517
          %v3821 = vunpack.c.h.b16 %v3517
          %v3822 = vunpack.c.l.b16 %v3518
          %v3823 = vunpack.c.h.b16 %v3518
          %v3824 = vunpack.c.l.b16 %v3519
          %v3825 = vunpack.c.h.b16 %v3519
          %v3826 = vunpack.c.l.b16 %v3520
          %v3827 = vunpack.c.h.b16 %v3520
          %v3828 = vunpack.c.l.b16 %v3521
          %v3829 = vunpack.c.h.b16 %v3521
          %v3830 = vunpack.c.l.b16 %v3522
          %v3831 = vunpack.c.h.b16 %v3522
          %v3832 = vunpack.c.l.b16 %v3523
          %v3833 = vunpack.c.h.b16 %v3523
          %v3834 = vunpack.c.l.b16 %v3524
          %v3835 = vunpack.c.h.b16 %v3524
          %v3836 = vunpack.c.l.b16 %v3525
          %v3837 = vunpack.c.h.b16 %v3525
          %v3838 = vunpack.c.l.b16 %v3526
          %v3839 = vunpack.c.h.b16 %v3526
          %v3840 = vunpack.c.l.b16 %v3527
          %v3841 = vunpack.c.h.b16 %v3527
          %v3842 = vunpack.c.l.b16 %v3528
          %v3843 = vunpack.c.h.b16 %v3528
          %v3844 = vunpack.c.l.b16 %v3529
          %v3845 = vunpack.c.h.b16 %v3529
          %v3846 = vunpack.c.l.b16 %v3530
          %v3847 = vunpack.c.h.b16 %v3530
          %v3848 = vunpack.c.l.b16 %v3531
          %v3849 = vunpack.c.h.b16 %v3531
          %v3850 = vunpack.c.l.b16 %v3532
          %v3851 = vunpack.c.h.b16 %v3532
          %v3852 = vunpack.c.l.b16 %v3533
          %v3853 = vunpack.c.h.b16 %v3533
          %v3854 = vunpack.c.l.b16 %v3534
          %v3855 = vunpack.c.h.b16 %v3534
          %v3856 = vunpack.c.l.b16 %v3535
          %v3857 = vunpack.c.h.b16 %v3535
          %v3858 = vunpack.c.l.b16 %v3536
          %v3859 = vunpack.c.h.b16 %v3536
          %v3860 = vunpack.c.l.b16 %v3537
          %v3861 = vunpack.c.h.b16 %v3537
          %v3862 = vunpack.c.l.b16 %v3538
          %v3863 = vunpack.c.h.b16 %v3538
          %v3864 = vunpack.c.l.b16 %v3539
          %v3865 = vunpack.c.h.b16 %v3539
          %v3866 = vunpack.c.l.b16 %v3540
          %v3867 = vunpack.c.h.b16 %v3540
          %v3868 = vunpack.c.l.b16 %v3541
          %v3869 = vunpack.c.h.b16 %v3541
          %v3870 = vunpack.c.l.b16 %v3542
          %v3871 = vunpack.c.h.b16 %v3542
          %v3872 = vunpack.c.l.b16 %v3543
          %v3873 = vunpack.c.h.b16 %v3543
          %v3874 = vunpack.c.l.b16 %v3544
          %v3875 = vunpack.c.h.b16 %v3544
          %v3876 = vunpack.c.l.b16 %v3545
          %v3877 = vunpack.c.h.b16 %v3545
          %v3878 = vunpack.c.l.b16 %v3546
          %v3879 = vunpack.c.h.b16 %v3546
          %v3880 = vunpack.c.l.b16 %v3547
          %v3881 = vunpack.c.h.b16 %v3547
          %v3882 = vunpack.c.l.b16 %v3548
          %v3883 = vunpack.c.h.b16 %v3548
          %v3884 = vunpack.c.l.b16 %v3549
          %v3885 = vunpack.c.h.b16 %v3549
          %v3886 = vunpack.c.l.b16 %v3550
          %v3887 = vunpack.c.h.b16 %v3550
          %v3888 = vunpack.c.l.b16 %v3551
          %v3889 = vunpack.c.h.b16 %v3551
          %v3890 = vunpack.c.l.b16 %v3552
          %v3891 = vunpack.c.h.b16 %v3552
          %v3892 = vunpack.c.l.b16 %v3553
          %v3893 = vunpack.c.h.b16 %v3553
          %v3894 = vunpack.c.l.b16 %v3554
          %v3895 = vunpack.c.h.b16 %v3554
          %v3896 = vunpack.c.l.b16 %v3555
          %v3897 = vunpack.c.h.b16 %v3555
          %v3898 = vunpack.c.l.b16 %v3556
          %v3899 = vunpack.c.h.b16 %v3556
          %v3900 = vunpack.c.l.b16 %v3557
          %v3901 = vunpack.c.h.b16 %v3557
          %v3902 = vunpack.c.l.b16 %v3558
          %v3903 = vunpack.c.h.b16 %v3558
          %v3904 = vunpack.c.l.b16 %v3559
          %v3905 = vunpack.c.h.b16 %v3559
          %v3906 = vunpack.c.l.b16 %v3560
          %v3907 = vunpack.c.h.b16 %v3560
          %v3908 = vunpack.c.l.b16 %v3561
          %v3909 = vunpack.c.h.b16 %v3561
          %v3910 = vunpack.c.l.b16 %v3562
          %v3911 = vunpack.c.h.b16 %v3562
          %v3912 = vunpack.c.l.b16 %v3563
          %v3913 = vunpack.c.h.b16 %v3563
          %v3914 = vunpack.c.l.b16 %v3564
          %v3915 = vunpack.c.h.b16 %v3564
          %v3916 = vunpack.c.l.b16 %v3565
          %v3917 = vunpack.c.h.b16 %v3565
          %v3918 = vunpack.c.l.b16 %v3566
          %v3919 = vunpack.c.h.b16 %v3566
          %v3920 = vunpack.c.l.b16 %v3567
          %v3921 = vunpack.c.h.b16 %v3567
          %v3922 = vunpack.c.l.b16 %v3568
          %v3923 = vunpack.c.h.b16 %v3568
          %v3924 = vunpack.c.l.b16 %v3569
          %v3925 = vunpack.c.h.b16 %v3569
          %v3926 = vunpack.c.l.b16 %v3570
          %v3927 = vunpack.c.h.b16 %v3570
          %v3928 = vunpack.c.l.b16 %v3571
          %v3929 = vunpack.c.h.b16 %v3571
          %v3930 = vunpack.c.l.b16 %v3572
          %v3931 = vunpack.c.h.b16 %v3572
          %v3932 = vunpack.c.l.b16 %v3573
          %v3933 = vunpack.c.h.b16 %v3573
          %v3934 = vunpack.c.l.b16 %v3574
          %v3935 = vunpack.c.h.b16 %v3574
          %v3936 = vunpack.c.l.b16 %v3575
          %v3937 = vunpack.c.h.b16 %v3575
          %v3938 = vunpack.c.l.b16 %v3576
          %v3939 = vunpack.c.h.b16 %v3576
          %v3940 = vunpack.c.l.b16 %v3577
          %v3941 = vunpack.c.h.b16 %v3577
          %v3942 = vunpack.c.l.b16 %v3578
          %v3943 = vunpack.c.h.b16 %v3578
          %v3944 = vunpack.c.l.b16 %v3579
          %v3945 = vunpack.c.h.b16 %v3579
          %v3946 = vunpack.c.l.b16 %v3580
          %v3947 = vunpack.c.h.b16 %v3580
          %v3948 = vunpack.c.l.b16 %v3581
          %v3949 = vunpack.c.h.b16 %v3581
          %v3950 = vunpack.c.l.b16 %v3582
          %v3951 = vunpack.c.h.b16 %v3582
          %v3952 = vunpack.c.l.b16 %v3583
          %v3953 = vunpack.c.h.b16 %v3583
          %v3954 = vunpack.c.l.b16 %v3584
          %v3955 = vunpack.c.h.b16 %v3584
          %v3956 = vunpack.c.l.b16 %v3585
          %v3957 = vunpack.c.h.b16 %v3585
          %v3958 = vunpack.c.l.b16 %v3586
          %v3959 = vunpack.c.h.b16 %v3586
          %v3960 = vunpack.c.l.b16 %v3587
          %v3961 = vunpack.c.h.b16 %v3587
          %v3962 = vunpack.c.l.b16 %v3588
          %v3963 = vunpack.c.h.b16 %v3588
          %v3964 = vunpack.c.l.b16 %v3589
          %v3965 = vunpack.c.h.b16 %v3589
          %v3966 = vunpack.c.l.b16 %v3590
          %v3967 = vunpack.c.h.b16 %v3590
          %v3968 = vunpack.c.l.b16 %v3591
          %v3969 = vunpack.c.h.b16 %v3591
          %v3970 = vunpack.c.l.b16 %v3592
          %v3971 = vunpack.c.h.b16 %v3592
          %v3972 = vunpack.c.l.b16 %v3593
          %v3973 = vunpack.c.h.b16 %v3593
          %v3974 = vunpack.c.l.b16 %v3594
          %v3975 = vunpack.c.h.b16 %v3594
          %v3976 = vunpack.c.l.b16 %v3595
          %v3977 = vunpack.c.h.b16 %v3595
          %v3978 = vunpack.c.l.b16 %v3596
          %v3979 = vunpack.c.h.b16 %v3596
          %v3980 = vunpack.c.l.b16 %v3597
          %v3981 = vunpack.c.h.b16 %v3597
          %v3982 = vunpack.c.l.b16 %v3598
          %v3983 = vunpack.c.h.b16 %v3598
          %v3984 = vunpack.c.l.b16 %v3599
          %v3985 = vunpack.c.h.b16 %v3599
          %v3986 = vunpack.c.l.b16 %v3600
          %v3987 = vunpack.c.h.b16 %v3600
          %v3988 = vunpack.c.l.b16 %v3601
          %v3989 = vunpack.c.h.b16 %v3601
          %v3990 = vunpack.c.l.b16 %v3602
          %v3991 = vunpack.c.h.b16 %v3602
          %v3992 = vunpack.c.l.b16 %v3603
          %v3993 = vunpack.c.h.b16 %v3603
          %v3994 = vunpack.c.l.b16 %v3604
          %v3995 = vunpack.c.h.b16 %v3604
          %v3996 = vunpack.c.l.b16 %v3605
          %v3997 = vunpack.c.h.b16 %v3605
          %v3998 = vunpack.c.l.b16 %v3606
          %v3999 = vunpack.c.h.b16 %v3606
          %v4000 = vunpack.c.l.b16 %v3607
          %v4001 = vunpack.c.h.b16 %v3607
          %v4002 = vunpack.c.l.b16 %v3608
          %v4003 = vunpack.c.h.b16 %v3608
          %v4004 = vpack.c.b16 %v3752, %v3748
          %v4005 = vpack.c.b16 %v3753, %v3749
          %v4006 = vpack.c.b16 %v3754, %v3750
          %v4007 = vpack.c.b16 %v3755, %v3751
          %v4008 = vpack.c.b16 %v3760, %v3756
          %v4009 = vpack.c.b16 %v3761, %v3757
          %v4010 = vpack.c.b16 %v3762, %v3758
          %v4011 = vpack.c.b16 %v3763, %v3759
          %v4012 = vpack.c.b16 %v3768, %v3764
          %v4013 = vpack.c.b16 %v3769, %v3765
          %v4014 = vpack.c.b16 %v3770, %v3766
          %v4015 = vpack.c.b16 %v3771, %v3767
          %v4016 = vpack.c.b16 %v3776, %v3772
          %v4017 = vpack.c.b16 %v3777, %v3773
          %v4018 = vpack.c.b16 %v3778, %v3774
          %v4019 = vpack.c.b16 %v3779, %v3775
          %v4020 = vpack.c.b16 %v3784, %v3780
          %v4021 = vpack.c.b16 %v3785, %v3781
          %v4022 = vpack.c.b16 %v3786, %v3782
          %v4023 = vpack.c.b16 %v3787, %v3783
          %v4024 = vpack.c.b16 %v3792, %v3788
          %v4025 = vpack.c.b16 %v3793, %v3789
          %v4026 = vpack.c.b16 %v3794, %v3790
          %v4027 = vpack.c.b16 %v3795, %v3791
          %v4028 = vpack.c.b16 %v3800, %v3796
          %v4029 = vpack.c.b16 %v3801, %v3797
          %v4030 = vpack.c.b16 %v3802, %v3798
          %v4031 = vpack.c.b16 %v3803, %v3799
          %v4032 = vpack.c.b16 %v3808, %v3804
          %v4033 = vpack.c.b16 %v3809, %v3805
          %v4034 = vpack.c.b16 %v3810, %v3806
          %v4035 = vpack.c.b16 %v3811, %v3807
          %v4036 = vpack.c.b16 %v3816, %v3812
          %v4037 = vpack.c.b16 %v3817, %v3813
          %v4038 = vpack.c.b16 %v3818, %v3814
          %v4039 = vpack.c.b16 %v3819, %v3815
          %v4040 = vpack.c.b16 %v3824, %v3820
          %v4041 = vpack.c.b16 %v3825, %v3821
          %v4042 = vpack.c.b16 %v3826, %v3822
          %v4043 = vpack.c.b16 %v3827, %v3823
          %v4044 = vpack.c.b16 %v3832, %v3828
          %v4045 = vpack.c.b16 %v3833, %v3829
          %v4046 = vpack.c.b16 %v3834, %v3830
          %v4047 = vpack.c.b16 %v3835, %v3831
          %v4048 = vpack.c.b16 %v3840, %v3836
          %v4049 = vpack.c.b16 %v3841, %v3837
          %v4050 = vpack.c.b16 %v3842, %v3838
          %v4051 = vpack.c.b16 %v3843, %v3839
          %v4052 = vpack.c.b16 %v3848, %v3844
          %v4053 = vpack.c.b16 %v3849, %v3845
          %v4054 = vpack.c.b16 %v3850, %v3846
          %v4055 = vpack.c.b16 %v3851, %v3847
          %v4056 = vpack.c.b16 %v3856, %v3852
          %v4057 = vpack.c.b16 %v3857, %v3853
          %v4058 = vpack.c.b16 %v3858, %v3854
          %v4059 = vpack.c.b16 %v3859, %v3855
          %v4060 = vpack.c.b16 %v3864, %v3860
          %v4061 = vpack.c.b16 %v3865, %v3861
          %v4062 = vpack.c.b16 %v3866, %v3862
          %v4063 = vpack.c.b16 %v3867, %v3863
          %v4064 = vpack.c.b16 %v3872, %v3868
          %v4065 = vpack.c.b16 %v3873, %v3869
          %v4066 = vpack.c.b16 %v3874, %v3870
          %v4067 = vpack.c.b16 %v3875, %v3871
          %v4068 = vpack.c.b16 %v3880, %v3876
          %v4069 = vpack.c.b16 %v3881, %v3877
          %v4070 = vpack.c.b16 %v3882, %v3878
          %v4071 = vpack.c.b16 %v3883, %v3879
          %v4072 = vpack.c.b16 %v3888, %v3884
          %v4073 = vpack.c.b16 %v3889, %v3885
          %v4074 = vpack.c.b16 %v3890, %v3886
          %v4075 = vpack.c.b16 %v3891, %v3887
          %v4076 = vpack.c.b16 %v3896, %v3892
          %v4077 = vpack.c.b16 %v3897, %v3893
          %v4078 = vpack.c.b16 %v3898, %v3894
          %v4079 = vpack.c.b16 %v3899, %v3895
          %v4080 = vpack.c.b16 %v3904, %v3900
          %v4081 = vpack.c.b16 %v3905, %v3901
          %v4082 = vpack.c.b16 %v3906, %v3902
          %v4083 = vpack.c.b16 %v3907, %v3903
          %v4084 = vpack.c.b16 %v3912, %v3908
          %v4085 = vpack.c.b16 %v3913, %v3909
          %v4086 = vpack.c.b16 %v3914, %v3910
          %v4087 = vpack.c.b16 %v3915, %v3911
          %v4088 = vpack.c.b16 %v3920, %v3916
          %v4089 = vpack.c.b16 %v3921, %v3917
          %v4090 = vpack.c.b16 %v3922, %v3918
          %v4091 = vpack.c.b16 %v3923, %v3919
          %v4092 = vpack.c.b16 %v3928, %v3924
          %v4093 = vpack.c.b16 %v3929, %v3925
          %v4094 = vpack.c.b16 %v3930, %v3926
          %v4095 = vpack.c.b16 %v3931, %v3927
          %v4096 = vpack.c.b16 %v3936, %v3932
          %v4097 = vpack.c.b16 %v3937, %v3933
          %v4098 = vpack.c.b16 %v3938, %v3934
          %v4099 = vpack.c.b16 %v3939, %v3935
          %v4100 = vpack.c.b16 %v3944, %v3940
          %v4101 = vpack.c.b16 %v3945, %v3941
          %v4102 = vpack.c.b16 %v3946, %v3942
          %v4103 = vpack.c.b16 %v3947, %v3943
          %v4104 = vpack.c.b16 %v3952, %v3948
          %v4105 = vpack.c.b16 %v3953, %v3949
          %v4106 = vpack.c.b16 %v3954, %v3950
          %v4107 = vpack.c.b16 %v3955, %v3951
          %v4108 = vpack.c.b16 %v3960, %v3956
          %v4109 = vpack.c.b16 %v3961, %v3957
          %v4110 = vpack.c.b16 %v3962, %v3958
          %v4111 = vpack.c.b16 %v3963, %v3959
          %v4112 = vpack.c.b16 %v3968, %v3964
          %v4113 = vpack.c.b16 %v3969, %v3965
          %v4114 = vpack.c.b16 %v3970, %v3966
          %v4115 = vpack.c.b16 %v3971, %v3967
          %v4116 = vpack.c.b16 %v3976, %v3972
          %v4117 = vpack.c.b16 %v3977, %v3973
          %v4118 = vpack.c.b16 %v3978, %v3974
          %v4119 = vpack.c.b16 %v3979, %v3975
          %v4120 = vpack.c.b16 %v3984, %v3980
          %v4121 = vpack.c.b16 %v3985, %v3981
          %v4122 = vpack.c.b16 %v3986, %v3982
          %v4123 = vpack.c.b16 %v3987, %v3983
          %v4124 = vpack.c.b16 %v3992, %v3988
          %v4125 = vpack.c.b16 %v3993, %v3989
          %v4126 = vpack.c.b16 %v3994, %v3990
          %v4127 = vpack.c.b16 %v3995, %v3991
          %v4128 = vpack.c.b16 %v4000, %v3996
          %v4129 = vpack.c.b16 %v4001, %v3997
          %v4130 = vpack.c.b16 %v4002, %v3998
          %v4131 = vpack.c.b16 %v4003, %v3999
          %4260 = vmatpush.bf16.msra.mxu0 %v4032
          %4261 = vmatpush.bf16.msra.mxu0 %v4028
          %4262 = vmatpush.bf16.msra.mxu0 %v4024
          %4263 = vmatpush.bf16.msra.mxu0 %v4020
          %4264 = vmatpush.bf16.msra.mxu0 %v4016
          %4265 = vmatpush.bf16.msra.mxu0 %v4012
          %4266 = vmatpush.bf16.msra.mxu0 %v4008
          %4267 = vmatpush.bf16.msra.mxu0 %v4004
          %4268 = vmatmul.bf16.gmra.mxu0 %v3477
          %v4269 = vpop.f32.mrf.mxu0
          %v4270 = vadd.f32 %v3612, %v4269
          %v4271 = vpop.f32.mrf.mxu0
          %4272 = vdwg.mxu0
          %4273 = vmatpush.bf16.msra.mxu0 %v4064
          %4274 = vmatpush.bf16.msra.mxu0 %v4060
          %4275 = vmatpush.bf16.msra.mxu0 %v4056
          %4276 = vmatpush.bf16.msra.mxu0 %v4052
          %4277 = vmatpush.bf16.msra.mxu0 %v4048
          %4278 = vmatpush.bf16.msra.mxu0 %v4044
          %4279 = vmatpush.bf16.msra.mxu0 %v4040
          %4280 = vmatpush.bf16.msra.mxu0 %v4036
          %4281 = vmatmul.bf16.gmra.mxu0 %v3478
          %v4282 = vpop.f32.mrf.mxu0
          %v4283 = vadd.f32 %v4270, %v4282
          %v4284 = vpop.f32.mrf.mxu0
          %4285 = vdwg.mxu0
          %4286 = vmatpush.bf16.msra.mxu0 %v4096
          %4287 = vmatpush.bf16.msra.mxu0 %v4092
          %4288 = vmatpush.bf16.msra.mxu0 %v4088
          %4289 = vmatpush.bf16.msra.mxu0 %v4084
          %4290 = vmatpush.bf16.msra.mxu0 %v4080
          %4291 = vmatpush.bf16.msra.mxu0 %v4076
          %4292 = vmatpush.bf16.msra.mxu0 %v4072
          %4293 = vmatpush.bf16.msra.mxu0 %v4068
          %4294 = vmatmul.bf16.gmra.mxu0 %v3479
          %v4295 = vpop.f32.mrf.mxu0
          %v4296 = vadd.f32 %v4283, %v4295
          %v4297 = vpop.f32.mrf.mxu0
          %4298 = vdwg.mxu0
          %4299 = vmatpush.bf16.msra.mxu0 %v4128
          %4300 = vmatpush.bf16.msra.mxu0 %v4124
          %4301 = vmatpush.bf16.msra.mxu0 %v4120
          %4302 = vmatpush.bf16.msra.mxu0 %v4116
          %4303 = vmatpush.bf16.msra.mxu0 %v4112
          %4304 = vmatpush.bf16.msra.mxu0 %v4108
          %4305 = vmatpush.bf16.msra.mxu0 %v4104
          %4306 = vmatpush.bf16.msra.mxu0 %v4100
          %4307 = vmatmul.bf16.gmra.mxu0 %v3480
          %v4308 = vpop.f32.mrf.mxu0
          %v4309 = vadd.f32 %v4296, %v4308
          %v4310 = vpop.f32.mrf.mxu0
          %4311 = vdwg.mxu0
          %4312 = vmatpush.bf16.msra.mxu0 %v4033
          %4313 = vmatpush.bf16.msra.mxu0 %v4029
          %4314 = vmatpush.bf16.msra.mxu0 %v4025
          %4315 = vmatpush.bf16.msra.mxu0 %v4021
          %4316 = vmatpush.bf16.msra.mxu0 %v4017
          %4317 = vmatpush.bf16.msra.mxu0 %v4013
          %4318 = vmatpush.bf16.msra.mxu0 %v4009
          %4319 = vmatpush.bf16.msra.mxu0 %v4005
          %4320 = vmatmul.bf16.gmra.mxu0 %v3477
          %v4321 = vpop.f32.mrf.mxu0
          %v4322 = vadd.f32 %v3613, %v4321
          %v4323 = vpop.f32.mrf.mxu0
          %4324 = vdwg.mxu0
          %4325 = vmatpush.bf16.msra.mxu0 %v4065
          %4326 = vmatpush.bf16.msra.mxu0 %v4061
          %4327 = vmatpush.bf16.msra.mxu0 %v4057
          %4328 = vmatpush.bf16.msra.mxu0 %v4053
          %4329 = vmatpush.bf16.msra.mxu0 %v4049
          %4330 = vmatpush.bf16.msra.mxu0 %v4045
          %4331 = vmatpush.bf16.msra.mxu0 %v4041
          %4332 = vmatpush.bf16.msra.mxu0 %v4037
          %4333 = vmatmul.bf16.gmra.mxu0 %v3478
          %v4334 = vpop.f32.mrf.mxu0
          %v4335 = vadd.f32 %v4322, %v4334
          %v4336 = vpop.f32.mrf.mxu0
          %4337 = vdwg.mxu0
          %4338 = vmatpush.bf16.msra.mxu0 %v4097
          %4339 = vmatpush.bf16.msra.mxu0 %v4093
          %4340 = vmatpush.bf16.msra.mxu0 %v4089
          %4341 = vmatpush.bf16.msra.mxu0 %v4085
          %4342 = vmatpush.bf16.msra.mxu0 %v4081
          %4343 = vmatpush.bf16.msra.mxu0 %v4077
          %4344 = vmatpush.bf16.msra.mxu0 %v4073
          %4345 = vmatpush.bf16.msra.mxu0 %v4069
          %4346 = vmatmul.bf16.gmra.mxu0 %v3479
          %v4347 = vpop.f32.mrf.mxu0
          %v4348 = vadd.f32 %v4335, %v4347
          %v4349 = vpop.f32.mrf.mxu0
          %4350 = vdwg.mxu0
          %4351 = vmatpush.bf16.msra.mxu0 %v4129
          %4352 = vmatpush.bf16.msra.mxu0 %v4125
          %4353 = vmatpush.bf16.msra.mxu0 %v4121
          %4354 = vmatpush.bf16.msra.mxu0 %v4117
          %4355 = vmatpush.bf16.msra.mxu0 %v4113
          %4356 = vmatpush.bf16.msra.mxu0 %v4109
          %4357 = vmatpush.bf16.msra.mxu0 %v4105
          %4358 = vmatpush.bf16.msra.mxu0 %v4101
          %4359 = vmatmul.bf16.gmra.mxu0 %v3480
          %v4360 = vpop.f32.mrf.mxu0
          %v4361 = vadd.f32 %v4348, %v4360
          %v4362 = vpop.f32.mrf.mxu0
          %4363 = vdwg.mxu0
          %4364 = vmatpush.bf16.msra.mxu0 %v4034
          %4365 = vmatpush.bf16.msra.mxu0 %v4030
          %4366 = vmatpush.bf16.msra.mxu0 %v4026
          %4367 = vmatpush.bf16.msra.mxu0 %v4022
          %4368 = vmatpush.bf16.msra.mxu0 %v4018
          %4369 = vmatpush.bf16.msra.mxu0 %v4014
          %4370 = vmatpush.bf16.msra.mxu0 %v4010
          %4371 = vmatpush.bf16.msra.mxu0 %v4006
          %4372 = vmatmul.bf16.gmra.mxu0 %v3477
          %v4373 = vpop.f32.mrf.mxu0
          %v4374 = vadd.f32 %v3614, %v4373
          %v4375 = vpop.f32.mrf.mxu0
          %4376 = vdwg.mxu0
          %4377 = vmatpush.bf16.msra.mxu0 %v4066
          %4378 = vmatpush.bf16.msra.mxu0 %v4062
          %4379 = vmatpush.bf16.msra.mxu0 %v4058
          %4380 = vmatpush.bf16.msra.mxu0 %v4054
          %4381 = vmatpush.bf16.msra.mxu0 %v4050
          %4382 = vmatpush.bf16.msra.mxu0 %v4046
          %4383 = vmatpush.bf16.msra.mxu0 %v4042
          %4384 = vmatpush.bf16.msra.mxu0 %v4038
          %4385 = vmatmul.bf16.gmra.mxu0 %v3478
          %v4386 = vpop.f32.mrf.mxu0
          %v4387 = vadd.f32 %v4374, %v4386
          %v4388 = vpop.f32.mrf.mxu0
          %4389 = vdwg.mxu0
          %4390 = vmatpush.bf16.msra.mxu0 %v4098
          %4391 = vmatpush.bf16.msra.mxu0 %v4094
          %4392 = vmatpush.bf16.msra.mxu0 %v4090
          %4393 = vmatpush.bf16.msra.mxu0 %v4086
          %4394 = vmatpush.bf16.msra.mxu0 %v4082
          %4395 = vmatpush.bf16.msra.mxu0 %v4078
          %4396 = vmatpush.bf16.msra.mxu0 %v4074
          %4397 = vmatpush.bf16.msra.mxu0 %v4070
          %4398 = vmatmul.bf16.gmra.mxu0 %v3479
          %v4399 = vpop.f32.mrf.mxu0
          %v4400 = vadd.f32 %v4387, %v4399
          %v4401 = vpop.f32.mrf.mxu0
          %4402 = vdwg.mxu0
          %4403 = vmatpush.bf16.msra.mxu0 %v4130
          %4404 = vmatpush.bf16.msra.mxu0 %v4126
          %4405 = vmatpush.bf16.msra.mxu0 %v4122
          %4406 = vmatpush.bf16.msra.mxu0 %v4118
          %4407 = vmatpush.bf16.msra.mxu0 %v4114
          %4408 = vmatpush.bf16.msra.mxu0 %v4110
          %4409 = vmatpush.bf16.msra.mxu0 %v4106
          %4410 = vmatpush.bf16.msra.mxu0 %v4102
          %4411 = vmatmul.bf16.gmra.mxu0 %v3480
          %v4412 = vpop.f32.mrf.mxu0
          %v4413 = vadd.f32 %v4400, %v4412
          %v4414 = vpop.f32.mrf.mxu0
          %4415 = vdwg.mxu0
          %4416 = vmatpush.bf16.msra.mxu0 %v4035
          %4417 = vmatpush.bf16.msra.mxu0 %v4031
          %4418 = vmatpush.bf16.msra.mxu0 %v4027
          %4419 = vmatpush.bf16.msra.mxu0 %v4023
          %4420 = vmatpush.bf16.msra.mxu0 %v4019
          %4421 = vmatpush.bf16.msra.mxu0 %v4015
          %4422 = vmatpush.bf16.msra.mxu0 %v4011
          %4423 = vmatpush.bf16.msra.mxu0 %v4007
          %4424 = vmatmul.bf16.gmra.mxu0 %v3477
          %v4425 = vpop.f32.mrf.mxu0
          %v4426 = vadd.f32 %v3615, %v4425
          %v4427 = vpop.f32.mrf.mxu0
          %4428 = vdwg.mxu0
          %4429 = vmatpush.bf16.msra.mxu0 %v4067
          %4430 = vmatpush.bf16.msra.mxu0 %v4063
          %4431 = vmatpush.bf16.msra.mxu0 %v4059
          %4432 = vmatpush.bf16.msra.mxu0 %v4055
          %4433 = vmatpush.bf16.msra.mxu0 %v4051
          %4434 = vmatpush.bf16.msra.mxu0 %v4047
          %4435 = vmatpush.bf16.msra.mxu0 %v4043
          %4436 = vmatpush.bf16.msra.mxu0 %v4039
          %4437 = vmatmul.bf16.gmra.mxu0 %v3478
          %v4438 = vpop.f32.mrf.mxu0
          %v4439 = vadd.f32 %v4426, %v4438
          %v4440 = vpop.f32.mrf.mxu0
          %4441 = vdwg.mxu0
          %4442 = vmatpush.bf16.msra.mxu0 %v4099
          %4443 = vmatpush.bf16.msra.mxu0 %v4095
          %4444 = vmatpush.bf16.msra.mxu0 %v4091
          %4445 = vmatpush.bf16.msra.mxu0 %v4087
          %4446 = vmatpush.bf16.msra.mxu0 %v4083
          %4447 = vmatpush.bf16.msra.mxu0 %v4079
          %4448 = vmatpush.bf16.msra.mxu0 %v4075
          %4449 = vmatpush.bf16.msra.mxu0 %v4071
          %4450 = vmatmul.bf16.gmra.mxu0 %v3479
          %v4451 = vpop.f32.mrf.mxu0
          %v4452 = vadd.f32 %v4439, %v4451
          %v4453 = vpop.f32.mrf.mxu0
          %4454 = vdwg.mxu0
          %4455 = vmatpush.bf16.msra.mxu0 %v4131
          %4456 = vmatpush.bf16.msra.mxu0 %v4127
          %4457 = vmatpush.bf16.msra.mxu0 %v4123
          %4458 = vmatpush.bf16.msra.mxu0 %v4119
          %4459 = vmatpush.bf16.msra.mxu0 %v4115
          %4460 = vmatpush.bf16.msra.mxu0 %v4111
          %4461 = vmatpush.bf16.msra.mxu0 %v4107
          %4462 = vmatpush.bf16.msra.mxu0 %v4103
          %4463 = vmatmul.bf16.gmra.mxu0 %v3480
          %v4464 = vpop.f32.mrf.mxu0
          %v4465 = vadd.f32 %v4452, %v4464
          %v4466 = vpop.f32.mrf.mxu0
          %4467 = vdwg.mxu0
          %v4468 = vmax.f32 %v4309, 0.0
          %v4469 = vmax.f32 %v4361, 0.0
          %v4470 = vmax.f32 %v4413, 0.0
          %v4471 = vmax.f32 %v4465, 0.0
          %v4472 = vpack.c.bf16 %v4468, %v4468
          %v4473 = vpack.c.bf16 %v4469, %v4469
          %v4474 = vpack.c.bf16 %v4470, %v4470
          %v4475 = vpack.c.bf16 %v4471, %v4471
          %v4476 = vld [vmem:[#allocation11] sm:$0xff]
          %v4477 = vld [vmem:[#allocation11 + $0x8] sm:$0xff]
          %v4478 = vld [vmem:[#allocation11 + $0x10] sm:$0xff]
          %v4479 = vld [vmem:[#allocation11 + $0x18] sm:$0xff]
          %v4480 = vld [vmem:[#allocation11 + $0x20] sm:$0xff]
          %v4481 = vld [vmem:[#allocation11 + $0x28] sm:$0xff]
          %v4482 = vld [vmem:[#allocation11 + $0x30] sm:$0xff]
          %v4483 = vld [vmem:[#allocation11 + $0x38] sm:$0xff]
          %v4484 = vld [vmem:[#allocation11 + $0x40] sm:$0xff]
          %v4485 = vld [vmem:[#allocation11 + $0x48] sm:$0xff]
          %v4486 = vld [vmem:[#allocation11 + $0x50] sm:$0xff]
          %v4487 = vld [vmem:[#allocation11 + $0x58] sm:$0xff]
          %v4488 = vld [vmem:[#allocation11 + $0x60] sm:$0xff]
          %v4489 = vld [vmem:[#allocation11 + $0x68] sm:$0xff]
          %v4490 = vld [vmem:[#allocation11 + $0x70] sm:$0xff]
          %v4491 = vld [vmem:[#allocation11 + $0x78] sm:$0xff]
          %v4492 = vld [vmem:[#allocation11 + $0x80] sm:$0xff]
          %v4493 = vld [vmem:[#allocation11 + $0x88] sm:$0xff]
          %v4494 = vld [vmem:[#allocation11 + $0x90] sm:$0xff]
          %v4495 = vld [vmem:[#allocation11 + $0x98] sm:$0xff]
          %v4496 = vld [vmem:[#allocation11 + $0xa0] sm:$0xff]
          %v4497 = vld [vmem:[#allocation11 + $0xa8] sm:$0xff]
          %v4498 = vld [vmem:[#allocation11 + $0xb0] sm:$0xff]
          %v4499 = vld [vmem:[#allocation11 + $0xb8] sm:$0xff]
          %v4500 = vld [vmem:[#allocation11 + $0xc0] sm:$0xff]
          %v4501 = vld [vmem:[#allocation11 + $0xc8] sm:$0xff]
          %v4502 = vld [vmem:[#allocation11 + $0xd0] sm:$0xff]
          %v4503 = vld [vmem:[#allocation11 + $0xd8] sm:$0xff]
          %v4504 = vld [vmem:[#allocation11 + $0xe0] sm:$0xff]
          %v4505 = vld [vmem:[#allocation11 + $0xe8] sm:$0xff]
          %v4506 = vld [vmem:[#allocation11 + $0xf0] sm:$0xff]
          %v4507 = vld [vmem:[#allocation11 + $0xf8] sm:$0xff]
          %v4508 = vld [vmem:[#allocation11 + $0x100] sm:$0xff]
          %v4509 = vld [vmem:[#allocation11 + $0x108] sm:$0xff]
          %v4510 = vld [vmem:[#allocation11 + $0x110] sm:$0xff]
          %v4511 = vld [vmem:[#allocation11 + $0x118] sm:$0xff]
          %v4512 = vld [vmem:[#allocation11 + $0x120] sm:$0xff]
          %v4513 = vld [vmem:[#allocation11 + $0x128] sm:$0xff]
          %v4514 = vld [vmem:[#allocation11 + $0x130] sm:$0xff]
          %v4515 = vld [vmem:[#allocation11 + $0x138] sm:$0xff]
          %v4516 = vld [vmem:[#allocation11 + $0x140] sm:$0xff]
          %v4517 = vld [vmem:[#allocation11 + $0x148] sm:$0xff]
          %v4518 = vld [vmem:[#allocation11 + $0x150] sm:$0xff]
          %v4519 = vld [vmem:[#allocation11 + $0x158] sm:$0xff]
          %v4520 = vld [vmem:[#allocation11 + $0x160] sm:$0xff]
          %v4521 = vld [vmem:[#allocation11 + $0x168] sm:$0xff]
          %v4522 = vld [vmem:[#allocation11 + $0x170] sm:$0xff]
          %v4523 = vld [vmem:[#allocation11 + $0x178] sm:$0xff]
          %v4524 = vld [vmem:[#allocation11 + $0x180] sm:$0xff]
          %v4525 = vld [vmem:[#allocation11 + $0x188] sm:$0xff]
          %v4526 = vld [vmem:[#allocation11 + $0x190] sm:$0xff]
          %v4527 = vld [vmem:[#allocation11 + $0x198] sm:$0xff]
          %v4528 = vld [vmem:[#allocation11 + $0x1a0] sm:$0xff]
          %v4529 = vld [vmem:[#allocation11 + $0x1a8] sm:$0xff]
          %v4530 = vld [vmem:[#allocation11 + $0x1b0] sm:$0xff]
          %v4531 = vld [vmem:[#allocation11 + $0x1b8] sm:$0xff]
          %v4532 = vld [vmem:[#allocation11 + $0x1c0] sm:$0xff]
          %v4533 = vld [vmem:[#allocation11 + $0x1c8] sm:$0xff]
          %v4534 = vld [vmem:[#allocation11 + $0x1d0] sm:$0xff]
          %v4535 = vld [vmem:[#allocation11 + $0x1d8] sm:$0xff]
          %v4536 = vld [vmem:[#allocation11 + $0x1e0] sm:$0xff]
          %v4537 = vld [vmem:[#allocation11 + $0x1e8] sm:$0xff]
          %v4538 = vld [vmem:[#allocation11 + $0x1f0] sm:$0xff]
          %v4539 = vld [vmem:[#allocation11 + $0x1f8] sm:$0xff]
          %v4540 = vld [vmem:[#allocation11 + $0x200] sm:$0xff]
          %v4541 = vld [vmem:[#allocation11 + $0x208] sm:$0xff]
          %v4542 = vld [vmem:[#allocation11 + $0x210] sm:$0xff]
          %v4543 = vld [vmem:[#allocation11 + $0x218] sm:$0xff]
          %v4544 = vld [vmem:[#allocation11 + $0x220] sm:$0xff]
          %v4545 = vld [vmem:[#allocation11 + $0x228] sm:$0xff]
          %v4546 = vld [vmem:[#allocation11 + $0x230] sm:$0xff]
          %v4547 = vld [vmem:[#allocation11 + $0x238] sm:$0xff]
          %v4548 = vld [vmem:[#allocation11 + $0x240] sm:$0xff]
          %v4549 = vld [vmem:[#allocation11 + $0x248] sm:$0xff]
          %v4550 = vld [vmem:[#allocation11 + $0x250] sm:$0xff]
          %v4551 = vld [vmem:[#allocation11 + $0x258] sm:$0xff]
          %v4552 = vld [vmem:[#allocation11 + $0x260] sm:$0xff]
          %v4553 = vld [vmem:[#allocation11 + $0x268] sm:$0xff]
          %v4554 = vld [vmem:[#allocation11 + $0x270] sm:$0xff]
          %v4555 = vld [vmem:[#allocation11 + $0x278] sm:$0xff]
          %v4556 = vld [vmem:[#allocation11 + $0x280] sm:$0xff]
          %v4557 = vld [vmem:[#allocation11 + $0x288] sm:$0xff]
          %v4558 = vld [vmem:[#allocation11 + $0x290] sm:$0xff]
          %v4559 = vld [vmem:[#allocation11 + $0x298] sm:$0xff]
          %v4560 = vld [vmem:[#allocation11 + $0x2a0] sm:$0xff]
          %v4561 = vld [vmem:[#allocation11 + $0x2a8] sm:$0xff]
          %v4562 = vld [vmem:[#allocation11 + $0x2b0] sm:$0xff]
          %v4563 = vld [vmem:[#allocation11 + $0x2b8] sm:$0xff]
          %v4564 = vld [vmem:[#allocation11 + $0x2c0] sm:$0xff]
          %v4565 = vld [vmem:[#allocation11 + $0x2c8] sm:$0xff]
          %v4566 = vld [vmem:[#allocation11 + $0x2d0] sm:$0xff]
          %v4567 = vld [vmem:[#allocation11 + $0x2d8] sm:$0xff]
          %v4568 = vld [vmem:[#allocation11 + $0x2e0] sm:$0xff]
          %v4569 = vld [vmem:[#allocation11 + $0x2e8] sm:$0xff]
          %v4570 = vld [vmem:[#allocation11 + $0x2f0] sm:$0xff]
          %v4571 = vld [vmem:[#allocation11 + $0x2f8] sm:$0xff]
          %v4572 = vld [vmem:[#allocation11 + $0x300] sm:$0xff]
          %v4573 = vld [vmem:[#allocation11 + $0x308] sm:$0xff]
          %v4574 = vld [vmem:[#allocation11 + $0x310] sm:$0xff]
          %v4575 = vld [vmem:[#allocation11 + $0x318] sm:$0xff]
          %v4576 = vld [vmem:[#allocation11 + $0x320] sm:$0xff]
          %v4577 = vld [vmem:[#allocation11 + $0x328] sm:$0xff]
          %v4578 = vld [vmem:[#allocation11 + $0x330] sm:$0xff]
          %v4579 = vld [vmem:[#allocation11 + $0x338] sm:$0xff]
          %v4580 = vld [vmem:[#allocation11 + $0x340] sm:$0xff]
          %v4581 = vld [vmem:[#allocation11 + $0x348] sm:$0xff]
          %v4582 = vld [vmem:[#allocation11 + $0x350] sm:$0xff]
          %v4583 = vld [vmem:[#allocation11 + $0x358] sm:$0xff]
          %v4584 = vld [vmem:[#allocation11 + $0x360] sm:$0xff]
          %v4585 = vld [vmem:[#allocation11 + $0x368] sm:$0xff]
          %v4586 = vld [vmem:[#allocation11 + $0x370] sm:$0xff]
          %v4587 = vld [vmem:[#allocation11 + $0x378] sm:$0xff]
          %v4588 = vld [vmem:[#allocation11 + $0x380] sm:$0xff]
          %v4589 = vld [vmem:[#allocation11 + $0x388] sm:$0xff]
          %v4590 = vld [vmem:[#allocation11 + $0x390] sm:$0xff]
          %v4591 = vld [vmem:[#allocation11 + $0x398] sm:$0xff]
          %v4592 = vld [vmem:[#allocation11 + $0x3a0] sm:$0xff]
          %v4593 = vld [vmem:[#allocation11 + $0x3a8] sm:$0xff]
          %v4594 = vld [vmem:[#allocation11 + $0x3b0] sm:$0xff]
          %v4595 = vld [vmem:[#allocation11 + $0x3b8] sm:$0xff]
          %v4596 = vld [vmem:[#allocation11 + $0x3c0] sm:$0xff]
          %v4597 = vld [vmem:[#allocation11 + $0x3c8] sm:$0xff]
          %v4598 = vld [vmem:[#allocation11 + $0x3d0] sm:$0xff]
          %v4599 = vld [vmem:[#allocation11 + $0x3d8] sm:$0xff]
          %v4600 = vld [vmem:[#allocation11 + $0x3e0] sm:$0xff]
          %v4601 = vld [vmem:[#allocation11 + $0x3e8] sm:$0xff]
          %v4602 = vld [vmem:[#allocation11 + $0x3f0] sm:$0xff]
          %v4603 = vld [vmem:[#allocation11 + $0x3f8] sm:$0xff]
          %s4604 = scalar_lea.vmem [#allocation14], 3
          %v4605 = vld [vmem:[%s4604] ss:$4 sm:$0xf]
          %v4607 = vperm.slane %v4605, 0
          %v4608 = vperm.slane %v4605, 1
          %v4609 = vperm.slane %v4605, 2
          %v4610 = vperm.slane %v4605, 3
          %v4743 = vunpack.c.l.b16 %v4476
          %v4744 = vunpack.c.h.b16 %v4476
          %v4745 = vunpack.c.l.b16 %v4477
          %v4746 = vunpack.c.h.b16 %v4477
          %v4747 = vunpack.c.l.b16 %v4478
          %v4748 = vunpack.c.h.b16 %v4478
          %v4749 = vunpack.c.l.b16 %v4479
          %v4750 = vunpack.c.h.b16 %v4479
          %v4751 = vunpack.c.l.b16 %v4480
          %v4752 = vunpack.c.h.b16 %v4480
          %v4753 = vunpack.c.l.b16 %v4481
          %v4754 = vunpack.c.h.b16 %v4481
          %v4755 = vunpack.c.l.b16 %v4482
          %v4756 = vunpack.c.h.b16 %v4482
          %v4757 = vunpack.c.l.b16 %v4483
          %v4758 = vunpack.c.h.b16 %v4483
          %v4759 = vunpack.c.l.b16 %v4484
          %v4760 = vunpack.c.h.b16 %v4484
          %v4761 = vunpack.c.l.b16 %v4485
          %v4762 = vunpack.c.h.b16 %v4485
          %v4763 = vunpack.c.l.b16 %v4486
          %v4764 = vunpack.c.h.b16 %v4486
          %v4765 = vunpack.c.l.b16 %v4487
          %v4766 = vunpack.c.h.b16 %v4487
          %v4767 = vunpack.c.l.b16 %v4488
          %v4768 = vunpack.c.h.b16 %v4488
          %v4769 = vunpack.c.l.b16 %v4489
          %v4770 = vunpack.c.h.b16 %v4489
          %v4771 = vunpack.c.l.b16 %v4490
          %v4772 = vunpack.c.h.b16 %v4490
          %v4773 = vunpack.c.l.b16 %v4491
          %v4774 = vunpack.c.h.b16 %v4491
          %v4775 = vunpack.c.l.b16 %v4492
          %v4776 = vunpack.c.h.b16 %v4492
          %v4777 = vunpack.c.l.b16 %v4493
          %v4778 = vunpack.c.h.b16 %v4493
          %v4779 = vunpack.c.l.b16 %v4494
          %v4780 = vunpack.c.h.b16 %v4494
          %v4781 = vunpack.c.l.b16 %v4495
          %v4782 = vunpack.c.h.b16 %v4495
          %v4783 = vunpack.c.l.b16 %v4496
          %v4784 = vunpack.c.h.b16 %v4496
          %v4785 = vunpack.c.l.b16 %v4497
          %v4786 = vunpack.c.h.b16 %v4497
          %v4787 = vunpack.c.l.b16 %v4498
          %v4788 = vunpack.c.h.b16 %v4498
          %v4789 = vunpack.c.l.b16 %v4499
          %v4790 = vunpack.c.h.b16 %v4499
          %v4791 = vunpack.c.l.b16 %v4500
          %v4792 = vunpack.c.h.b16 %v4500
          %v4793 = vunpack.c.l.b16 %v4501
          %v4794 = vunpack.c.h.b16 %v4501
          %v4795 = vunpack.c.l.b16 %v4502
          %v4796 = vunpack.c.h.b16 %v4502
          %v4797 = vunpack.c.l.b16 %v4503
          %v4798 = vunpack.c.h.b16 %v4503
          %v4799 = vunpack.c.l.b16 %v4504
          %v4800 = vunpack.c.h.b16 %v4504
          %v4801 = vunpack.c.l.b16 %v4505
          %v4802 = vunpack.c.h.b16 %v4505
          %v4803 = vunpack.c.l.b16 %v4506
          %v4804 = vunpack.c.h.b16 %v4506
          %v4805 = vunpack.c.l.b16 %v4507
          %v4806 = vunpack.c.h.b16 %v4507
          %v4807 = vunpack.c.l.b16 %v4508
          %v4808 = vunpack.c.h.b16 %v4508
          %v4809 = vunpack.c.l.b16 %v4509
          %v4810 = vunpack.c.h.b16 %v4509
          %v4811 = vunpack.c.l.b16 %v4510
          %v4812 = vunpack.c.h.b16 %v4510
          %v4813 = vunpack.c.l.b16 %v4511
          %v4814 = vunpack.c.h.b16 %v4511
          %v4815 = vunpack.c.l.b16 %v4512
          %v4816 = vunpack.c.h.b16 %v4512
          %v4817 = vunpack.c.l.b16 %v4513
          %v4818 = vunpack.c.h.b16 %v4513
          %v4819 = vunpack.c.l.b16 %v4514
          %v4820 = vunpack.c.h.b16 %v4514
          %v4821 = vunpack.c.l.b16 %v4515
          %v4822 = vunpack.c.h.b16 %v4515
          %v4823 = vunpack.c.l.b16 %v4516
          %v4824 = vunpack.c.h.b16 %v4516
          %v4825 = vunpack.c.l.b16 %v4517
          %v4826 = vunpack.c.h.b16 %v4517
          %v4827 = vunpack.c.l.b16 %v4518
          %v4828 = vunpack.c.h.b16 %v4518
          %v4829 = vunpack.c.l.b16 %v4519
          %v4830 = vunpack.c.h.b16 %v4519
          %v4831 = vunpack.c.l.b16 %v4520
          %v4832 = vunpack.c.h.b16 %v4520
          %v4833 = vunpack.c.l.b16 %v4521
          %v4834 = vunpack.c.h.b16 %v4521
          %v4835 = vunpack.c.l.b16 %v4522
          %v4836 = vunpack.c.h.b16 %v4522
          %v4837 = vunpack.c.l.b16 %v4523
          %v4838 = vunpack.c.h.b16 %v4523
          %v4839 = vunpack.c.l.b16 %v4524
          %v4840 = vunpack.c.h.b16 %v4524
          %v4841 = vunpack.c.l.b16 %v4525
          %v4842 = vunpack.c.h.b16 %v4525
          %v4843 = vunpack.c.l.b16 %v4526
          %v4844 = vunpack.c.h.b16 %v4526
          %v4845 = vunpack.c.l.b16 %v4527
          %v4846 = vunpack.c.h.b16 %v4527
          %v4847 = vunpack.c.l.b16 %v4528
          %v4848 = vunpack.c.h.b16 %v4528
          %v4849 = vunpack.c.l.b16 %v4529
          %v4850 = vunpack.c.h.b16 %v4529
          %v4851 = vunpack.c.l.b16 %v4530
          %v4852 = vunpack.c.h.b16 %v4530
          %v4853 = vunpack.c.l.b16 %v4531
          %v4854 = vunpack.c.h.b16 %v4531
          %v4855 = vunpack.c.l.b16 %v4532
          %v4856 = vunpack.c.h.b16 %v4532
          %v4857 = vunpack.c.l.b16 %v4533
          %v4858 = vunpack.c.h.b16 %v4533
          %v4859 = vunpack.c.l.b16 %v4534
          %v4860 = vunpack.c.h.b16 %v4534
          %v4861 = vunpack.c.l.b16 %v4535
          %v4862 = vunpack.c.h.b16 %v4535
          %v4863 = vunpack.c.l.b16 %v4536
          %v4864 = vunpack.c.h.b16 %v4536
          %v4865 = vunpack.c.l.b16 %v4537
          %v4866 = vunpack.c.h.b16 %v4537
          %v4867 = vunpack.c.l.b16 %v4538
          %v4868 = vunpack.c.h.b16 %v4538
          %v4869 = vunpack.c.l.b16 %v4539
          %v4870 = vunpack.c.h.b16 %v4539
          %v4871 = vunpack.c.l.b16 %v4540
          %v4872 = vunpack.c.h.b16 %v4540
          %v4873 = vunpack.c.l.b16 %v4541
          %v4874 = vunpack.c.h.b16 %v4541
          %v4875 = vunpack.c.l.b16 %v4542
          %v4876 = vunpack.c.h.b16 %v4542
          %v4877 = vunpack.c.l.b16 %v4543
          %v4878 = vunpack.c.h.b16 %v4543
          %v4879 = vunpack.c.l.b16 %v4544
          %v4880 = vunpack.c.h.b16 %v4544
          %v4881 = vunpack.c.l.b16 %v4545
          %v4882 = vunpack.c.h.b16 %v4545
          %v4883 = vunpack.c.l.b16 %v4546
          %v4884 = vunpack.c.h.b16 %v4546
          %v4885 = vunpack.c.l.b16 %v4547
          %v4886 = vunpack.c.h.b16 %v4547
          %v4887 = vunpack.c.l.b16 %v4548
          %v4888 = vunpack.c.h.b16 %v4548
          %v4889 = vunpack.c.l.b16 %v4549
          %v4890 = vunpack.c.h.b16 %v4549
          %v4891 = vunpack.c.l.b16 %v4550
          %v4892 = vunpack.c.h.b16 %v4550
          %v4893 = vunpack.c.l.b16 %v4551
          %v4894 = vunpack.c.h.b16 %v4551
          %v4895 = vunpack.c.l.b16 %v4552
          %v4896 = vunpack.c.h.b16 %v4552
          %v4897 = vunpack.c.l.b16 %v4553
          %v4898 = vunpack.c.h.b16 %v4553
          %v4899 = vunpack.c.l.b16 %v4554
          %v4900 = vunpack.c.h.b16 %v4554
          %v4901 = vunpack.c.l.b16 %v4555
          %v4902 = vunpack.c.h.b16 %v4555
          %v4903 = vunpack.c.l.b16 %v4556
          %v4904 = vunpack.c.h.b16 %v4556
          %v4905 = vunpack.c.l.b16 %v4557
          %v4906 = vunpack.c.h.b16 %v4557
          %v4907 = vunpack.c.l.b16 %v4558
          %v4908 = vunpack.c.h.b16 %v4558
          %v4909 = vunpack.c.l.b16 %v4559
          %v4910 = vunpack.c.h.b16 %v4559
          %v4911 = vunpack.c.l.b16 %v4560
          %v4912 = vunpack.c.h.b16 %v4560
          %v4913 = vunpack.c.l.b16 %v4561
          %v4914 = vunpack.c.h.b16 %v4561
          %v4915 = vunpack.c.l.b16 %v4562
          %v4916 = vunpack.c.h.b16 %v4562
          %v4917 = vunpack.c.l.b16 %v4563
          %v4918 = vunpack.c.h.b16 %v4563
          %v4919 = vunpack.c.l.b16 %v4564
          %v4920 = vunpack.c.h.b16 %v4564
          %v4921 = vunpack.c.l.b16 %v4565
          %v4922 = vunpack.c.h.b16 %v4565
          %v4923 = vunpack.c.l.b16 %v4566
          %v4924 = vunpack.c.h.b16 %v4566
          %v4925 = vunpack.c.l.b16 %v4567
          %v4926 = vunpack.c.h.b16 %v4567
          %v4927 = vunpack.c.l.b16 %v4568
          %v4928 = vunpack.c.h.b16 %v4568
          %v4929 = vunpack.c.l.b16 %v4569
          %v4930 = vunpack.c.h.b16 %v4569
          %v4931 = vunpack.c.l.b16 %v4570
          %v4932 = vunpack.c.h.b16 %v4570
          %v4933 = vunpack.c.l.b16 %v4571
          %v4934 = vunpack.c.h.b16 %v4571
          %v4935 = vunpack.c.l.b16 %v4572
          %v4936 = vunpack.c.h.b16 %v4572
          %v4937 = vunpack.c.l.b16 %v4573
          %v4938 = vunpack.c.h.b16 %v4573
          %v4939 = vunpack.c.l.b16 %v4574
          %v4940 = vunpack.c.h.b16 %v4574
          %v4941 = vunpack.c.l.b16 %v4575
          %v4942 = vunpack.c.h.b16 %v4575
          %v4943 = vunpack.c.l.b16 %v4576
          %v4944 = vunpack.c.h.b16 %v4576
          %v4945 = vunpack.c.l.b16 %v4577
          %v4946 = vunpack.c.h.b16 %v4577
          %v4947 = vunpack.c.l.b16 %v4578
          %v4948 = vunpack.c.h.b16 %v4578
          %v4949 = vunpack.c.l.b16 %v4579
          %v4950 = vunpack.c.h.b16 %v4579
          %v4951 = vunpack.c.l.b16 %v4580
          %v4952 = vunpack.c.h.b16 %v4580
          %v4953 = vunpack.c.l.b16 %v4581
          %v4954 = vunpack.c.h.b16 %v4581
          %v4955 = vunpack.c.l.b16 %v4582
          %v4956 = vunpack.c.h.b16 %v4582
          %v4957 = vunpack.c.l.b16 %v4583
          %v4958 = vunpack.c.h.b16 %v4583
          %v4959 = vunpack.c.l.b16 %v4584
          %v4960 = vunpack.c.h.b16 %v4584
          %v4961 = vunpack.c.l.b16 %v4585
          %v4962 = vunpack.c.h.b16 %v4585
          %v4963 = vunpack.c.l.b16 %v4586
          %v4964 = vunpack.c.h.b16 %v4586
          %v4965 = vunpack.c.l.b16 %v4587
          %v4966 = vunpack.c.h.b16 %v4587
          %v4967 = vunpack.c.l.b16 %v4588
          %v4968 = vunpack.c.h.b16 %v4588
          %v4969 = vunpack.c.l.b16 %v4589
          %v4970 = vunpack.c.h.b16 %v4589
          %v4971 = vunpack.c.l.b16 %v4590
          %v4972 = vunpack.c.h.b16 %v4590
          %v4973 = vunpack.c.l.b16 %v4591
          %v4974 = vunpack.c.h.b16 %v4591
          %v4975 = vunpack.c.l.b16 %v4592
          %v4976 = vunpack.c.h.b16 %v4592
          %v4977 = vunpack.c.l.b16 %v4593
          %v4978 = vunpack.c.h.b16 %v4593
          %v4979 = vunpack.c.l.b16 %v4594
          %v4980 = vunpack.c.h.b16 %v4594
          %v4981 = vunpack.c.l.b16 %v4595
          %v4982 = vunpack.c.h.b16 %v4595
          %v4983 = vunpack.c.l.b16 %v4596
          %v4984 = vunpack.c.h.b16 %v4596
          %v4985 = vunpack.c.l.b16 %v4597
          %v4986 = vunpack.c.h.b16 %v4597
          %v4987 = vunpack.c.l.b16 %v4598
          %v4988 = vunpack.c.h.b16 %v4598
          %v4989 = vunpack.c.l.b16 %v4599
          %v4990 = vunpack.c.h.b16 %v4599
          %v4991 = vunpack.c.l.b16 %v4600
          %v4992 = vunpack.c.h.b16 %v4600
          %v4993 = vunpack.c.l.b16 %v4601
          %v4994 = vunpack.c.h.b16 %v4601
          %v4995 = vunpack.c.l.b16 %v4602
          %v4996 = vunpack.c.h.b16 %v4602
          %v4997 = vunpack.c.l.b16 %v4603
          %v4998 = vunpack.c.h.b16 %v4603
          %v4999 = vpack.c.b16 %v4747, %v4743
          %v5000 = vpack.c.b16 %v4748, %v4744
          %v5001 = vpack.c.b16 %v4749, %v4745
          %v5002 = vpack.c.b16 %v4750, %v4746
          %v5003 = vpack.c.b16 %v4755, %v4751
          %v5004 = vpack.c.b16 %v4756, %v4752
          %v5005 = vpack.c.b16 %v4757, %v4753
          %v5006 = vpack.c.b16 %v4758, %v4754
          %v5007 = vpack.c.b16 %v4763, %v4759
          %v5008 = vpack.c.b16 %v4764, %v4760
          %v5009 = vpack.c.b16 %v4765, %v4761
          %v5010 = vpack.c.b16 %v4766, %v4762
          %v5011 = vpack.c.b16 %v4771, %v4767
          %v5012 = vpack.c.b16 %v4772, %v4768
          %v5013 = vpack.c.b16 %v4773, %v4769
          %v5014 = vpack.c.b16 %v4774, %v4770
          %v5015 = vpack.c.b16 %v4779, %v4775
          %v5016 = vpack.c.b16 %v4780, %v4776
          %v5017 = vpack.c.b16 %v4781, %v4777
          %v5018 = vpack.c.b16 %v4782, %v4778
          %v5019 = vpack.c.b16 %v4787, %v4783
          %v5020 = vpack.c.b16 %v4788, %v4784
          %v5021 = vpack.c.b16 %v4789, %v4785
          %v5022 = vpack.c.b16 %v4790, %v4786
          %v5023 = vpack.c.b16 %v4795, %v4791
          %v5024 = vpack.c.b16 %v4796, %v4792
          %v5025 = vpack.c.b16 %v4797, %v4793
          %v5026 = vpack.c.b16 %v4798, %v4794
          %v5027 = vpack.c.b16 %v4803, %v4799
          %v5028 = vpack.c.b16 %v4804, %v4800
          %v5029 = vpack.c.b16 %v4805, %v4801
          %v5030 = vpack.c.b16 %v4806, %v4802
          %v5031 = vpack.c.b16 %v4811, %v4807
          %v5032 = vpack.c.b16 %v4812, %v4808
          %v5033 = vpack.c.b16 %v4813, %v4809
          %v5034 = vpack.c.b16 %v4814, %v4810
          %v5035 = vpack.c.b16 %v4819, %v4815
          %v5036 = vpack.c.b16 %v4820, %v4816
          %v5037 = vpack.c.b16 %v4821, %v4817
          %v5038 = vpack.c.b16 %v4822, %v4818
          %v5039 = vpack.c.b16 %v4827, %v4823
          %v5040 = vpack.c.b16 %v4828, %v4824
          %v5041 = vpack.c.b16 %v4829, %v4825
          %v5042 = vpack.c.b16 %v4830, %v4826
          %v5043 = vpack.c.b16 %v4835, %v4831
          %v5044 = vpack.c.b16 %v4836, %v4832
          %v5045 = vpack.c.b16 %v4837, %v4833
          %v5046 = vpack.c.b16 %v4838, %v4834
          %v5047 = vpack.c.b16 %v4843, %v4839
          %v5048 = vpack.c.b16 %v4844, %v4840
          %v5049 = vpack.c.b16 %v4845, %v4841
          %v5050 = vpack.c.b16 %v4846, %v4842
          %v5051 = vpack.c.b16 %v4851, %v4847
          %v5052 = vpack.c.b16 %v4852, %v4848
          %v5053 = vpack.c.b16 %v4853, %v4849
          %v5054 = vpack.c.b16 %v4854, %v4850
          %v5055 = vpack.c.b16 %v4859, %v4855
          %v5056 = vpack.c.b16 %v4860, %v4856
          %v5057 = vpack.c.b16 %v4861, %v4857
          %v5058 = vpack.c.b16 %v4862, %v4858
          %v5059 = vpack.c.b16 %v4867, %v4863
          %v5060 = vpack.c.b16 %v4868, %v4864
          %v5061 = vpack.c.b16 %v4869, %v4865
          %v5062 = vpack.c.b16 %v4870, %v4866
          %v5063 = vpack.c.b16 %v4875, %v4871
          %v5064 = vpack.c.b16 %v4876, %v4872
          %v5065 = vpack.c.b16 %v4877, %v4873
          %v5066 = vpack.c.b16 %v4878, %v4874
          %v5067 = vpack.c.b16 %v4883, %v4879
          %v5068 = vpack.c.b16 %v4884, %v4880
          %v5069 = vpack.c.b16 %v4885, %v4881
          %v5070 = vpack.c.b16 %v4886, %v4882
          %v5071 = vpack.c.b16 %v4891, %v4887
          %v5072 = vpack.c.b16 %v4892, %v4888
          %v5073 = vpack.c.b16 %v4893, %v4889
          %v5074 = vpack.c.b16 %v4894, %v4890
          %v5075 = vpack.c.b16 %v4899, %v4895
          %v5076 = vpack.c.b16 %v4900, %v4896
          %v5077 = vpack.c.b16 %v4901, %v4897
          %v5078 = vpack.c.b16 %v4902, %v4898
          %v5079 = vpack.c.b16 %v4907, %v4903
          %v5080 = vpack.c.b16 %v4908, %v4904
          %v5081 = vpack.c.b16 %v4909, %v4905
          %v5082 = vpack.c.b16 %v4910, %v4906
          %v5083 = vpack.c.b16 %v4915, %v4911
          %v5084 = vpack.c.b16 %v4916, %v4912
          %v5085 = vpack.c.b16 %v4917, %v4913
          %v5086 = vpack.c.b16 %v4918, %v4914
          %v5087 = vpack.c.b16 %v4923, %v4919
          %v5088 = vpack.c.b16 %v4924, %v4920
          %v5089 = vpack.c.b16 %v4925, %v4921
          %v5090 = vpack.c.b16 %v4926, %v4922
          %v5091 = vpack.c.b16 %v4931, %v4927
          %v5092 = vpack.c.b16 %v4932, %v4928
          %v5093 = vpack.c.b16 %v4933, %v4929
          %v5094 = vpack.c.b16 %v4934, %v4930
          %v5095 = vpack.c.b16 %v4939, %v4935
          %v5096 = vpack.c.b16 %v4940, %v4936
          %v5097 = vpack.c.b16 %v4941, %v4937
          %v5098 = vpack.c.b16 %v4942, %v4938
          %v5099 = vpack.c.b16 %v4947, %v4943
          %v5100 = vpack.c.b16 %v4948, %v4944
          %v5101 = vpack.c.b16 %v4949, %v4945
          %v5102 = vpack.c.b16 %v4950, %v4946
          %v5103 = vpack.c.b16 %v4955, %v4951
          %v5104 = vpack.c.b16 %v4956, %v4952
          %v5105 = vpack.c.b16 %v4957, %v4953
          %v5106 = vpack.c.b16 %v4958, %v4954
          %v5107 = vpack.c.b16 %v4963, %v4959
          %v5108 = vpack.c.b16 %v4964, %v4960
          %v5109 = vpack.c.b16 %v4965, %v4961
          %v5110 = vpack.c.b16 %v4966, %v4962
          %v5111 = vpack.c.b16 %v4971, %v4967
          %v5112 = vpack.c.b16 %v4972, %v4968
          %v5113 = vpack.c.b16 %v4973, %v4969
          %v5114 = vpack.c.b16 %v4974, %v4970
          %v5115 = vpack.c.b16 %v4979, %v4975
          %v5116 = vpack.c.b16 %v4980, %v4976
          %v5117 = vpack.c.b16 %v4981, %v4977
          %v5118 = vpack.c.b16 %v4982, %v4978
          %v5119 = vpack.c.b16 %v4987, %v4983
          %v5120 = vpack.c.b16 %v4988, %v4984
          %v5121 = vpack.c.b16 %v4989, %v4985
          %v5122 = vpack.c.b16 %v4990, %v4986
          %v5123 = vpack.c.b16 %v4995, %v4991
          %v5124 = vpack.c.b16 %v4996, %v4992
          %v5125 = vpack.c.b16 %v4997, %v4993
          %v5126 = vpack.c.b16 %v4998, %v4994
          %5255 = vmatpush.bf16.msra.mxu0 %v5027
          %5256 = vmatpush.bf16.msra.mxu0 %v5023
          %5257 = vmatpush.bf16.msra.mxu0 %v5019
          %5258 = vmatpush.bf16.msra.mxu0 %v5015
          %5259 = vmatpush.bf16.msra.mxu0 %v5011
          %5260 = vmatpush.bf16.msra.mxu0 %v5007
          %5261 = vmatpush.bf16.msra.mxu0 %v5003
          %5262 = vmatpush.bf16.msra.mxu0 %v4999
          %5263 = vmatmul.bf16.gmra.mxu0 %v4472
          %v5264 = vpop.f32.mrf.mxu0
          %v5265 = vadd.f32 %v4607, %v5264
          %v5266 = vpop.f32.mrf.mxu0
          %5267 = vdwg.mxu0
          %5268 = vmatpush.bf16.msra.mxu0 %v5059
          %5269 = vmatpush.bf16.msra.mxu0 %v5055
          %5270 = vmatpush.bf16.msra.mxu0 %v5051
          %5271 = vmatpush.bf16.msra.mxu0 %v5047
          %5272 = vmatpush.bf16.msra.mxu0 %v5043
          %5273 = vmatpush.bf16.msra.mxu0 %v5039
          %5274 = vmatpush.bf16.msra.mxu0 %v5035
          %5275 = vmatpush.bf16.msra.mxu0 %v5031
          %5276 = vmatmul.bf16.gmra.mxu0 %v4473
          %v5277 = vpop.f32.mrf.mxu0
          %v5278 = vadd.f32 %v5265, %v5277
          %v5279 = vpop.f32.mrf.mxu0
          %5280 = vdwg.mxu0
          %5281 = vmatpush.bf16.msra.mxu0 %v5091
          %5282 = vmatpush.bf16.msra.mxu0 %v5087
          %5283 = vmatpush.bf16.msra.mxu0 %v5083
          %5284 = vmatpush.bf16.msra.mxu0 %v5079
          %5285 = vmatpush.bf16.msra.mxu0 %v5075
          %5286 = vmatpush.bf16.msra.mxu0 %v5071
          %5287 = vmatpush.bf16.msra.mxu0 %v5067
          %5288 = vmatpush.bf16.msra.mxu0 %v5063
          %5289 = vmatmul.bf16.gmra.mxu0 %v4474
          %v5290 = vpop.f32.mrf.mxu0
          %v5291 = vadd.f32 %v5278, %v5290
          %v5292 = vpop.f32.mrf.mxu0
          %5293 = vdwg.mxu0
          %5294 = vmatpush.bf16.msra.mxu0 %v5123
          %5295 = vmatpush.bf16.msra.mxu0 %v5119
          %5296 = vmatpush.bf16.msra.mxu0 %v5115
          %5297 = vmatpush.bf16.msra.mxu0 %v5111
          %5298 = vmatpush.bf16.msra.mxu0 %v5107
          %5299 = vmatpush.bf16.msra.mxu0 %v5103
          %5300 = vmatpush.bf16.msra.mxu0 %v5099
          %5301 = vmatpush.bf16.msra.mxu0 %v5095
          %5302 = vmatmul.bf16.gmra.mxu0 %v4475
          %v5303 = vpop.f32.mrf.mxu0
          %v5304 = vadd.f32 %v5291, %v5303
          %v5305 = vpop.f32.mrf.mxu0
          %5306 = vdwg.mxu0
          %5307 = vmatpush.bf16.msra.mxu0 %v5028
          %5308 = vmatpush.bf16.msra.mxu0 %v5024
          %5309 = vmatpush.bf16.msra.mxu0 %v5020
          %5310 = vmatpush.bf16.msra.mxu0 %v5016
          %5311 = vmatpush.bf16.msra.mxu0 %v5012
          %5312 = vmatpush.bf16.msra.mxu0 %v5008
          %5313 = vmatpush.bf16.msra.mxu0 %v5004
          %5314 = vmatpush.bf16.msra.mxu0 %v5000
          %5315 = vmatmul.bf16.gmra.mxu0 %v4472
          %v5316 = vpop.f32.mrf.mxu0
          %v5317 = vadd.f32 %v4608, %v5316
          %v5318 = vpop.f32.mrf.mxu0
          %5319 = vdwg.mxu0
          %5320 = vmatpush.bf16.msra.mxu0 %v5060
          %5321 = vmatpush.bf16.msra.mxu0 %v5056
          %5322 = vmatpush.bf16.msra.mxu0 %v5052
          %5323 = vmatpush.bf16.msra.mxu0 %v5048
          %5324 = vmatpush.bf16.msra.mxu0 %v5044
          %5325 = vmatpush.bf16.msra.mxu0 %v5040
          %5326 = vmatpush.bf16.msra.mxu0 %v5036
          %5327 = vmatpush.bf16.msra.mxu0 %v5032
          %5328 = vmatmul.bf16.gmra.mxu0 %v4473
          %v5329 = vpop.f32.mrf.mxu0
          %v5330 = vadd.f32 %v5317, %v5329
          %v5331 = vpop.f32.mrf.mxu0
          %5332 = vdwg.mxu0
          %5333 = vmatpush.bf16.msra.mxu0 %v5092
          %5334 = vmatpush.bf16.msra.mxu0 %v5088
          %5335 = vmatpush.bf16.msra.mxu0 %v5084
          %5336 = vmatpush.bf16.msra.mxu0 %v5080
          %5337 = vmatpush.bf16.msra.mxu0 %v5076
          %5338 = vmatpush.bf16.msra.mxu0 %v5072
          %5339 = vmatpush.bf16.msra.mxu0 %v5068
          %5340 = vmatpush.bf16.msra.mxu0 %v5064
          %5341 = vmatmul.bf16.gmra.mxu0 %v4474
          %v5342 = vpop.f32.mrf.mxu0
          %v5343 = vadd.f32 %v5330, %v5342
          %v5344 = vpop.f32.mrf.mxu0
          %5345 = vdwg.mxu0
          %5346 = vmatpush.bf16.msra.mxu0 %v5124
          %5347 = vmatpush.bf16.msra.mxu0 %v5120
          %5348 = vmatpush.bf16.msra.mxu0 %v5116
          %5349 = vmatpush.bf16.msra.mxu0 %v5112
          %5350 = vmatpush.bf16.msra.mxu0 %v5108
          %5351 = vmatpush.bf16.msra.mxu0 %v5104
          %5352 = vmatpush.bf16.msra.mxu0 %v5100
          %5353 = vmatpush.bf16.msra.mxu0 %v5096
          %5354 = vmatmul.bf16.gmra.mxu0 %v4475
          %v5355 = vpop.f32.mrf.mxu0
          %v5356 = vadd.f32 %v5343, %v5355
          %v5357 = vpop.f32.mrf.mxu0
          %5358 = vdwg.mxu0
          %5359 = vmatpush.bf16.msra.mxu0 %v5029
          %5360 = vmatpush.bf16.msra.mxu0 %v5025
          %5361 = vmatpush.bf16.msra.mxu0 %v5021
          %5362 = vmatpush.bf16.msra.mxu0 %v5017
          %5363 = vmatpush.bf16.msra.mxu0 %v5013
          %5364 = vmatpush.bf16.msra.mxu0 %v5009
          %5365 = vmatpush.bf16.msra.mxu0 %v5005
          %5366 = vmatpush.bf16.msra.mxu0 %v5001
          %5367 = vmatmul.bf16.gmra.mxu0 %v4472
          %v5368 = vpop.f32.mrf.mxu0
          %v5369 = vadd.f32 %v4609, %v5368
          %v5370 = vpop.f32.mrf.mxu0
          %5371 = vdwg.mxu0
          %5372 = vmatpush.bf16.msra.mxu0 %v5061
          %5373 = vmatpush.bf16.msra.mxu0 %v5057
          %5374 = vmatpush.bf16.msra.mxu0 %v5053
          %5375 = vmatpush.bf16.msra.mxu0 %v5049
          %5376 = vmatpush.bf16.msra.mxu0 %v5045
          %5377 = vmatpush.bf16.msra.mxu0 %v5041
          %5378 = vmatpush.bf16.msra.mxu0 %v5037
          %5379 = vmatpush.bf16.msra.mxu0 %v5033
          %5380 = vmatmul.bf16.gmra.mxu0 %v4473
          %v5381 = vpop.f32.mrf.mxu0
          %v5382 = vadd.f32 %v5369, %v5381
          %v5383 = vpop.f32.mrf.mxu0
          %5384 = vdwg.mxu0
          %5385 = vmatpush.bf16.msra.mxu0 %v5093
          %5386 = vmatpush.bf16.msra.mxu0 %v5089
          %5387 = vmatpush.bf16.msra.mxu0 %v5085
          %5388 = vmatpush.bf16.msra.mxu0 %v5081
          %5389 = vmatpush.bf16.msra.mxu0 %v5077
          %5390 = vmatpush.bf16.msra.mxu0 %v5073
          %5391 = vmatpush.bf16.msra.mxu0 %v5069
          %5392 = vmatpush.bf16.msra.mxu0 %v5065
          %5393 = vmatmul.bf16.gmra.mxu0 %v4474
          %v5394 = vpop.f32.mrf.mxu0
          %v5395 = vadd.f32 %v5382, %v5394
          %v5396 = vpop.f32.mrf.mxu0
          %5397 = vdwg.mxu0
          %5398 = vmatpush.bf16.msra.mxu0 %v5125
          %5399 = vmatpush.bf16.msra.mxu0 %v5121
          %5400 = vmatpush.bf16.msra.mxu0 %v5117
          %5401 = vmatpush.bf16.msra.mxu0 %v5113
          %5402 = vmatpush.bf16.msra.mxu0 %v5109
          %5403 = vmatpush.bf16.msra.mxu0 %v5105
          %5404 = vmatpush.bf16.msra.mxu0 %v5101
          %5405 = vmatpush.bf16.msra.mxu0 %v5097
          %5406 = vmatmul.bf16.gmra.mxu0 %v4475
          %v5407 = vpop.f32.mrf.mxu0
          %v5408 = vadd.f32 %v5395, %v5407
          %v5409 = vpop.f32.mrf.mxu0
          %5410 = vdwg.mxu0
          %5411 = vmatpush.bf16.msra.mxu0 %v5030
          %5412 = vmatpush.bf16.msra.mxu0 %v5026
          %5413 = vmatpush.bf16.msra.mxu0 %v5022
          %5414 = vmatpush.bf16.msra.mxu0 %v5018
          %5415 = vmatpush.bf16.msra.mxu0 %v5014
          %5416 = vmatpush.bf16.msra.mxu0 %v5010
          %5417 = vmatpush.bf16.msra.mxu0 %v5006
          %5418 = vmatpush.bf16.msra.mxu0 %v5002
          %5419 = vmatmul.bf16.gmra.mxu0 %v4472
          %v5420 = vpop.f32.mrf.mxu0
          %v5421 = vadd.f32 %v4610, %v5420
          %v5422 = vpop.f32.mrf.mxu0
          %5423 = vdwg.mxu0
          %5424 = vmatpush.bf16.msra.mxu0 %v5062
          %5425 = vmatpush.bf16.msra.mxu0 %v5058
          %5426 = vmatpush.bf16.msra.mxu0 %v5054
          %5427 = vmatpush.bf16.msra.mxu0 %v5050
          %5428 = vmatpush.bf16.msra.mxu0 %v5046
          %5429 = vmatpush.bf16.msra.mxu0 %v5042
          %5430 = vmatpush.bf16.msra.mxu0 %v5038
          %5431 = vmatpush.bf16.msra.mxu0 %v5034
          %5432 = vmatmul.bf16.gmra.mxu0 %v4473
          %v5433 = vpop.f32.mrf.mxu0
          %v5434 = vadd.f32 %v5421, %v5433
          %v5435 = vpop.f32.mrf.mxu0
          %5436 = vdwg.mxu0
          %5437 = vmatpush.bf16.msra.mxu0 %v5094
          %5438 = vmatpush.bf16.msra.mxu0 %v5090
          %5439 = vmatpush.bf16.msra.mxu0 %v5086
          %5440 = vmatpush.bf16.msra.mxu0 %v5082
          %5441 = vmatpush.bf16.msra.mxu0 %v5078
          %5442 = vmatpush.bf16.msra.mxu0 %v5074
          %5443 = vmatpush.bf16.msra.mxu0 %v5070
          %5444 = vmatpush.bf16.msra.mxu0 %v5066
          %5445 = vmatmul.bf16.gmra.mxu0 %v4474
          %v5446 = vpop.f32.mrf.mxu0
          %v5447 = vadd.f32 %v5434, %v5446
          %v5448 = vpop.f32.mrf.mxu0
          %5449 = vdwg.mxu0
          %5450 = vmatpush.bf16.msra.mxu0 %v5126
          %5451 = vmatpush.bf16.msra.mxu0 %v5122
          %5452 = vmatpush.bf16.msra.mxu0 %v5118
          %5453 = vmatpush.bf16.msra.mxu0 %v5114
          %5454 = vmatpush.bf16.msra.mxu0 %v5110
          %5455 = vmatpush.bf16.msra.mxu0 %v5106
          %5456 = vmatpush.bf16.msra.mxu0 %v5102
          %5457 = vmatpush.bf16.msra.mxu0 %v5098
          %5458 = vmatmul.bf16.gmra.mxu0 %v4475
          %v5459 = vpop.f32.mrf.mxu0
          %v5460 = vadd.f32 %v5447, %v5459
          %v5461 = vpop.f32.mrf.mxu0
          %5462 = vdwg.mxu0
          %v5463 = vmax.f32 %v5304, 0.0
          %v5464 = vmax.f32 %v5356, 0.0
          %v5465 = vmax.f32 %v5408, 0.0
          %v5466 = vmax.f32 %v5460, 0.0
          %v5467 = vpack.c.bf16 %v5463, %v5463
          %v5468 = vpack.c.bf16 %v5464, %v5464
          %v5469 = vpack.c.bf16 %v5465, %v5465
          %v5470 = vpack.c.bf16 %v5466, %v5466
          %v5471 = vld [vmem:[#allocation12] sm:$0xf]
          %v5472 = vld [vmem:[#allocation12 + $0x4] sm:$0xf]
          %v5473 = vld [vmem:[#allocation12 + $0x8] sm:$0xf]
          %v5474 = vld [vmem:[#allocation12 + $0xc] sm:$0xf]
          %v5475 = vld [vmem:[#allocation12 + $0x10] sm:$0xf]
          %v5476 = vld [vmem:[#allocation12 + $0x14] sm:$0xf]
          %v5477 = vld [vmem:[#allocation12 + $0x18] sm:$0xf]
          %v5478 = vld [vmem:[#allocation12 + $0x1c] sm:$0xf]
          %v5479 = vld [vmem:[#allocation12 + $0x20] sm:$0xf]
          %v5480 = vld [vmem:[#allocation12 + $0x24] sm:$0xf]
          %v5481 = vld [vmem:[#allocation12 + $0x28] sm:$0xf]
          %v5482 = vld [vmem:[#allocation12 + $0x2c] sm:$0xf]
          %v5483 = vld [vmem:[#allocation12 + $0x30] sm:$0xf]
          %v5484 = vld [vmem:[#allocation12 + $0x34] sm:$0xf]
          %v5485 = vld [vmem:[#allocation12 + $0x38] sm:$0xf]
          %v5486 = vld [vmem:[#allocation12 + $0x3c] sm:$0xf]
          %v5487 = vld [vmem:[#allocation12 + $0x40] sm:$0xf]
          %v5488 = vld [vmem:[#allocation12 + $0x44] sm:$0xf]
          %v5489 = vld [vmem:[#allocation12 + $0x48] sm:$0xf]
          %v5490 = vld [vmem:[#allocation12 + $0x4c] sm:$0xf]
          %v5491 = vld [vmem:[#allocation12 + $0x50] sm:$0xf]
          %v5492 = vld [vmem:[#allocation12 + $0x54] sm:$0xf]
          %v5493 = vld [vmem:[#allocation12 + $0x58] sm:$0xf]
          %v5494 = vld [vmem:[#allocation12 + $0x5c] sm:$0xf]
          %v5495 = vld [vmem:[#allocation12 + $0x60] sm:$0xf]
          %v5496 = vld [vmem:[#allocation12 + $0x64] sm:$0xf]
          %v5497 = vld [vmem:[#allocation12 + $0x68] sm:$0xf]
          %v5498 = vld [vmem:[#allocation12 + $0x6c] sm:$0xf]
          %v5499 = vld [vmem:[#allocation12 + $0x70] sm:$0xf]
          %v5500 = vld [vmem:[#allocation12 + $0x74] sm:$0xf]
          %v5501 = vld [vmem:[#allocation12 + $0x78] sm:$0xf]
          %v5502 = vld [vmem:[#allocation12 + $0x7c] sm:$0xf]
          %v5503 = vld [vmem:[#allocation12 + $0x80] sm:$0xf]
          %v5504 = vld [vmem:[#allocation12 + $0x84] sm:$0xf]
          %v5505 = vld [vmem:[#allocation12 + $0x88] sm:$0xf]
          %v5506 = vld [vmem:[#allocation12 + $0x8c] sm:$0xf]
          %v5507 = vld [vmem:[#allocation12 + $0x90] sm:$0xf]
          %v5508 = vld [vmem:[#allocation12 + $0x94] sm:$0xf]
          %v5509 = vld [vmem:[#allocation12 + $0x98] sm:$0xf]
          %v5510 = vld [vmem:[#allocation12 + $0x9c] sm:$0xf]
          %v5511 = vld [vmem:[#allocation12 + $0xa0] sm:$0xf]
          %v5512 = vld [vmem:[#allocation12 + $0xa4] sm:$0xf]
          %v5513 = vld [vmem:[#allocation12 + $0xa8] sm:$0xf]
          %v5514 = vld [vmem:[#allocation12 + $0xac] sm:$0xf]
          %v5515 = vld [vmem:[#allocation12 + $0xb0] sm:$0xf]
          %v5516 = vld [vmem:[#allocation12 + $0xb4] sm:$0xf]
          %v5517 = vld [vmem:[#allocation12 + $0xb8] sm:$0xf]
          %v5518 = vld [vmem:[#allocation12 + $0xbc] sm:$0xf]
          %v5519 = vld [vmem:[#allocation12 + $0xc0] sm:$0xf]
          %v5520 = vld [vmem:[#allocation12 + $0xc4] sm:$0xf]
          %v5521 = vld [vmem:[#allocation12 + $0xc8] sm:$0xf]
          %v5522 = vld [vmem:[#allocation12 + $0xcc] sm:$0xf]
          %v5523 = vld [vmem:[#allocation12 + $0xd0] sm:$0xf]
          %v5524 = vld [vmem:[#allocation12 + $0xd4] sm:$0xf]
          %v5525 = vld [vmem:[#allocation12 + $0xd8] sm:$0xf]
          %v5526 = vld [vmem:[#allocation12 + $0xdc] sm:$0xf]
          %v5527 = vld [vmem:[#allocation12 + $0xe0] sm:$0xf]
          %v5528 = vld [vmem:[#allocation12 + $0xe4] sm:$0xf]
          %v5529 = vld [vmem:[#allocation12 + $0xe8] sm:$0xf]
          %v5530 = vld [vmem:[#allocation12 + $0xec] sm:$0xf]
          %v5531 = vld [vmem:[#allocation12 + $0xf0] sm:$0xf]
          %v5532 = vld [vmem:[#allocation12 + $0xf4] sm:$0xf]
          %v5533 = vld [vmem:[#allocation12 + $0xf8] sm:$0xf]
          %v5534 = vld [vmem:[#allocation12 + $0xfc] sm:$0xf]
          %v5535 = vld [vmem:[#allocation15] sm:$0x1]
          %v5537 = vperm.slane %v5535, 0
          %v5603 = vunpack.c.l.b16 %v5471
          %v5604 = vunpack.c.l.b16 %v5472
          %v5605 = vunpack.c.l.b16 %v5473
          %v5606 = vunpack.c.l.b16 %v5474
          %v5607 = vunpack.c.l.b16 %v5475
          %v5608 = vunpack.c.l.b16 %v5476
          %v5609 = vunpack.c.l.b16 %v5477
          %v5610 = vunpack.c.l.b16 %v5478
          %v5611 = vunpack.c.l.b16 %v5479
          %v5612 = vunpack.c.l.b16 %v5480
          %v5613 = vunpack.c.l.b16 %v5481
          %v5614 = vunpack.c.l.b16 %v5482
          %v5615 = vunpack.c.l.b16 %v5483
          %v5616 = vunpack.c.l.b16 %v5484
          %v5617 = vunpack.c.l.b16 %v5485
          %v5618 = vunpack.c.l.b16 %v5486
          %v5619 = vunpack.c.l.b16 %v5487
          %v5620 = vunpack.c.l.b16 %v5488
          %v5621 = vunpack.c.l.b16 %v5489
          %v5622 = vunpack.c.l.b16 %v5490
          %v5623 = vunpack.c.l.b16 %v5491
          %v5624 = vunpack.c.l.b16 %v5492
          %v5625 = vunpack.c.l.b16 %v5493
          %v5626 = vunpack.c.l.b16 %v5494
          %v5627 = vunpack.c.l.b16 %v5495
          %v5628 = vunpack.c.l.b16 %v5496
          %v5629 = vunpack.c.l.b16 %v5497
          %v5630 = vunpack.c.l.b16 %v5498
          %v5631 = vunpack.c.l.b16 %v5499
          %v5632 = vunpack.c.l.b16 %v5500
          %v5633 = vunpack.c.l.b16 %v5501
          %v5634 = vunpack.c.l.b16 %v5502
          %v5635 = vunpack.c.l.b16 %v5503
          %v5636 = vunpack.c.l.b16 %v5504
          %v5637 = vunpack.c.l.b16 %v5505
          %v5638 = vunpack.c.l.b16 %v5506
          %v5639 = vunpack.c.l.b16 %v5507
          %v5640 = vunpack.c.l.b16 %v5508
          %v5641 = vunpack.c.l.b16 %v5509
          %v5642 = vunpack.c.l.b16 %v5510
          %v5643 = vunpack.c.l.b16 %v5511
          %v5644 = vunpack.c.l.b16 %v5512
          %v5645 = vunpack.c.l.b16 %v5513
          %v5646 = vunpack.c.l.b16 %v5514
          %v5647 = vunpack.c.l.b16 %v5515
          %v5648 = vunpack.c.l.b16 %v5516
          %v5649 = vunpack.c.l.b16 %v5517
          %v5650 = vunpack.c.l.b16 %v5518
          %v5651 = vunpack.c.l.b16 %v5519
          %v5652 = vunpack.c.l.b16 %v5520
          %v5653 = vunpack.c.l.b16 %v5521
          %v5654 = vunpack.c.l.b16 %v5522
          %v5655 = vunpack.c.l.b16 %v5523
          %v5656 = vunpack.c.l.b16 %v5524
          %v5657 = vunpack.c.l.b16 %v5525
          %v5658 = vunpack.c.l.b16 %v5526
          %v5659 = vunpack.c.l.b16 %v5527
          %v5660 = vunpack.c.l.b16 %v5528
          %v5661 = vunpack.c.l.b16 %v5529
          %v5662 = vunpack.c.l.b16 %v5530
          %v5663 = vunpack.c.l.b16 %v5531
          %v5664 = vunpack.c.l.b16 %v5532
          %v5665 = vunpack.c.l.b16 %v5533
          %v5666 = vunpack.c.l.b16 %v5534
          %v5667 = vpack.c.b16 %v5604, %v5603
          %v5668 = vpack.c.b16 %v5606, %v5605
          %v5669 = vpack.c.b16 %v5608, %v5607
          %v5670 = vpack.c.b16 %v5610, %v5609
          %v5671 = vpack.c.b16 %v5612, %v5611
          %v5672 = vpack.c.b16 %v5614, %v5613
          %v5673 = vpack.c.b16 %v5616, %v5615
          %v5674 = vpack.c.b16 %v5618, %v5617
          %v5675 = vpack.c.b16 %v5620, %v5619
          %v5676 = vpack.c.b16 %v5622, %v5621
          %v5677 = vpack.c.b16 %v5624, %v5623
          %v5678 = vpack.c.b16 %v5626, %v5625
          %v5679 = vpack.c.b16 %v5628, %v5627
          %v5680 = vpack.c.b16 %v5630, %v5629
          %v5681 = vpack.c.b16 %v5632, %v5631
          %v5682 = vpack.c.b16 %v5634, %v5633
          %v5683 = vpack.c.b16 %v5636, %v5635
          %v5684 = vpack.c.b16 %v5638, %v5637
          %v5685 = vpack.c.b16 %v5640, %v5639
          %v5686 = vpack.c.b16 %v5642, %v5641
          %v5687 = vpack.c.b16 %v5644, %v5643
          %v5688 = vpack.c.b16 %v5646, %v5645
          %v5689 = vpack.c.b16 %v5648, %v5647
          %v5690 = vpack.c.b16 %v5650, %v5649
          %v5691 = vpack.c.b16 %v5652, %v5651
          %v5692 = vpack.c.b16 %v5654, %v5653
          %v5693 = vpack.c.b16 %v5656, %v5655
          %v5694 = vpack.c.b16 %v5658, %v5657
          %v5695 = vpack.c.b16 %v5660, %v5659
          %v5696 = vpack.c.b16 %v5662, %v5661
          %v5697 = vpack.c.b16 %v5664, %v5663
          %v5698 = vpack.c.b16 %v5666, %v5665
          %5731 = vmatpush.bf16.msra.mxu0 %v5674
          %5732 = vmatpush.bf16.msra.mxu0 %v5673
          %5733 = vmatpush.bf16.msra.mxu0 %v5672
          %5734 = vmatpush.bf16.msra.mxu0 %v5671
          %5735 = vmatpush.bf16.msra.mxu0 %v5670
          %5736 = vmatpush.bf16.msra.mxu0 %v5669
          %5737 = vmatpush.bf16.msra.mxu0 %v5668
          %5738 = vmatpush.bf16.msra.mxu0 %v5667
          %5739 = vmatmul.bf16.gmra.mxu0 %v5467
          %v5740 = vpop.f32.mrf.mxu0
          %v5741 = vadd.f32 %v5537, %v5740
          %v5742 = vpop.f32.mrf.mxu0
          %5743 = vdwg.mxu0
          %5744 = vmatpush.bf16.msra.mxu0 %v5682
          %5745 = vmatpush.bf16.msra.mxu0 %v5681
          %5746 = vmatpush.bf16.msra.mxu0 %v5680
          %5747 = vmatpush.bf16.msra.mxu0 %v5679
          %5748 = vmatpush.bf16.msra.mxu0 %v5678
          %5749 = vmatpush.bf16.msra.mxu0 %v5677
          %5750 = vmatpush.bf16.msra.mxu0 %v5676
          %5751 = vmatpush.bf16.msra.mxu0 %v5675
          %5752 = vmatmul.bf16.gmra.mxu0 %v5468
          %v5753 = vpop.f32.mrf.mxu0
          %v5754 = vadd.f32 %v5741, %v5753
          %v5755 = vpop.f32.mrf.mxu0
          %5756 = vdwg.mxu0
          %5757 = vmatpush.bf16.msra.mxu0 %v5690
          %5758 = vmatpush.bf16.msra.mxu0 %v5689
          %5759 = vmatpush.bf16.msra.mxu0 %v5688
          %5760 = vmatpush.bf16.msra.mxu0 %v5687
          %5761 = vmatpush.bf16.msra.mxu0 %v5686
          %5762 = vmatpush.bf16.msra.mxu0 %v5685
          %5763 = vmatpush.bf16.msra.mxu0 %v5684
          %5764 = vmatpush.bf16.msra.mxu0 %v5683
          %5765 = vmatmul.bf16.gmra.mxu0 %v5469
          %v5766 = vpop.f32.mrf.mxu0
          %v5767 = vadd.f32 %v5754, %v5766
          %v5768 = vpop.f32.mrf.mxu0
          %5769 = vdwg.mxu0
          %5770 = vmatpush.bf16.msra.mxu0 %v5698
          %5771 = vmatpush.bf16.msra.mxu0 %v5697
          %5772 = vmatpush.bf16.msra.mxu0 %v5696
          %5773 = vmatpush.bf16.msra.mxu0 %v5695
          %5774 = vmatpush.bf16.msra.mxu0 %v5694
          %5775 = vmatpush.bf16.msra.mxu0 %v5693
          %5776 = vmatpush.bf16.msra.mxu0 %v5692
          %5777 = vmatpush.bf16.msra.mxu0 %v5691
          %5778 = vmatmul.bf16.gmra.mxu0 %v5470
          %v5779 = vpop.f32.mrf.mxu0
          %v5780 = vadd.f32 %v5767, %v5779
          %v5781 = vpop.f32.mrf.mxu0
          %5782 = vdwg.mxu0
          %5783 = vst [vmem:[#allocation17] sm:$0xff] %v5780
        $region92: #{tpu_custom_call.1} parent=51 // pred_fallthru
          _
        // Predicated region
        $region93: #{tpu_custom_call.1} parent=51 // pred_check
          %p5784 = pneg %p220
        $region94: #{tpu_custom_call.1} parent=51 // pred_check_branch
          %5786 = sbr.rel (%p5784) target = $region96
        $region95: #{tpu_custom_call.1} parent=51 // pred_region
          %5788 = vsyncadd [#allocation5], 0
          %s5790 = sshll.u32 [#allocation17], 4
          %s5791 = int_to_ptr.vmem [resolvable:$true] %s5790
          %s5792 = sshll.u32 %s8, 4
          %s5793 = int_to_ptr.hbm [resolvable:$true] %s5792
          %5795 = dma.vmem_to_hbm [thread:$0]  %s5791, 128, %s5793, [#allocation5]
        $region96: #{tpu_custom_call.1} parent=51 // pred_fallthru
          _
        // Predicated region
        $region97: #{tpu_custom_call.1} parent=51 // pred_check
          %p5796 = pneg %p220
        $region98: #{tpu_custom_call.1} parent=51 // pred_check_branch
          %5798 = sbr.rel (%p5796) target = $region100
        $region99: #{tpu_custom_call.1} parent=51 // pred_region
          %5800 = dma.done [#allocation5], 128
        $region100: #{tpu_custom_call.1} parent=51 // pred_fallthru
          _
      $region52: #{tpu_custom_call.1} parent=5 // pred_fallthru
        _
      %p5801 = scmp.le.s32.totalorder 2, %s24
      // Predicated region
      $region101: #{tpu_custom_call.1} parent=5 // pred_check
        %p5802 = pneg %p5801
      $region102: #{tpu_custom_call.1} parent=5 // pred_check_branch
        %5804 = sbr.rel (%p5802) target = $region104
      $region103: #{tpu_custom_call.1} parent=5 // pred_region
        %s5805 = ssub.s32 %s24, 2
      $region104: #{tpu_custom_call.1} parent=5 // pred_fallthru
        _
    $region6: #{tpu_custom_call.1} parent=1 // loop_footer
      %s28 = sadd.s32 1, %s24
    $region7: #{tpu_custom_call.1} parent=1 // loop_footer_branch
      %23 = sbr.rel target = $region3
    $region8: #{tpu_custom_call.1} parent=1 // loop_exit
      _
    %5806 = vsyncpa [#allocation4], 1
    %s5807 = scalar_lea.sflag [#allocation4], 1
    %5808 = vsyncpa %s5807, 1
    %5809 = vsyncpa [#allocation7], 1
    %s5810 = scalar_lea.sflag [#allocation7], 1
    %5811 = vsyncpa %s5810, 1
    %5812 = vsyncpa [#allocation10], 1
    %5813 = vsyncpa [#allocation13], 1
    %5814 = vsyncpa [#allocation16], 1
    %5815 = vsyncpa [#allocation5], 1
    %s5816 = scalar_lea.sflag [#allocation5], 1
    %5817 = vsyncpa %s5816, 1

</llo_original>
